<compile_context>
chip_gen: v7x
topology: tpu7x:2x2x1
jax: 0.10.0
libtpu: 0.0.40
codegen_flags: <defaults>
</compile_context>

<pallas_src>
import jax
import jax.numpy as jnp
from jax import lax
from jax.experimental import pallas as pl
from jax.experimental.pallas import tpu as pltpu

INPUT_SIZE = 1
HIDDEN = 50
NUM_LAYERS = 2

HP = 128          # per-gate padded lane width
GW = 4 * HP       # fused gate width (i, f, g, o)
BT = 8            # batch rows per grid step (one sublane tile)


def _lstm_regressor_kernel(x_ref,      # (T, BT, 1)   time-major batch tile, f32
                           wih1_ref,   # (1, GW)      layer-0 input weights (fused gates), f32
                           b1_ref,     # (1, GW)      layer-0 bias (b_ih + b_hh), f32
                           whh1_ref,   # (HP, GW)     layer-0 recurrent weights, bf16
                           w2_ref,     # (2*HP, GW)   layer-1 [input; recurrent] weights, bf16
                           b2_ref,     # (1, GW)      layer-1 bias (b_ih + b_hh), f32
                           wfc_ref,    # (1, HP)      fc weight (padded row), f32
                           bfc_ref,    # (1, 1)       fc bias, f32
                           out_ref):   # (BT, 1)      f32
    T, Bt, _ = x_ref.shape

    # Hoist bias broadcasts out of the time loop (JAX does not CSE broadcasts).
    b1b = jnp.broadcast_to(b1_ref[...], (Bt, GW))
    b2b = jnp.broadcast_to(b2_ref[...], (Bt, GW))

    def gates_update(g, c):
        # g: (Bt, GW) fused pre-activations; static, lane-aligned 128-wide slices.
        i_g = jax.nn.sigmoid(g[:, 0 * HP:1 * HP])
        f_g = jax.nn.sigmoid(g[:, 1 * HP:2 * HP])
        g_g = jnp.tanh(g[:, 2 * HP:3 * HP])
        o_g = jax.nn.sigmoid(g[:, 3 * HP:4 * HP])
        c_new = f_g * c + i_g * g_g
        h_new = o_g * jnp.tanh(c_new)
        return h_new, c_new

    def step(t, carry):
        h1, c1, h2, c2 = carry
        # Layer 0: input projection is an outer product (INPUT_SIZE == 1) ->
        # pure VPU broadcast-multiply with b1 folded in; recurrent term is one
        # fused-gate bf16 MXU matmul (f32 accumulation).
        x_t = x_ref[t]                                           # (Bt, 1)
        g1 = (x_t * wih1_ref[...] + b1b
              + jnp.dot(h1.astype(jnp.bfloat16), whh1_ref[...],
                        preferred_element_type=jnp.float32))
        h1, c1 = gates_update(g1, c1)
        # Layer 1: fuse [input ; recurrent] operands -> one (Bt,2HP)x(2HP,GW)
        # bf16 matmul per step.
        hcat = jnp.concatenate([h1, h2], axis=-1).astype(jnp.bfloat16)
        g2 = b2b + jnp.dot(hcat, w2_ref[...],
                           preferred_element_type=jnp.float32)
        h2, c2 = gates_update(g2, c2)
        return (h1, c1, h2, c2)

    zeros = jnp.zeros((Bt, HP), jnp.float32)
    # Full unroll for small/static T (lets the scheduler overlap layer-0 of
    # step t+1 with layer-1's EUP tail of step t); cap unroll for long T so
    # instruction memory / compile time stay bounded.
    unroll = True if T <= 16 else 8
    _, _, h2, _ = lax.fori_loop(0, T, step, (zeros, zeros, zeros, zeros),
                                unroll=unroll)

    # Final fc: VPU multiply + XLU lane reduction (avoid an N=1 MXU matmul).
    out_ref[...] = (jnp.sum(h2 * wfc_ref[...], axis=-1, keepdims=True)
                    + bfc_ref[...])


def _pack_gate_cols(w):
    """(4, K, H) per-gate weights -> (K, GW) with gate k in lanes [k*HP, k*HP+H)."""
    K, H = w.shape[1], w.shape[2]
    out = jnp.zeros((K, GW), jnp.float32)
    for k in range(4):
        out = out.at[:, k * HP:k * HP + H].set(w[k])
    return out


def _pad_rows(w, rows):
    return jnp.zeros((rows, w.shape[1]), jnp.float32).at[:w.shape[0]].set(w)


def lstm_regressor_forward(x, params):
    """x: (B, T, input_size) float32; returns (B, 1) float32."""
    x = x.astype(jnp.float32)
    B, T, I = x.shape
    assert I == INPUT_SIZE
    nb = pl.cdiv(B, BT)          # batch-tile grid ("parallel" -> 2 TCs on v7x)
    Bp = nb * BT

    wih1, whh1, b1, wih2, whh2, b2, wfc, bfc = params

    # Fused / padded weight layouts (lane-aligned, one 128-lane block per gate).
    # Recurrent / layer-1 weights go to bf16 (single-pass MXU); everything on
    # the VPU path (input projection, biases, fc) stays f32.
    wih1_p = _pack_gate_cols(wih1)                                    # (1, GW) f32
    b1_p = _pack_gate_cols(b1)                                        # (1, GW) f32
    whh1_p = _pad_rows(_pack_gate_cols(whh1), HP).astype(jnp.bfloat16)  # (HP, GW)
    w2_p = jnp.concatenate([_pad_rows(_pack_gate_cols(wih2), HP),
                            _pad_rows(_pack_gate_cols(whh2), HP)],
                           axis=0).astype(jnp.bfloat16)               # (2*HP, GW)
    b2_p = _pack_gate_cols(b2)                                        # (1, GW) f32
    wfc_p = jnp.zeros((1, HP), jnp.float32).at[0, :HIDDEN].set(wfc[:, 0])
    bfc_p = bfc.reshape(1, 1)

    # Time-major, batch-padded input (padded rows stay zero; sliced off below).
    x_tm = jnp.zeros((T, Bp, 1), jnp.float32).at[:, :B, :].set(
        jnp.transpose(x, (1, 0, 2)))

    def const_spec(shape):
        # Whole array as one block; constant block index -> no re-DMA per tile.
        return pl.BlockSpec(shape, lambda b: (0,) * len(shape))

    out = pl.pallas_call(
        _lstm_regressor_kernel,
        out_shape=jax.ShapeDtypeStruct((Bp, 1), jnp.float32),
        grid=(nb,),
        in_specs=[
            pl.BlockSpec((T, BT, 1), lambda b: (0, b, 0)),   # x batch tile
            const_spec((1, GW)),                              # wih1
            const_spec((1, GW)),                              # b1
            const_spec((HP, GW)),                             # whh1 (bf16)
            const_spec((2 * HP, GW)),                         # w2   (bf16)
            const_spec((1, GW)),                              # b2
            const_spec((1, HP)),                              # wfc
            const_spec((1, 1)),                               # bfc
        ],
        out_specs=pl.BlockSpec((BT, 1), lambda b: (b, 0)),
        compiler_params=pltpu.CompilerParams(
            dimension_semantics=("parallel",)),
    )(x_tm, wih1_p, b1_p, whh1_p, w2_p, b2_p, wfc_p, bfc_p)
    return out[:B]


def init_params(key):
    """Deterministic synthetic params, PyTorch-style U(-1/sqrt(H), 1/sqrt(H))."""
    k = 1.0 / jnp.sqrt(jnp.float32(HIDDEN))

    def u(key, shape):
        return jax.random.uniform(key, shape, jnp.float32, minval=-k, maxval=k)

    keys = jax.random.split(key, 10)
    wih1 = u(keys[0], (4, INPUT_SIZE, HIDDEN))   # layer 0 input weights
    whh1 = u(keys[1], (4, HIDDEN, HIDDEN))
    b1 = u(keys[2], (4, 1, HIDDEN)) + u(keys[3], (4, 1, HIDDEN))  # b_ih + b_hh
    wih2 = u(keys[4], (4, HIDDEN, HIDDEN))       # layer 1 input weights
    whh2 = u(keys[5], (4, HIDDEN, HIDDEN))
    b2 = u(keys[6], (4, 1, HIDDEN)) + u(keys[7], (4, 1, HIDDEN))
    wfc = u(keys[8], (HIDDEN, 1))
    bfc = u(keys[9], (1, 1))
    return (wih1, whh1, b1, wih2, whh2, b2, wfc, bfc)


def lstm_regressor_ref(x, params):
    """Pure-JAX f32 reference matching PyTorch nn.LSTM + Linear semantics."""
    wih1, whh1, b1, wih2, whh2, b2, wfc, bfc = params
    B = x.shape[0]
    zeros = jnp.zeros((B, HIDDEN), jnp.float32)

    def cell(x_t, h, c, wih, whh, b):
        i = jax.nn.sigmoid(x_t @ wih[0] + h @ whh[0] + b[0])
        f = jax.nn.sigmoid(x_t @ wih[1] + h @ whh[1] + b[1])
        g = jnp.tanh(x_t @ wih[2] + h @ whh[2] + b[2])
        o = jax.nn.sigmoid(x_t @ wih[3] + h @ whh[3] + b[3])
        c = f * c + i * g
        h = o * jnp.tanh(c)
        return h, c

    def step(carry, x_t):
        h1, c1, h2, c2 = carry
        h1, c1 = cell(x_t, h1, c1, wih1, whh1, b1)
        h2, c2 = cell(h1, h2, c2, wih2, whh2, b2)
        return (h1, c1, h2, c2), None

    (h1, c1, h2, c2), _ = lax.scan(step, (zeros, zeros, zeros, zeros),
                                   jnp.transpose(x, (1, 0, 2)))
    return h2 @ wfc + bfc


if __name__ == "__main__":
    key = jax.random.PRNGKey(0)
    k_x, k_p = jax.random.split(key)

    B, T = 2, 8
    x = jax.random.normal(k_x, (B, T, INPUT_SIZE), jnp.float32)
    params = init_params(k_p)

    out = lstm_regressor_forward(x, params)
    out = jax.block_until_ready(out)

    ref = lstm_regressor_ref(x, params)
    assert out.shape == (B, 1), out.shape
    # bf16 MXU operands + f32 accumulation over T recurrent steps: tolerance
    # loosened vs. the pure-f32 reference accordingly.
    assert jnp.allclose(out, ref, rtol=5e-2, atol=2e-2), (out, ref)

    print("KERNEL_OK")
</pallas_src>

<mosaic_0001>
module attributes {stable_mosaic.version = 11 : i64} {
  func.func @_lstm_regressor_kernel(%arg0: i32, %arg1: memref<8x8x1xf32, #tpu.memory_space<vmem>>, %arg2: memref<1x512xf32, #tpu.memory_space<vmem>>, %arg3: memref<1x512xf32, #tpu.memory_space<vmem>>, %arg4: memref<128x512xbf16, #tpu.memory_space<vmem>>, %arg5: memref<256x512xbf16, #tpu.memory_space<vmem>>, %arg6: memref<1x512xf32, #tpu.memory_space<vmem>>, %arg7: memref<1x128xf32, #tpu.memory_space<vmem>>, %arg8: memref<1x1xf32, #tpu.memory_space<vmem>>, %arg9: memref<8x1xf32, #tpu.memory_space<vmem>>) attributes {dimension_semantics = [#tpu.dimension_semantics<parallel>], iteration_bounds = array<i64: 1>, scalar_prefetch = 0 : i64, scratch_operands = 0 : i64, tpu.core_type = #tpu.core_type<tc>, window_params = [{transform_indices = @transform_0, window_bounds = array<i64: 8, 8, 1>}, {pipeline_mode = #tpu.pipeline_mode<synchronous>, transform_indices = @transform_1, window_bounds = array<i64: 1, 512>}, {pipeline_mode = #tpu.pipeline_mode<synchronous>, transform_indices = @transform_2, window_bounds = array<i64: 1, 512>}, {pipeline_mode = #tpu.pipeline_mode<synchronous>, transform_indices = @transform_3, window_bounds = array<i64: 128, 512>}, {pipeline_mode = #tpu.pipeline_mode<synchronous>, transform_indices = @transform_4, window_bounds = array<i64: 256, 512>}, {pipeline_mode = #tpu.pipeline_mode<synchronous>, transform_indices = @transform_5, window_bounds = array<i64: 1, 512>}, {pipeline_mode = #tpu.pipeline_mode<synchronous>, transform_indices = @transform_6, window_bounds = array<i64: 1, 128>}, {pipeline_mode = #tpu.pipeline_mode<synchronous>, transform_indices = @transform_7, window_bounds = array<i64: 1, 1>}, {transform_indices = @transform_8, window_bounds = array<i64: 8, 1>}]} {
    %c0 = arith.constant 0 : index
    %c0_0 = arith.constant 0 : index
    %0 = vector.load %arg3[%c0, %c0_0] : memref<1x512xf32, #tpu.memory_space<vmem>>, vector<1x512xf32>
    %1 = vector.shape_cast %0 : vector<1x512xf32> to vector<1x512xf32>
    %2 = vector.broadcast %1 : vector<1x512xf32> to vector<8x512xf32>
    %c0_1 = arith.constant 0 : index
    %c0_2 = arith.constant 0 : index
    %3 = vector.load %arg6[%c0_1, %c0_2] : memref<1x512xf32, #tpu.memory_space<vmem>>, vector<1x512xf32>
    %4 = vector.shape_cast %3 : vector<1x512xf32> to vector<1x512xf32>
    %5 = vector.broadcast %4 : vector<1x512xf32> to vector<8x512xf32>
    %cst = arith.constant 0.000000e+00 : f32
    %6 = vector.broadcast %cst : f32 to vector<8x128xf32>
    %c0_i32 = arith.constant 0 : i32
    %7 = arith.index_cast %c0_i32 : i32 to index
    %c0_3 = arith.constant 0 : index
    %c0_4 = arith.constant 0 : index
    %8 = vector.load %arg1[%7, %c0_3, %c0_4] : memref<8x8x1xf32, #tpu.memory_space<vmem>>, vector<1x8x1xf32>
    %9 = vector.shape_cast %8 : vector<1x8x1xf32> to vector<8x1xf32>
    %c0_5 = arith.constant 0 : index
    %c0_6 = arith.constant 0 : index
    %10 = vector.load %arg2[%c0_5, %c0_6] : memref<1x512xf32, #tpu.memory_space<vmem>>, vector<1x512xf32>
    %11 = vector.broadcast %9 : vector<8x1xf32> to vector<8x512xf32>
    %12 = vector.broadcast %10 : vector<1x512xf32> to vector<8x512xf32>
    %13 = arith.mulf %11, %12 : vector<8x512xf32>
    %14 = arith.addf %13, %2 : vector<8x512xf32>
    %15 = arith.truncf %6 : vector<8x128xf32> to vector<8x128xbf16>
    %c0_7 = arith.constant 0 : index
    %c0_8 = arith.constant 0 : index
    %16 = vector.load %arg4[%c0_7, %c0_8] : memref<128x512xbf16, #tpu.memory_space<vmem>>, vector<128x512xbf16>
    %cst_9 = arith.constant dense<0.000000e+00> : vector<8x512xf32>
    %17 = tpu.matmul %15, %16, %cst_9 {dimension_numbers = #tpu.dot_dimension_numbers<[1], [0], [0], [1], [0, 0, 1, 1], [], []>} : vector<8x128xbf16>, vector<128x512xbf16>, vector<8x512xf32> -> vector<8x512xf32>
    %18 = arith.addf %14, %17 : vector<8x512xf32>
    %19 = vector.extract_strided_slice %18 {offsets = [0, 0], sizes = [8, 128], strides = [1, 1]} : vector<8x512xf32> to vector<8x128xf32>
    %20 = arith.negf %19 : vector<8x128xf32>
    %21 = math.exp %20 : vector<8x128xf32>
    %cst_10 = arith.constant 1.000000e+00 : f32
    %22 = vector.broadcast %cst_10 : f32 to vector<8x128xf32>
    %23 = arith.addf %22, %21 : vector<8x128xf32>
    %24 = arith.divf %22, %23 : vector<8x128xf32>
    %25 = vector.extract_strided_slice %18 {offsets = [0, 128], sizes = [8, 128], strides = [1, 1]} : vector<8x512xf32> to vector<8x128xf32>
    %26 = arith.negf %25 : vector<8x128xf32>
    %27 = math.exp %26 : vector<8x128xf32>
    %cst_11 = arith.constant 1.000000e+00 : f32
    %28 = vector.broadcast %cst_11 : f32 to vector<8x128xf32>
    %29 = arith.addf %28, %27 : vector<8x128xf32>
    %30 = arith.divf %28, %29 : vector<8x128xf32>
    %31 = vector.extract_strided_slice %18 {offsets = [0, 256], sizes = [8, 128], strides = [1, 1]} : vector<8x512xf32> to vector<8x128xf32>
    %32 = math.tanh %31 : vector<8x128xf32>
    %33 = vector.extract_strided_slice %18 {offsets = [0, 384], sizes = [8, 128], strides = [1, 1]} : vector<8x512xf32> to vector<8x128xf32>
    %34 = arith.negf %33 : vector<8x128xf32>
    %35 = math.exp %34 : vector<8x128xf32>
    %cst_12 = arith.constant 1.000000e+00 : f32
    %36 = vector.broadcast %cst_12 : f32 to vector<8x128xf32>
    %37 = arith.addf %36, %35 : vector<8x128xf32>
    %38 = arith.divf %36, %37 : vector<8x128xf32>
    %39 = arith.mulf %30, %6 : vector<8x128xf32>
    %40 = arith.mulf %24, %32 : vector<8x128xf32>
    %41 = arith.addf %39, %40 : vector<8x128xf32>
    %42 = math.tanh %41 : vector<8x128xf32>
    %43 = arith.mulf %38, %42 : vector<8x128xf32>
    %44 = tpu.concatenate %43, %6 in 1 : vector<8x128xf32>, vector<8x128xf32> -> vector<8x256xf32>
    %45 = arith.truncf %44 : vector<8x256xf32> to vector<8x256xbf16>
    %c0_13 = arith.constant 0 : index
    %c0_14 = arith.constant 0 : index
    %46 = vector.load %arg5[%c0_13, %c0_14] : memref<256x512xbf16, #tpu.memory_space<vmem>>, vector<256x512xbf16>
    %cst_15 = arith.constant dense<0.000000e+00> : vector<8x512xf32>
    %47 = tpu.matmul %45, %46, %cst_15 {dimension_numbers = #tpu.dot_dimension_numbers<[1], [0], [0], [1], [0, 0, 1, 1], [], []>} : vector<8x256xbf16>, vector<256x512xbf16>, vector<8x512xf32> -> vector<8x512xf32>
    %48 = arith.addf %5, %47 : vector<8x512xf32>
    %49 = vector.extract_strided_slice %48 {offsets = [0, 0], sizes = [8, 128], strides = [1, 1]} : vector<8x512xf32> to vector<8x128xf32>
    %50 = arith.negf %49 : vector<8x128xf32>
    %51 = math.exp %50 : vector<8x128xf32>
    %cst_16 = arith.constant 1.000000e+00 : f32
    %52 = vector.broadcast %cst_16 : f32 to vector<8x128xf32>
    %53 = arith.addf %52, %51 : vector<8x128xf32>
    %54 = arith.divf %52, %53 : vector<8x128xf32>
    %55 = vector.extract_strided_slice %48 {offsets = [0, 128], sizes = [8, 128], strides = [1, 1]} : vector<8x512xf32> to vector<8x128xf32>
    %56 = arith.negf %55 : vector<8x128xf32>
    %57 = math.exp %56 : vector<8x128xf32>
    %cst_17 = arith.constant 1.000000e+00 : f32
    %58 = vector.broadcast %cst_17 : f32 to vector<8x128xf32>
    %59 = arith.addf %58, %57 : vector<8x128xf32>
    %60 = arith.divf %58, %59 : vector<8x128xf32>
    %61 = vector.extract_strided_slice %48 {offsets = [0, 256], sizes = [8, 128], strides = [1, 1]} : vector<8x512xf32> to vector<8x128xf32>
    %62 = math.tanh %61 : vector<8x128xf32>
    %63 = vector.extract_strided_slice %48 {offsets = [0, 384], sizes = [8, 128], strides = [1, 1]} : vector<8x512xf32> to vector<8x128xf32>
    %64 = arith.negf %63 : vector<8x128xf32>
    %65 = math.exp %64 : vector<8x128xf32>
    %cst_18 = arith.constant 1.000000e+00 : f32
    %66 = vector.broadcast %cst_18 : f32 to vector<8x128xf32>
    %67 = arith.addf %66, %65 : vector<8x128xf32>
    %68 = arith.divf %66, %67 : vector<8x128xf32>
    %69 = arith.mulf %60, %6 : vector<8x128xf32>
    %70 = arith.mulf %54, %62 : vector<8x128xf32>
    %71 = arith.addf %69, %70 : vector<8x128xf32>
    %72 = math.tanh %71 : vector<8x128xf32>
    %73 = arith.mulf %68, %72 : vector<8x128xf32>
    %c1_i32 = arith.constant 1 : i32
    %74 = arith.index_cast %c1_i32 : i32 to index
    %c0_19 = arith.constant 0 : index
    %c0_20 = arith.constant 0 : index
    %75 = vector.load %arg1[%74, %c0_19, %c0_20] : memref<8x8x1xf32, #tpu.memory_space<vmem>>, vector<1x8x1xf32>
    %76 = vector.shape_cast %75 : vector<1x8x1xf32> to vector<8x1xf32>
    %c0_21 = arith.constant 0 : index
    %c0_22 = arith.constant 0 : index
    %77 = vector.load %arg2[%c0_21, %c0_22] : memref<1x512xf32, #tpu.memory_space<vmem>>, vector<1x512xf32>
    %78 = vector.broadcast %76 : vector<8x1xf32> to vector<8x512xf32>
    %79 = vector.broadcast %77 : vector<1x512xf32> to vector<8x512xf32>
    %80 = arith.mulf %78, %79 : vector<8x512xf32>
    %81 = arith.addf %80, %2 : vector<8x512xf32>
    %82 = arith.truncf %43 : vector<8x128xf32> to vector<8x128xbf16>
    %c0_23 = arith.constant 0 : index
    %c0_24 = arith.constant 0 : index
    %83 = vector.load %arg4[%c0_23, %c0_24] : memref<128x512xbf16, #tpu.memory_space<vmem>>, vector<128x512xbf16>
    %cst_25 = arith.constant dense<0.000000e+00> : vector<8x512xf32>
    %84 = tpu.matmul %82, %83, %cst_25 {dimension_numbers = #tpu.dot_dimension_numbers<[1], [0], [0], [1], [0, 0, 1, 1], [], []>} : vector<8x128xbf16>, vector<128x512xbf16>, vector<8x512xf32> -> vector<8x512xf32>
    %85 = arith.addf %81, %84 : vector<8x512xf32>
    %86 = vector.extract_strided_slice %85 {offsets = [0, 0], sizes = [8, 128], strides = [1, 1]} : vector<8x512xf32> to vector<8x128xf32>
    %87 = arith.negf %86 : vector<8x128xf32>
    %88 = math.exp %87 : vector<8x128xf32>
    %cst_26 = arith.constant 1.000000e+00 : f32
    %89 = vector.broadcast %cst_26 : f32 to vector<8x128xf32>
    %90 = arith.addf %89, %88 : vector<8x128xf32>
    %91 = arith.divf %89, %90 : vector<8x128xf32>
    %92 = vector.extract_strided_slice %85 {offsets = [0, 128], sizes = [8, 128], strides = [1, 1]} : vector<8x512xf32> to vector<8x128xf32>
    %93 = arith.negf %92 : vector<8x128xf32>
    %94 = math.exp %93 : vector<8x128xf32>
    %cst_27 = arith.constant 1.000000e+00 : f32
    %95 = vector.broadcast %cst_27 : f32 to vector<8x128xf32>
    %96 = arith.addf %95, %94 : vector<8x128xf32>
    %97 = arith.divf %95, %96 : vector<8x128xf32>
    %98 = vector.extract_strided_slice %85 {offsets = [0, 256], sizes = [8, 128], strides = [1, 1]} : vector<8x512xf32> to vector<8x128xf32>
    %99 = math.tanh %98 : vector<8x128xf32>
    %100 = vector.extract_strided_slice %85 {offsets = [0, 384], sizes = [8, 128], strides = [1, 1]} : vector<8x512xf32> to vector<8x128xf32>
    %101 = arith.negf %100 : vector<8x128xf32>
    %102 = math.exp %101 : vector<8x128xf32>
    %cst_28 = arith.constant 1.000000e+00 : f32
    %103 = vector.broadcast %cst_28 : f32 to vector<8x128xf32>
    %104 = arith.addf %103, %102 : vector<8x128xf32>
    %105 = arith.divf %103, %104 : vector<8x128xf32>
    %106 = arith.mulf %97, %41 : vector<8x128xf32>
    %107 = arith.mulf %91, %99 : vector<8x128xf32>
    %108 = arith.addf %106, %107 : vector<8x128xf32>
    %109 = math.tanh %108 : vector<8x128xf32>
    %110 = arith.mulf %105, %109 : vector<8x128xf32>
    %111 = tpu.concatenate %110, %73 in 1 : vector<8x128xf32>, vector<8x128xf32> -> vector<8x256xf32>
    %112 = arith.truncf %111 : vector<8x256xf32> to vector<8x256xbf16>
    %c0_29 = arith.constant 0 : index
    %c0_30 = arith.constant 0 : index
    %113 = vector.load %arg5[%c0_29, %c0_30] : memref<256x512xbf16, #tpu.memory_space<vmem>>, vector<256x512xbf16>
    %cst_31 = arith.constant dense<0.000000e+00> : vector<8x512xf32>
    %114 = tpu.matmul %112, %113, %cst_31 {dimension_numbers = #tpu.dot_dimension_numbers<[1], [0], [0], [1], [0, 0, 1, 1], [], []>} : vector<8x256xbf16>, vector<256x512xbf16>, vector<8x512xf32> -> vector<8x512xf32>
    %115 = arith.addf %5, %114 : vector<8x512xf32>
    %116 = vector.extract_strided_slice %115 {offsets = [0, 0], sizes = [8, 128], strides = [1, 1]} : vector<8x512xf32> to vector<8x128xf32>
    %117 = arith.negf %116 : vector<8x128xf32>
    %118 = math.exp %117 : vector<8x128xf32>
    %cst_32 = arith.constant 1.000000e+00 : f32
    %119 = vector.broadcast %cst_32 : f32 to vector<8x128xf32>
    %120 = arith.addf %119, %118 : vector<8x128xf32>
    %121 = arith.divf %119, %120 : vector<8x128xf32>
    %122 = vector.extract_strided_slice %115 {offsets = [0, 128], sizes = [8, 128], strides = [1, 1]} : vector<8x512xf32> to vector<8x128xf32>
    %123 = arith.negf %122 : vector<8x128xf32>
    %124 = math.exp %123 : vector<8x128xf32>
    %cst_33 = arith.constant 1.000000e+00 : f32
    %125 = vector.broadcast %cst_33 : f32 to vector<8x128xf32>
    %126 = arith.addf %125, %124 : vector<8x128xf32>
    %127 = arith.divf %125, %126 : vector<8x128xf32>
    %128 = vector.extract_strided_slice %115 {offsets = [0, 256], sizes = [8, 128], strides = [1, 1]} : vector<8x512xf32> to vector<8x128xf32>
    %129 = math.tanh %128 : vector<8x128xf32>
    %130 = vector.extract_strided_slice %115 {offsets = [0, 384], sizes = [8, 128], strides = [1, 1]} : vector<8x512xf32> to vector<8x128xf32>
    %131 = arith.negf %130 : vector<8x128xf32>
    %132 = math.exp %131 : vector<8x128xf32>
    %cst_34 = arith.constant 1.000000e+00 : f32
    %133 = vector.broadcast %cst_34 : f32 to vector<8x128xf32>
    %134 = arith.addf %133, %132 : vector<8x128xf32>
    %135 = arith.divf %133, %134 : vector<8x128xf32>
    %136 = arith.mulf %127, %71 : vector<8x128xf32>
    %137 = arith.mulf %121, %129 : vector<8x128xf32>
    %138 = arith.addf %136, %137 : vector<8x128xf32>
    %139 = math.tanh %138 : vector<8x128xf32>
    %140 = arith.mulf %135, %139 : vector<8x128xf32>
    %c2_i32 = arith.constant 2 : i32
    %141 = arith.index_cast %c2_i32 : i32 to index
    %c0_35 = arith.constant 0 : index
    %c0_36 = arith.constant 0 : index
    %142 = vector.load %arg1[%141, %c0_35, %c0_36] : memref<8x8x1xf32, #tpu.memory_space<vmem>>, vector<1x8x1xf32>
    %143 = vector.shape_cast %142 : vector<1x8x1xf32> to vector<8x1xf32>
    %c0_37 = arith.constant 0 : index
    %c0_38 = arith.constant 0 : index
    %144 = vector.load %arg2[%c0_37, %c0_38] : memref<1x512xf32, #tpu.memory_space<vmem>>, vector<1x512xf32>
    %145 = vector.broadcast %143 : vector<8x1xf32> to vector<8x512xf32>
    %146 = vector.broadcast %144 : vector<1x512xf32> to vector<8x512xf32>
    %147 = arith.mulf %145, %146 : vector<8x512xf32>
    %148 = arith.addf %147, %2 : vector<8x512xf32>
    %149 = arith.truncf %110 : vector<8x128xf32> to vector<8x128xbf16>
    %c0_39 = arith.constant 0 : index
    %c0_40 = arith.constant 0 : index
    %150 = vector.load %arg4[%c0_39, %c0_40] : memref<128x512xbf16, #tpu.memory_space<vmem>>, vector<128x512xbf16>
    %cst_41 = arith.constant dense<0.000000e+00> : vector<8x512xf32>
    %151 = tpu.matmul %149, %150, %cst_41 {dimension_numbers = #tpu.dot_dimension_numbers<[1], [0], [0], [1], [0, 0, 1, 1], [], []>} : vector<8x128xbf16>, vector<128x512xbf16>, vector<8x512xf32> -> vector<8x512xf32>
    %152 = arith.addf %148, %151 : vector<8x512xf32>
    %153 = vector.extract_strided_slice %152 {offsets = [0, 0], sizes = [8, 128], strides = [1, 1]} : vector<8x512xf32> to vector<8x128xf32>
    %154 = arith.negf %153 : vector<8x128xf32>
    %155 = math.exp %154 : vector<8x128xf32>
    %cst_42 = arith.constant 1.000000e+00 : f32
    %156 = vector.broadcast %cst_42 : f32 to vector<8x128xf32>
    %157 = arith.addf %156, %155 : vector<8x128xf32>
    %158 = arith.divf %156, %157 : vector<8x128xf32>
    %159 = vector.extract_strided_slice %152 {offsets = [0, 128], sizes = [8, 128], strides = [1, 1]} : vector<8x512xf32> to vector<8x128xf32>
    %160 = arith.negf %159 : vector<8x128xf32>
    %161 = math.exp %160 : vector<8x128xf32>
    %cst_43 = arith.constant 1.000000e+00 : f32
    %162 = vector.broadcast %cst_43 : f32 to vector<8x128xf32>
    %163 = arith.addf %162, %161 : vector<8x128xf32>
    %164 = arith.divf %162, %163 : vector<8x128xf32>
    %165 = vector.extract_strided_slice %152 {offsets = [0, 256], sizes = [8, 128], strides = [1, 1]} : vector<8x512xf32> to vector<8x128xf32>
    %166 = math.tanh %165 : vector<8x128xf32>
    %167 = vector.extract_strided_slice %152 {offsets = [0, 384], sizes = [8, 128], strides = [1, 1]} : vector<8x512xf32> to vector<8x128xf32>
    %168 = arith.negf %167 : vector<8x128xf32>
    %169 = math.exp %168 : vector<8x128xf32>
    %cst_44 = arith.constant 1.000000e+00 : f32
    %170 = vector.broadcast %cst_44 : f32 to vector<8x128xf32>
    %171 = arith.addf %170, %169 : vector<8x128xf32>
    %172 = arith.divf %170, %171 : vector<8x128xf32>
    %173 = arith.mulf %164, %108 : vector<8x128xf32>
    %174 = arith.mulf %158, %166 : vector<8x128xf32>
    %175 = arith.addf %173, %174 : vector<8x128xf32>
    %176 = math.tanh %175 : vector<8x128xf32>
    %177 = arith.mulf %172, %176 : vector<8x128xf32>
    %178 = tpu.concatenate %177, %140 in 1 : vector<8x128xf32>, vector<8x128xf32> -> vector<8x256xf32>
    %179 = arith.truncf %178 : vector<8x256xf32> to vector<8x256xbf16>
    %c0_45 = arith.constant 0 : index
    %c0_46 = arith.constant 0 : index
    %180 = vector.load %arg5[%c0_45, %c0_46] : memref<256x512xbf16, #tpu.memory_space<vmem>>, vector<256x512xbf16>
    %cst_47 = arith.constant dense<0.000000e+00> : vector<8x512xf32>
    %181 = tpu.matmul %179, %180, %cst_47 {dimension_numbers = #tpu.dot_dimension_numbers<[1], [0], [0], [1], [0, 0, 1, 1], [], []>} : vector<8x256xbf16>, vector<256x512xbf16>, vector<8x512xf32> -> vector<8x512xf32>
    %182 = arith.addf %5, %181 : vector<8x512xf32>
    %183 = vector.extract_strided_slice %182 {offsets = [0, 0], sizes = [8, 128], strides = [1, 1]} : vector<8x512xf32> to vector<8x128xf32>
    %184 = arith.negf %183 : vector<8x128xf32>
    %185 = math.exp %184 : vector<8x128xf32>
    %cst_48 = arith.constant 1.000000e+00 : f32
    %186 = vector.broadcast %cst_48 : f32 to vector<8x128xf32>
    %187 = arith.addf %186, %185 : vector<8x128xf32>
    %188 = arith.divf %186, %187 : vector<8x128xf32>
    %189 = vector.extract_strided_slice %182 {offsets = [0, 128], sizes = [8, 128], strides = [1, 1]} : vector<8x512xf32> to vector<8x128xf32>
    %190 = arith.negf %189 : vector<8x128xf32>
    %191 = math.exp %190 : vector<8x128xf32>
    %cst_49 = arith.constant 1.000000e+00 : f32
    %192 = vector.broadcast %cst_49 : f32 to vector<8x128xf32>
    %193 = arith.addf %192, %191 : vector<8x128xf32>
    %194 = arith.divf %192, %193 : vector<8x128xf32>
    %195 = vector.extract_strided_slice %182 {offsets = [0, 256], sizes = [8, 128], strides = [1, 1]} : vector<8x512xf32> to vector<8x128xf32>
    %196 = math.tanh %195 : vector<8x128xf32>
    %197 = vector.extract_strided_slice %182 {offsets = [0, 384], sizes = [8, 128], strides = [1, 1]} : vector<8x512xf32> to vector<8x128xf32>
    %198 = arith.negf %197 : vector<8x128xf32>
    %199 = math.exp %198 : vector<8x128xf32>
    %cst_50 = arith.constant 1.000000e+00 : f32
    %200 = vector.broadcast %cst_50 : f32 to vector<8x128xf32>
    %201 = arith.addf %200, %199 : vector<8x128xf32>
    %202 = arith.divf %200, %201 : vector<8x128xf32>
    %203 = arith.mulf %194, %138 : vector<8x128xf32>
    %204 = arith.mulf %188, %196 : vector<8x128xf32>
    %205 = arith.addf %203, %204 : vector<8x128xf32>
    %206 = math.tanh %205 : vector<8x128xf32>
    %207 = arith.mulf %202, %206 : vector<8x128xf32>
    %c3_i32 = arith.constant 3 : i32
    %208 = arith.index_cast %c3_i32 : i32 to index
    %c0_51 = arith.constant 0 : index
    %c0_52 = arith.constant 0 : index
    %209 = vector.load %arg1[%208, %c0_51, %c0_52] : memref<8x8x1xf32, #tpu.memory_space<vmem>>, vector<1x8x1xf32>
    %210 = vector.shape_cast %209 : vector<1x8x1xf32> to vector<8x1xf32>
    %c0_53 = arith.constant 0 : index
    %c0_54 = arith.constant 0 : index
    %211 = vector.load %arg2[%c0_53, %c0_54] : memref<1x512xf32, #tpu.memory_space<vmem>>, vector<1x512xf32>
    %212 = vector.broadcast %210 : vector<8x1xf32> to vector<8x512xf32>
    %213 = vector.broadcast %211 : vector<1x512xf32> to vector<8x512xf32>
    %214 = arith.mulf %212, %213 : vector<8x512xf32>
    %215 = arith.addf %214, %2 : vector<8x512xf32>
    %216 = arith.truncf %177 : vector<8x128xf32> to vector<8x128xbf16>
    %c0_55 = arith.constant 0 : index
    %c0_56 = arith.constant 0 : index
    %217 = vector.load %arg4[%c0_55, %c0_56] : memref<128x512xbf16, #tpu.memory_space<vmem>>, vector<128x512xbf16>
    %cst_57 = arith.constant dense<0.000000e+00> : vector<8x512xf32>
    %218 = tpu.matmul %216, %217, %cst_57 {dimension_numbers = #tpu.dot_dimension_numbers<[1], [0], [0], [1], [0, 0, 1, 1], [], []>} : vector<8x128xbf16>, vector<128x512xbf16>, vector<8x512xf32> -> vector<8x512xf32>
    %219 = arith.addf %215, %218 : vector<8x512xf32>
    %220 = vector.extract_strided_slice %219 {offsets = [0, 0], sizes = [8, 128], strides = [1, 1]} : vector<8x512xf32> to vector<8x128xf32>
    %221 = arith.negf %220 : vector<8x128xf32>
    %222 = math.exp %221 : vector<8x128xf32>
    %cst_58 = arith.constant 1.000000e+00 : f32
    %223 = vector.broadcast %cst_58 : f32 to vector<8x128xf32>
    %224 = arith.addf %223, %222 : vector<8x128xf32>
    %225 = arith.divf %223, %224 : vector<8x128xf32>
    %226 = vector.extract_strided_slice %219 {offsets = [0, 128], sizes = [8, 128], strides = [1, 1]} : vector<8x512xf32> to vector<8x128xf32>
    %227 = arith.negf %226 : vector<8x128xf32>
    %228 = math.exp %227 : vector<8x128xf32>
    %cst_59 = arith.constant 1.000000e+00 : f32
    %229 = vector.broadcast %cst_59 : f32 to vector<8x128xf32>
    %230 = arith.addf %229, %228 : vector<8x128xf32>
    %231 = arith.divf %229, %230 : vector<8x128xf32>
    %232 = vector.extract_strided_slice %219 {offsets = [0, 256], sizes = [8, 128], strides = [1, 1]} : vector<8x512xf32> to vector<8x128xf32>
    %233 = math.tanh %232 : vector<8x128xf32>
    %234 = vector.extract_strided_slice %219 {offsets = [0, 384], sizes = [8, 128], strides = [1, 1]} : vector<8x512xf32> to vector<8x128xf32>
    %235 = arith.negf %234 : vector<8x128xf32>
    %236 = math.exp %235 : vector<8x128xf32>
    %cst_60 = arith.constant 1.000000e+00 : f32
    %237 = vector.broadcast %cst_60 : f32 to vector<8x128xf32>
    %238 = arith.addf %237, %236 : vector<8x128xf32>
    %239 = arith.divf %237, %238 : vector<8x128xf32>
    %240 = arith.mulf %231, %175 : vector<8x128xf32>
    %241 = arith.mulf %225, %233 : vector<8x128xf32>
    %242 = arith.addf %240, %241 : vector<8x128xf32>
    %243 = math.tanh %242 : vector<8x128xf32>
    %244 = arith.mulf %239, %243 : vector<8x128xf32>
    %245 = tpu.concatenate %244, %207 in 1 : vector<8x128xf32>, vector<8x128xf32> -> vector<8x256xf32>
    %246 = arith.truncf %245 : vector<8x256xf32> to vector<8x256xbf16>
    %c0_61 = arith.constant 0 : index
    %c0_62 = arith.constant 0 : index
    %247 = vector.load %arg5[%c0_61, %c0_62] : memref<256x512xbf16, #tpu.memory_space<vmem>>, vector<256x512xbf16>
    %cst_63 = arith.constant dense<0.000000e+00> : vector<8x512xf32>
    %248 = tpu.matmul %246, %247, %cst_63 {dimension_numbers = #tpu.dot_dimension_numbers<[1], [0], [0], [1], [0, 0, 1, 1], [], []>} : vector<8x256xbf16>, vector<256x512xbf16>, vector<8x512xf32> -> vector<8x512xf32>
    %249 = arith.addf %5, %248 : vector<8x512xf32>
    %250 = vector.extract_strided_slice %249 {offsets = [0, 0], sizes = [8, 128], strides = [1, 1]} : vector<8x512xf32> to vector<8x128xf32>
    %251 = arith.negf %250 : vector<8x128xf32>
    %252 = math.exp %251 : vector<8x128xf32>
    %cst_64 = arith.constant 1.000000e+00 : f32
    %253 = vector.broadcast %cst_64 : f32 to vector<8x128xf32>
    %254 = arith.addf %253, %252 : vector<8x128xf32>
    %255 = arith.divf %253, %254 : vector<8x128xf32>
    %256 = vector.extract_strided_slice %249 {offsets = [0, 128], sizes = [8, 128], strides = [1, 1]} : vector<8x512xf32> to vector<8x128xf32>
    %257 = arith.negf %256 : vector<8x128xf32>
    %258 = math.exp %257 : vector<8x128xf32>
    %cst_65 = arith.constant 1.000000e+00 : f32
    %259 = vector.broadcast %cst_65 : f32 to vector<8x128xf32>
    %260 = arith.addf %259, %258 : vector<8x128xf32>
    %261 = arith.divf %259, %260 : vector<8x128xf32>
    %262 = vector.extract_strided_slice %249 {offsets = [0, 256], sizes = [8, 128], strides = [1, 1]} : vector<8x512xf32> to vector<8x128xf32>
    %263 = math.tanh %262 : vector<8x128xf32>
    %264 = vector.extract_strided_slice %249 {offsets = [0, 384], sizes = [8, 128], strides = [1, 1]} : vector<8x512xf32> to vector<8x128xf32>
    %265 = arith.negf %264 : vector<8x128xf32>
    %266 = math.exp %265 : vector<8x128xf32>
    %cst_66 = arith.constant 1.000000e+00 : f32
    %267 = vector.broadcast %cst_66 : f32 to vector<8x128xf32>
    %268 = arith.addf %267, %266 : vector<8x128xf32>
    %269 = arith.divf %267, %268 : vector<8x128xf32>
    %270 = arith.mulf %261, %205 : vector<8x128xf32>
    %271 = arith.mulf %255, %263 : vector<8x128xf32>
    %272 = arith.addf %270, %271 : vector<8x128xf32>
    %273 = math.tanh %272 : vector<8x128xf32>
    %274 = arith.mulf %269, %273 : vector<8x128xf32>
    %c4_i32 = arith.constant 4 : i32
    %275 = arith.index_cast %c4_i32 : i32 to index
    %c0_67 = arith.constant 0 : index
    %c0_68 = arith.constant 0 : index
    %276 = vector.load %arg1[%275, %c0_67, %c0_68] : memref<8x8x1xf32, #tpu.memory_space<vmem>>, vector<1x8x1xf32>
    %277 = vector.shape_cast %276 : vector<1x8x1xf32> to vector<8x1xf32>
    %c0_69 = arith.constant 0 : index
    %c0_70 = arith.constant 0 : index
    %278 = vector.load %arg2[%c0_69, %c0_70] : memref<1x512xf32, #tpu.memory_space<vmem>>, vector<1x512xf32>
    %279 = vector.broadcast %277 : vector<8x1xf32> to vector<8x512xf32>
    %280 = vector.broadcast %278 : vector<1x512xf32> to vector<8x512xf32>
    %281 = arith.mulf %279, %280 : vector<8x512xf32>
    %282 = arith.addf %281, %2 : vector<8x512xf32>
    %283 = arith.truncf %244 : vector<8x128xf32> to vector<8x128xbf16>
    %c0_71 = arith.constant 0 : index
    %c0_72 = arith.constant 0 : index
    %284 = vector.load %arg4[%c0_71, %c0_72] : memref<128x512xbf16, #tpu.memory_space<vmem>>, vector<128x512xbf16>
    %cst_73 = arith.constant dense<0.000000e+00> : vector<8x512xf32>
    %285 = tpu.matmul %283, %284, %cst_73 {dimension_numbers = #tpu.dot_dimension_numbers<[1], [0], [0], [1], [0, 0, 1, 1], [], []>} : vector<8x128xbf16>, vector<128x512xbf16>, vector<8x512xf32> -> vector<8x512xf32>
    %286 = arith.addf %282, %285 : vector<8x512xf32>
    %287 = vector.extract_strided_slice %286 {offsets = [0, 0], sizes = [8, 128], strides = [1, 1]} : vector<8x512xf32> to vector<8x128xf32>
    %288 = arith.negf %287 : vector<8x128xf32>
    %289 = math.exp %288 : vector<8x128xf32>
    %cst_74 = arith.constant 1.000000e+00 : f32
    %290 = vector.broadcast %cst_74 : f32 to vector<8x128xf32>
    %291 = arith.addf %290, %289 : vector<8x128xf32>
    %292 = arith.divf %290, %291 : vector<8x128xf32>
    %293 = vector.extract_strided_slice %286 {offsets = [0, 128], sizes = [8, 128], strides = [1, 1]} : vector<8x512xf32> to vector<8x128xf32>
    %294 = arith.negf %293 : vector<8x128xf32>
    %295 = math.exp %294 : vector<8x128xf32>
    %cst_75 = arith.constant 1.000000e+00 : f32
    %296 = vector.broadcast %cst_75 : f32 to vector<8x128xf32>
    %297 = arith.addf %296, %295 : vector<8x128xf32>
    %298 = arith.divf %296, %297 : vector<8x128xf32>
    %299 = vector.extract_strided_slice %286 {offsets = [0, 256], sizes = [8, 128], strides = [1, 1]} : vector<8x512xf32> to vector<8x128xf32>
    %300 = math.tanh %299 : vector<8x128xf32>
    %301 = vector.extract_strided_slice %286 {offsets = [0, 384], sizes = [8, 128], strides = [1, 1]} : vector<8x512xf32> to vector<8x128xf32>
    %302 = arith.negf %301 : vector<8x128xf32>
    %303 = math.exp %302 : vector<8x128xf32>
    %cst_76 = arith.constant 1.000000e+00 : f32
    %304 = vector.broadcast %cst_76 : f32 to vector<8x128xf32>
    %305 = arith.addf %304, %303 : vector<8x128xf32>
    %306 = arith.divf %304, %305 : vector<8x128xf32>
    %307 = arith.mulf %298, %242 : vector<8x128xf32>
    %308 = arith.mulf %292, %300 : vector<8x128xf32>
    %309 = arith.addf %307, %308 : vector<8x128xf32>
    %310 = math.tanh %309 : vector<8x128xf32>
    %311 = arith.mulf %306, %310 : vector<8x128xf32>
    %312 = tpu.concatenate %311, %274 in 1 : vector<8x128xf32>, vector<8x128xf32> -> vector<8x256xf32>
    %313 = arith.truncf %312 : vector<8x256xf32> to vector<8x256xbf16>
    %c0_77 = arith.constant 0 : index
    %c0_78 = arith.constant 0 : index
    %314 = vector.load %arg5[%c0_77, %c0_78] : memref<256x512xbf16, #tpu.memory_space<vmem>>, vector<256x512xbf16>
    %cst_79 = arith.constant dense<0.000000e+00> : vector<8x512xf32>
    %315 = tpu.matmul %313, %314, %cst_79 {dimension_numbers = #tpu.dot_dimension_numbers<[1], [0], [0], [1], [0, 0, 1, 1], [], []>} : vector<8x256xbf16>, vector<256x512xbf16>, vector<8x512xf32> -> vector<8x512xf32>
    %316 = arith.addf %5, %315 : vector<8x512xf32>
    %317 = vector.extract_strided_slice %316 {offsets = [0, 0], sizes = [8, 128], strides = [1, 1]} : vector<8x512xf32> to vector<8x128xf32>
    %318 = arith.negf %317 : vector<8x128xf32>
    %319 = math.exp %318 : vector<8x128xf32>
    %cst_80 = arith.constant 1.000000e+00 : f32
    %320 = vector.broadcast %cst_80 : f32 to vector<8x128xf32>
    %321 = arith.addf %320, %319 : vector<8x128xf32>
    %322 = arith.divf %320, %321 : vector<8x128xf32>
    %323 = vector.extract_strided_slice %316 {offsets = [0, 128], sizes = [8, 128], strides = [1, 1]} : vector<8x512xf32> to vector<8x128xf32>
    %324 = arith.negf %323 : vector<8x128xf32>
    %325 = math.exp %324 : vector<8x128xf32>
    %cst_81 = arith.constant 1.000000e+00 : f32
    %326 = vector.broadcast %cst_81 : f32 to vector<8x128xf32>
    %327 = arith.addf %326, %325 : vector<8x128xf32>
    %328 = arith.divf %326, %327 : vector<8x128xf32>
    %329 = vector.extract_strided_slice %316 {offsets = [0, 256], sizes = [8, 128], strides = [1, 1]} : vector<8x512xf32> to vector<8x128xf32>
    %330 = math.tanh %329 : vector<8x128xf32>
    %331 = vector.extract_strided_slice %316 {offsets = [0, 384], sizes = [8, 128], strides = [1, 1]} : vector<8x512xf32> to vector<8x128xf32>
    %332 = arith.negf %331 : vector<8x128xf32>
    %333 = math.exp %332 : vector<8x128xf32>
    %cst_82 = arith.constant 1.000000e+00 : f32
    %334 = vector.broadcast %cst_82 : f32 to vector<8x128xf32>
    %335 = arith.addf %334, %333 : vector<8x128xf32>
    %336 = arith.divf %334, %335 : vector<8x128xf32>
    %337 = arith.mulf %328, %272 : vector<8x128xf32>
    %338 = arith.mulf %322, %330 : vector<8x128xf32>
    %339 = arith.addf %337, %338 : vector<8x128xf32>
    %340 = math.tanh %339 : vector<8x128xf32>
    %341 = arith.mulf %336, %340 : vector<8x128xf32>
    %c5_i32 = arith.constant 5 : i32
    %342 = arith.index_cast %c5_i32 : i32 to index
    %c0_83 = arith.constant 0 : index
    %c0_84 = arith.constant 0 : index
    %343 = vector.load %arg1[%342, %c0_83, %c0_84] : memref<8x8x1xf32, #tpu.memory_space<vmem>>, vector<1x8x1xf32>
    %344 = vector.shape_cast %343 : vector<1x8x1xf32> to vector<8x1xf32>
    %c0_85 = arith.constant 0 : index
    %c0_86 = arith.constant 0 : index
    %345 = vector.load %arg2[%c0_85, %c0_86] : memref<1x512xf32, #tpu.memory_space<vmem>>, vector<1x512xf32>
    %346 = vector.broadcast %344 : vector<8x1xf32> to vector<8x512xf32>
    %347 = vector.broadcast %345 : vector<1x512xf32> to vector<8x512xf32>
    %348 = arith.mulf %346, %347 : vector<8x512xf32>
    %349 = arith.addf %348, %2 : vector<8x512xf32>
    %350 = arith.truncf %311 : vector<8x128xf32> to vector<8x128xbf16>
    %c0_87 = arith.constant 0 : index
    %c0_88 = arith.constant 0 : index
    %351 = vector.load %arg4[%c0_87, %c0_88] : memref<128x512xbf16, #tpu.memory_space<vmem>>, vector<128x512xbf16>
    %cst_89 = arith.constant dense<0.000000e+00> : vector<8x512xf32>
    %352 = tpu.matmul %350, %351, %cst_89 {dimension_numbers = #tpu.dot_dimension_numbers<[1], [0], [0], [1], [0, 0, 1, 1], [], []>} : vector<8x128xbf16>, vector<128x512xbf16>, vector<8x512xf32> -> vector<8x512xf32>
    %353 = arith.addf %349, %352 : vector<8x512xf32>
    %354 = vector.extract_strided_slice %353 {offsets = [0, 0], sizes = [8, 128], strides = [1, 1]} : vector<8x512xf32> to vector<8x128xf32>
    %355 = arith.negf %354 : vector<8x128xf32>
    %356 = math.exp %355 : vector<8x128xf32>
    %cst_90 = arith.constant 1.000000e+00 : f32
    %357 = vector.broadcast %cst_90 : f32 to vector<8x128xf32>
    %358 = arith.addf %357, %356 : vector<8x128xf32>
    %359 = arith.divf %357, %358 : vector<8x128xf32>
    %360 = vector.extract_strided_slice %353 {offsets = [0, 128], sizes = [8, 128], strides = [1, 1]} : vector<8x512xf32> to vector<8x128xf32>
    %361 = arith.negf %360 : vector<8x128xf32>
    %362 = math.exp %361 : vector<8x128xf32>
    %cst_91 = arith.constant 1.000000e+00 : f32
    %363 = vector.broadcast %cst_91 : f32 to vector<8x128xf32>
    %364 = arith.addf %363, %362 : vector<8x128xf32>
    %365 = arith.divf %363, %364 : vector<8x128xf32>
    %366 = vector.extract_strided_slice %353 {offsets = [0, 256], sizes = [8, 128], strides = [1, 1]} : vector<8x512xf32> to vector<8x128xf32>
    %367 = math.tanh %366 : vector<8x128xf32>
    %368 = vector.extract_strided_slice %353 {offsets = [0, 384], sizes = [8, 128], strides = [1, 1]} : vector<8x512xf32> to vector<8x128xf32>
    %369 = arith.negf %368 : vector<8x128xf32>
    %370 = math.exp %369 : vector<8x128xf32>
    %cst_92 = arith.constant 1.000000e+00 : f32
    %371 = vector.broadcast %cst_92 : f32 to vector<8x128xf32>
    %372 = arith.addf %371, %370 : vector<8x128xf32>
    %373 = arith.divf %371, %372 : vector<8x128xf32>
    %374 = arith.mulf %365, %309 : vector<8x128xf32>
    %375 = arith.mulf %359, %367 : vector<8x128xf32>
    %376 = arith.addf %374, %375 : vector<8x128xf32>
    %377 = math.tanh %376 : vector<8x128xf32>
    %378 = arith.mulf %373, %377 : vector<8x128xf32>
    %379 = tpu.concatenate %378, %341 in 1 : vector<8x128xf32>, vector<8x128xf32> -> vector<8x256xf32>
    %380 = arith.truncf %379 : vector<8x256xf32> to vector<8x256xbf16>
    %c0_93 = arith.constant 0 : index
    %c0_94 = arith.constant 0 : index
    %381 = vector.load %arg5[%c0_93, %c0_94] : memref<256x512xbf16, #tpu.memory_space<vmem>>, vector<256x512xbf16>
    %cst_95 = arith.constant dense<0.000000e+00> : vector<8x512xf32>
    %382 = tpu.matmul %380, %381, %cst_95 {dimension_numbers = #tpu.dot_dimension_numbers<[1], [0], [0], [1], [0, 0, 1, 1], [], []>} : vector<8x256xbf16>, vector<256x512xbf16>, vector<8x512xf32> -> vector<8x512xf32>
    %383 = arith.addf %5, %382 : vector<8x512xf32>
    %384 = vector.extract_strided_slice %383 {offsets = [0, 0], sizes = [8, 128], strides = [1, 1]} : vector<8x512xf32> to vector<8x128xf32>
    %385 = arith.negf %384 : vector<8x128xf32>
    %386 = math.exp %385 : vector<8x128xf32>
    %cst_96 = arith.constant 1.000000e+00 : f32
    %387 = vector.broadcast %cst_96 : f32 to vector<8x128xf32>
    %388 = arith.addf %387, %386 : vector<8x128xf32>
    %389 = arith.divf %387, %388 : vector<8x128xf32>
    %390 = vector.extract_strided_slice %383 {offsets = [0, 128], sizes = [8, 128], strides = [1, 1]} : vector<8x512xf32> to vector<8x128xf32>
    %391 = arith.negf %390 : vector<8x128xf32>
    %392 = math.exp %391 : vector<8x128xf32>
    %cst_97 = arith.constant 1.000000e+00 : f32
    %393 = vector.broadcast %cst_97 : f32 to vector<8x128xf32>
    %394 = arith.addf %393, %392 : vector<8x128xf32>
    %395 = arith.divf %393, %394 : vector<8x128xf32>
    %396 = vector.extract_strided_slice %383 {offsets = [0, 256], sizes = [8, 128], strides = [1, 1]} : vector<8x512xf32> to vector<8x128xf32>
    %397 = math.tanh %396 : vector<8x128xf32>
    %398 = vector.extract_strided_slice %383 {offsets = [0, 384], sizes = [8, 128], strides = [1, 1]} : vector<8x512xf32> to vector<8x128xf32>
    %399 = arith.negf %398 : vector<8x128xf32>
    %400 = math.exp %399 : vector<8x128xf32>
    %cst_98 = arith.constant 1.000000e+00 : f32
    %401 = vector.broadcast %cst_98 : f32 to vector<8x128xf32>
    %402 = arith.addf %401, %400 : vector<8x128xf32>
    %403 = arith.divf %401, %402 : vector<8x128xf32>
    %404 = arith.mulf %395, %339 : vector<8x128xf32>
    %405 = arith.mulf %389, %397 : vector<8x128xf32>
    %406 = arith.addf %404, %405 : vector<8x128xf32>
    %407 = math.tanh %406 : vector<8x128xf32>
    %408 = arith.mulf %403, %407 : vector<8x128xf32>
    %c6_i32 = arith.constant 6 : i32
    %409 = arith.index_cast %c6_i32 : i32 to index
    %c0_99 = arith.constant 0 : index
    %c0_100 = arith.constant 0 : index
    %410 = vector.load %arg1[%409, %c0_99, %c0_100] : memref<8x8x1xf32, #tpu.memory_space<vmem>>, vector<1x8x1xf32>
    %411 = vector.shape_cast %410 : vector<1x8x1xf32> to vector<8x1xf32>
    %c0_101 = arith.constant 0 : index
    %c0_102 = arith.constant 0 : index
    %412 = vector.load %arg2[%c0_101, %c0_102] : memref<1x512xf32, #tpu.memory_space<vmem>>, vector<1x512xf32>
    %413 = vector.broadcast %411 : vector<8x1xf32> to vector<8x512xf32>
    %414 = vector.broadcast %412 : vector<1x512xf32> to vector<8x512xf32>
    %415 = arith.mulf %413, %414 : vector<8x512xf32>
    %416 = arith.addf %415, %2 : vector<8x512xf32>
    %417 = arith.truncf %378 : vector<8x128xf32> to vector<8x128xbf16>
    %c0_103 = arith.constant 0 : index
    %c0_104 = arith.constant 0 : index
    %418 = vector.load %arg4[%c0_103, %c0_104] : memref<128x512xbf16, #tpu.memory_space<vmem>>, vector<128x512xbf16>
    %cst_105 = arith.constant dense<0.000000e+00> : vector<8x512xf32>
    %419 = tpu.matmul %417, %418, %cst_105 {dimension_numbers = #tpu.dot_dimension_numbers<[1], [0], [0], [1], [0, 0, 1, 1], [], []>} : vector<8x128xbf16>, vector<128x512xbf16>, vector<8x512xf32> -> vector<8x512xf32>
    %420 = arith.addf %416, %419 : vector<8x512xf32>
    %421 = vector.extract_strided_slice %420 {offsets = [0, 0], sizes = [8, 128], strides = [1, 1]} : vector<8x512xf32> to vector<8x128xf32>
    %422 = arith.negf %421 : vector<8x128xf32>
    %423 = math.exp %422 : vector<8x128xf32>
    %cst_106 = arith.constant 1.000000e+00 : f32
    %424 = vector.broadcast %cst_106 : f32 to vector<8x128xf32>
    %425 = arith.addf %424, %423 : vector<8x128xf32>
    %426 = arith.divf %424, %425 : vector<8x128xf32>
    %427 = vector.extract_strided_slice %420 {offsets = [0, 128], sizes = [8, 128], strides = [1, 1]} : vector<8x512xf32> to vector<8x128xf32>
    %428 = arith.negf %427 : vector<8x128xf32>
    %429 = math.exp %428 : vector<8x128xf32>
    %cst_107 = arith.constant 1.000000e+00 : f32
    %430 = vector.broadcast %cst_107 : f32 to vector<8x128xf32>
    %431 = arith.addf %430, %429 : vector<8x128xf32>
    %432 = arith.divf %430, %431 : vector<8x128xf32>
    %433 = vector.extract_strided_slice %420 {offsets = [0, 256], sizes = [8, 128], strides = [1, 1]} : vector<8x512xf32> to vector<8x128xf32>
    %434 = math.tanh %433 : vector<8x128xf32>
    %435 = vector.extract_strided_slice %420 {offsets = [0, 384], sizes = [8, 128], strides = [1, 1]} : vector<8x512xf32> to vector<8x128xf32>
    %436 = arith.negf %435 : vector<8x128xf32>
    %437 = math.exp %436 : vector<8x128xf32>
    %cst_108 = arith.constant 1.000000e+00 : f32
    %438 = vector.broadcast %cst_108 : f32 to vector<8x128xf32>
    %439 = arith.addf %438, %437 : vector<8x128xf32>
    %440 = arith.divf %438, %439 : vector<8x128xf32>
    %441 = arith.mulf %432, %376 : vector<8x128xf32>
    %442 = arith.mulf %426, %434 : vector<8x128xf32>
    %443 = arith.addf %441, %442 : vector<8x128xf32>
    %444 = math.tanh %443 : vector<8x128xf32>
    %445 = arith.mulf %440, %444 : vector<8x128xf32>
    %446 = tpu.concatenate %445, %408 in 1 : vector<8x128xf32>, vector<8x128xf32> -> vector<8x256xf32>
    %447 = arith.truncf %446 : vector<8x256xf32> to vector<8x256xbf16>
    %c0_109 = arith.constant 0 : index
    %c0_110 = arith.constant 0 : index
    %448 = vector.load %arg5[%c0_109, %c0_110] : memref<256x512xbf16, #tpu.memory_space<vmem>>, vector<256x512xbf16>
    %cst_111 = arith.constant dense<0.000000e+00> : vector<8x512xf32>
    %449 = tpu.matmul %447, %448, %cst_111 {dimension_numbers = #tpu.dot_dimension_numbers<[1], [0], [0], [1], [0, 0, 1, 1], [], []>} : vector<8x256xbf16>, vector<256x512xbf16>, vector<8x512xf32> -> vector<8x512xf32>
    %450 = arith.addf %5, %449 : vector<8x512xf32>
    %451 = vector.extract_strided_slice %450 {offsets = [0, 0], sizes = [8, 128], strides = [1, 1]} : vector<8x512xf32> to vector<8x128xf32>
    %452 = arith.negf %451 : vector<8x128xf32>
    %453 = math.exp %452 : vector<8x128xf32>
    %cst_112 = arith.constant 1.000000e+00 : f32
    %454 = vector.broadcast %cst_112 : f32 to vector<8x128xf32>
    %455 = arith.addf %454, %453 : vector<8x128xf32>
    %456 = arith.divf %454, %455 : vector<8x128xf32>
    %457 = vector.extract_strided_slice %450 {offsets = [0, 128], sizes = [8, 128], strides = [1, 1]} : vector<8x512xf32> to vector<8x128xf32>
    %458 = arith.negf %457 : vector<8x128xf32>
    %459 = math.exp %458 : vector<8x128xf32>
    %cst_113 = arith.constant 1.000000e+00 : f32
    %460 = vector.broadcast %cst_113 : f32 to vector<8x128xf32>
    %461 = arith.addf %460, %459 : vector<8x128xf32>
    %462 = arith.divf %460, %461 : vector<8x128xf32>
    %463 = vector.extract_strided_slice %450 {offsets = [0, 256], sizes = [8, 128], strides = [1, 1]} : vector<8x512xf32> to vector<8x128xf32>
    %464 = math.tanh %463 : vector<8x128xf32>
    %465 = vector.extract_strided_slice %450 {offsets = [0, 384], sizes = [8, 128], strides = [1, 1]} : vector<8x512xf32> to vector<8x128xf32>
    %466 = arith.negf %465 : vector<8x128xf32>
    %467 = math.exp %466 : vector<8x128xf32>
    %cst_114 = arith.constant 1.000000e+00 : f32
    %468 = vector.broadcast %cst_114 : f32 to vector<8x128xf32>
    %469 = arith.addf %468, %467 : vector<8x128xf32>
    %470 = arith.divf %468, %469 : vector<8x128xf32>
    %471 = arith.mulf %462, %406 : vector<8x128xf32>
    %472 = arith.mulf %456, %464 : vector<8x128xf32>
    %473 = arith.addf %471, %472 : vector<8x128xf32>
    %474 = math.tanh %473 : vector<8x128xf32>
    %475 = arith.mulf %470, %474 : vector<8x128xf32>
    %c7_i32 = arith.constant 7 : i32
    %476 = arith.index_cast %c7_i32 : i32 to index
    %c0_115 = arith.constant 0 : index
    %c0_116 = arith.constant 0 : index
    %477 = vector.load %arg1[%476, %c0_115, %c0_116] : memref<8x8x1xf32, #tpu.memory_space<vmem>>, vector<1x8x1xf32>
    %478 = vector.shape_cast %477 : vector<1x8x1xf32> to vector<8x1xf32>
    %c0_117 = arith.constant 0 : index
    %c0_118 = arith.constant 0 : index
    %479 = vector.load %arg2[%c0_117, %c0_118] : memref<1x512xf32, #tpu.memory_space<vmem>>, vector<1x512xf32>
    %480 = vector.broadcast %478 : vector<8x1xf32> to vector<8x512xf32>
    %481 = vector.broadcast %479 : vector<1x512xf32> to vector<8x512xf32>
    %482 = arith.mulf %480, %481 : vector<8x512xf32>
    %483 = arith.addf %482, %2 : vector<8x512xf32>
    %484 = arith.truncf %445 : vector<8x128xf32> to vector<8x128xbf16>
    %c0_119 = arith.constant 0 : index
    %c0_120 = arith.constant 0 : index
    %485 = vector.load %arg4[%c0_119, %c0_120] : memref<128x512xbf16, #tpu.memory_space<vmem>>, vector<128x512xbf16>
    %cst_121 = arith.constant dense<0.000000e+00> : vector<8x512xf32>
    %486 = tpu.matmul %484, %485, %cst_121 {dimension_numbers = #tpu.dot_dimension_numbers<[1], [0], [0], [1], [0, 0, 1, 1], [], []>} : vector<8x128xbf16>, vector<128x512xbf16>, vector<8x512xf32> -> vector<8x512xf32>
    %487 = arith.addf %483, %486 : vector<8x512xf32>
    %488 = vector.extract_strided_slice %487 {offsets = [0, 0], sizes = [8, 128], strides = [1, 1]} : vector<8x512xf32> to vector<8x128xf32>
    %489 = arith.negf %488 : vector<8x128xf32>
    %490 = math.exp %489 : vector<8x128xf32>
    %cst_122 = arith.constant 1.000000e+00 : f32
    %491 = vector.broadcast %cst_122 : f32 to vector<8x128xf32>
    %492 = arith.addf %491, %490 : vector<8x128xf32>
    %493 = arith.divf %491, %492 : vector<8x128xf32>
    %494 = vector.extract_strided_slice %487 {offsets = [0, 128], sizes = [8, 128], strides = [1, 1]} : vector<8x512xf32> to vector<8x128xf32>
    %495 = arith.negf %494 : vector<8x128xf32>
    %496 = math.exp %495 : vector<8x128xf32>
    %cst_123 = arith.constant 1.000000e+00 : f32
    %497 = vector.broadcast %cst_123 : f32 to vector<8x128xf32>
    %498 = arith.addf %497, %496 : vector<8x128xf32>
    %499 = arith.divf %497, %498 : vector<8x128xf32>
    %500 = vector.extract_strided_slice %487 {offsets = [0, 256], sizes = [8, 128], strides = [1, 1]} : vector<8x512xf32> to vector<8x128xf32>
    %501 = math.tanh %500 : vector<8x128xf32>
    %502 = vector.extract_strided_slice %487 {offsets = [0, 384], sizes = [8, 128], strides = [1, 1]} : vector<8x512xf32> to vector<8x128xf32>
    %503 = arith.negf %502 : vector<8x128xf32>
    %504 = math.exp %503 : vector<8x128xf32>
    %cst_124 = arith.constant 1.000000e+00 : f32
    %505 = vector.broadcast %cst_124 : f32 to vector<8x128xf32>
    %506 = arith.addf %505, %504 : vector<8x128xf32>
    %507 = arith.divf %505, %506 : vector<8x128xf32>
    %508 = arith.mulf %499, %443 : vector<8x128xf32>
    %509 = arith.mulf %493, %501 : vector<8x128xf32>
    %510 = arith.addf %508, %509 : vector<8x128xf32>
    %511 = math.tanh %510 : vector<8x128xf32>
    %512 = arith.mulf %507, %511 : vector<8x128xf32>
    %513 = tpu.concatenate %512, %475 in 1 : vector<8x128xf32>, vector<8x128xf32> -> vector<8x256xf32>
    %514 = arith.truncf %513 : vector<8x256xf32> to vector<8x256xbf16>
    %c0_125 = arith.constant 0 : index
    %c0_126 = arith.constant 0 : index
    %515 = vector.load %arg5[%c0_125, %c0_126] : memref<256x512xbf16, #tpu.memory_space<vmem>>, vector<256x512xbf16>
    %cst_127 = arith.constant dense<0.000000e+00> : vector<8x512xf32>
    %516 = tpu.matmul %514, %515, %cst_127 {dimension_numbers = #tpu.dot_dimension_numbers<[1], [0], [0], [1], [0, 0, 1, 1], [], []>} : vector<8x256xbf16>, vector<256x512xbf16>, vector<8x512xf32> -> vector<8x512xf32>
    %517 = arith.addf %5, %516 : vector<8x512xf32>
    %518 = vector.extract_strided_slice %517 {offsets = [0, 0], sizes = [8, 128], strides = [1, 1]} : vector<8x512xf32> to vector<8x128xf32>
    %519 = arith.negf %518 : vector<8x128xf32>
    %520 = math.exp %519 : vector<8x128xf32>
    %cst_128 = arith.constant 1.000000e+00 : f32
    %521 = vector.broadcast %cst_128 : f32 to vector<8x128xf32>
    %522 = arith.addf %521, %520 : vector<8x128xf32>
    %523 = arith.divf %521, %522 : vector<8x128xf32>
    %524 = vector.extract_strided_slice %517 {offsets = [0, 128], sizes = [8, 128], strides = [1, 1]} : vector<8x512xf32> to vector<8x128xf32>
    %525 = arith.negf %524 : vector<8x128xf32>
    %526 = math.exp %525 : vector<8x128xf32>
    %cst_129 = arith.constant 1.000000e+00 : f32
    %527 = vector.broadcast %cst_129 : f32 to vector<8x128xf32>
    %528 = arith.addf %527, %526 : vector<8x128xf32>
    %529 = arith.divf %527, %528 : vector<8x128xf32>
    %530 = vector.extract_strided_slice %517 {offsets = [0, 256], sizes = [8, 128], strides = [1, 1]} : vector<8x512xf32> to vector<8x128xf32>
    %531 = math.tanh %530 : vector<8x128xf32>
    %532 = vector.extract_strided_slice %517 {offsets = [0, 384], sizes = [8, 128], strides = [1, 1]} : vector<8x512xf32> to vector<8x128xf32>
    %533 = arith.negf %532 : vector<8x128xf32>
    %534 = math.exp %533 : vector<8x128xf32>
    %cst_130 = arith.constant 1.000000e+00 : f32
    %535 = vector.broadcast %cst_130 : f32 to vector<8x128xf32>
    %536 = arith.addf %535, %534 : vector<8x128xf32>
    %537 = arith.divf %535, %536 : vector<8x128xf32>
    %538 = arith.mulf %529, %473 : vector<8x128xf32>
    %539 = arith.mulf %523, %531 : vector<8x128xf32>
    %540 = arith.addf %538, %539 : vector<8x128xf32>
    %541 = math.tanh %540 : vector<8x128xf32>
    %542 = arith.mulf %537, %541 : vector<8x128xf32>
    %c8_i32 = arith.constant 8 : i32
    %c0_131 = arith.constant 0 : index
    %c0_132 = arith.constant 0 : index
    %543 = vector.load %arg7[%c0_131, %c0_132] : memref<1x128xf32, #tpu.memory_space<vmem>>, vector<1x128xf32>
    %544 = vector.broadcast %543 : vector<1x128xf32> to vector<8x128xf32>
    %545 = arith.mulf %542, %544 : vector<8x128xf32>
    %cst_133 = arith.constant dense<0.000000e+00> : vector<8xf32>
    %546 = vector.multi_reduction <add>, %545, %cst_133 [1] : vector<8x128xf32> to vector<8xf32>
    %547 = vector.shape_cast %546 : vector<8xf32> to vector<8x1xf32>
    %c0_134 = arith.constant 0 : index
    %c0_135 = arith.constant 0 : index
    %548 = vector.load %arg8[%c0_134, %c0_135] : memref<1x1xf32, #tpu.memory_space<vmem>>, vector<1x1xf32>
    %549 = vector.broadcast %548 : vector<1x1xf32> to vector<8x1xf32>
    %550 = arith.addf %547, %549 : vector<8x1xf32>
    %c0_136 = arith.constant 0 : index
    %c0_137 = arith.constant 0 : index
    %551 = vector.load %arg9[%c0_136, %c0_137] : memref<8x1xf32, #tpu.memory_space<vmem>>, vector<8x1xf32>
    tpu.vector_store %arg9[%c0_136, %c0_137], %550 {strides = array<i32>} : memref<8x1xf32, #tpu.memory_space<vmem>>, vector<8x1xf32>,
    return
  }
  func.func @transform_0(%arg0: i32) -> (i32, i32, i32) {
    %c0_i32 = arith.constant 0 : i32
    %c0_i32_0 = arith.constant 0 : i32
    %c0_i32_1 = arith.constant 0 : i32
    return %c0_i32, %arg0, %c0_i32_0 : i32, i32, i32
  }
  func.func @transform_1(%arg0: i32) -> (i32, i32) {
    %c0_i32 = arith.constant 0 : i32
    %c0_i32_0 = arith.constant 0 : i32
    %c0_i32_1 = arith.constant 0 : i32
    return %c0_i32, %c0_i32_0 : i32, i32
  }
  func.func @transform_2(%arg0: i32) -> (i32, i32) {
    %c0_i32 = arith.constant 0 : i32
    %c0_i32_0 = arith.constant 0 : i32
    %c0_i32_1 = arith.constant 0 : i32
    return %c0_i32, %c0_i32_0 : i32, i32
  }
  func.func @transform_3(%arg0: i32) -> (i32, i32) {
    %c0_i32 = arith.constant 0 : i32
    %c0_i32_0 = arith.constant 0 : i32
    %c0_i32_1 = arith.constant 0 : i32
    return %c0_i32, %c0_i32_0 : i32, i32
  }
  func.func @transform_4(%arg0: i32) -> (i32, i32) {
    %c0_i32 = arith.constant 0 : i32
    %c0_i32_0 = arith.constant 0 : i32
    %c0_i32_1 = arith.constant 0 : i32
    return %c0_i32, %c0_i32_0 : i32, i32
  }
  func.func @transform_5(%arg0: i32) -> (i32, i32) {
    %c0_i32 = arith.constant 0 : i32
    %c0_i32_0 = arith.constant 0 : i32
    %c0_i32_1 = arith.constant 0 : i32
    return %c0_i32, %c0_i32_0 : i32, i32
  }
  func.func @transform_6(%arg0: i32) -> (i32, i32) {
    %c0_i32 = arith.constant 0 : i32
    %c0_i32_0 = arith.constant 0 : i32
    %c0_i32_1 = arith.constant 0 : i32
    return %c0_i32, %c0_i32_0 : i32, i32
  }
  func.func @transform_7(%arg0: i32) -> (i32, i32) {
    %c0_i32 = arith.constant 0 : i32
    %c0_i32_0 = arith.constant 0 : i32
    %c0_i32_1 = arith.constant 0 : i32
    return %c0_i32, %c0_i32_0 : i32, i32
  }
  func.func @transform_8(%arg0: i32) -> (i32, i32) {
    %c0_i32 = arith.constant 0 : i32
    %c0_i32_0 = arith.constant 0 : i32
    return %arg0, %c0_i32 : i32, i32
  }
}

</mosaic_0001>

<llo_original>
// kernel: tpu_custom_call.1
$region0: #{tpu_custom_call.1}
  #allocation0 [shape = 'u32[]', space=smem, size = 0x4, offset = 0x4, fixed_abs, tag = 'smem constant byte address 0x4 - core index']
  #allocation1 [shape = 'u32[144,128]{1,0:T(1,128)}', space=vmem, size = 0x12000, scoped, tag = 'internal scratch']
  #allocation2 [shape = 'f32[1,1]{1,0:T(1,128)S(1)}', space=vmem, size = 0x200, scoped, tag = 'scoped memory for tpu_custom_call.1']
  %s0 = inlined_call_operand.vmem [shape: f32[8,8,1], index: 0, kind: input, shape index: {}]
  %s1 = inlined_call_operand.vmem [shape: f32[1,512], index: 1, kind: input, shape index: {}]
  %s2 = inlined_call_operand.vmem [shape: f32[1,512], index: 2, kind: input, shape index: {}]
  %s3 = inlined_call_operand.hbm [shape: bf16[128,512], index: 3, kind: input, shape index: {}]
  %s4 = inlined_call_operand.hbm [shape: bf16[256,512], index: 4, kind: input, shape index: {}]
  %s5 = inlined_call_operand.vmem [shape: f32[1,512], index: 5, kind: input, shape index: {}]
  %s6 = inlined_call_operand.vmem [shape: f32[1,128], index: 6, kind: input, shape index: {}]
  %s7 = inlined_call_operand.<no memory space> [shape: f32[1,1], index: 7, kind: input, shape index: {}]
  %s8 = inlined_call_operand.vmem [shape: f32[8,1], index: 8, kind: output, shape index: {}]
  %s9 = sld [smem:[#allocation0]]
  $region50: #{tpu_custom_call.1} parent=0
    _
  %s11 = ssub.s32 1, %s9
  %s12 = scalar_select 0, %s11, %s9
  %v13 = vstv %s7
  %14 = vst [vmem:[#allocation2] sm:$0x1] %v13
  $region1: #{tpu_custom_call.1} parent=0
    #allocation3 [shape = 'u8[131072]{0}', space=vmem, size = 0x20000, scoped, tag = 'input window, operand 3, single buffered']
    #allocation4 [shape = 's32[1]{0}', space=sflag, size = 0x4, scoped, tag = 'scoped memory for tpu_custom_call.1']
    #allocation5 [shape = 'u8[262144]{0}', space=vmem, size = 0x40000, scoped, tag = 'input window, operand 4, single buffered']
    #allocation6 [shape = 's32[1]{0}', space=sflag, size = 0x4, scoped, tag = 'scoped memory for tpu_custom_call.1']
    %15 = vsyncpa [#allocation4], 0
    %16 = vsyncpa [#allocation6], 0
    // Predicated region
    $region2: #{tpu_custom_call.1} parent=1 // pred_check
      _
    $region3: #{tpu_custom_call.1} parent=1 // pred_check_branch
      %18 = sbr.rel (0) target = $region5
    $region4: #{tpu_custom_call.1} parent=1 // pred_region
      _
    $region5: #{tpu_custom_call.1} parent=1 // pred_fallthru
      _
    // Predicated region
    $region6: #{tpu_custom_call.1} parent=1 // pred_check
      _
    $region7: #{tpu_custom_call.1} parent=1 // pred_check_branch
      %20 = sbr.rel (0) target = $region9
    $region8: #{tpu_custom_call.1} parent=1 // pred_region
      _
    $region9: #{tpu_custom_call.1} parent=1 // pred_fallthru
      _
    // Predicated region
    $region10: #{tpu_custom_call.1} parent=1 // pred_check
      _
    $region11: #{tpu_custom_call.1} parent=1 // pred_check_branch
      %22 = sbr.rel (0) target = $region13
    $region12: #{tpu_custom_call.1} parent=1 // pred_region
      _
    $region13: #{tpu_custom_call.1} parent=1 // pred_fallthru
      _
    // Predicated region
    $region14: #{tpu_custom_call.1} parent=1 // pred_check
      _
    $region15: #{tpu_custom_call.1} parent=1 // pred_check_branch
      %24 = sbr.rel (0) target = $region17
    $region16: #{tpu_custom_call.1} parent=1 // pred_region
      %s26 = ssub.s32 4096, 4096
      %27 = vsyncadd [#allocation4], %s26
      %s28 = sshll.u32 [#allocation3], 4
      %s29 = int_to_ptr.vmem [resolvable:$true] %s28
      %34 = dma.hbm_to_vmem [thread:$0]  %s3, 4096, %s29, [#allocation4], 256, 256, 16
    $region17: #{tpu_custom_call.1} parent=1 // pred_fallthru
      _
    // Predicated region
    $region18: #{tpu_custom_call.1} parent=1 // pred_check
      _
    $region19: #{tpu_custom_call.1} parent=1 // pred_check_branch
      %36 = sbr.rel (0) target = $region21
    $region20: #{tpu_custom_call.1} parent=1 // pred_region
      %s38 = ssub.s32 8192, 8192
      %39 = vsyncadd [#allocation6], %s38
      %s40 = sshll.u32 [#allocation5], 4
      %s41 = int_to_ptr.vmem [resolvable:$true] %s40
      %46 = dma.hbm_to_vmem [thread:$0]  %s4, 8192, %s41, [#allocation6], 256, 256, 16
    $region21: #{tpu_custom_call.1} parent=1 // pred_fallthru
      _
    // Predicated region
    $region22: #{tpu_custom_call.1} parent=1 // pred_check
      _
    $region23: #{tpu_custom_call.1} parent=1 // pred_check_branch
      %48 = sbr.rel (0) target = $region25
    $region24: #{tpu_custom_call.1} parent=1 // pred_region
      _
    $region25: #{tpu_custom_call.1} parent=1 // pred_fallthru
      _
    // Predicated region
    $region26: #{tpu_custom_call.1} parent=1 // pred_check
      _
    $region27: #{tpu_custom_call.1} parent=1 // pred_check_branch
      %50 = sbr.rel (0) target = $region29
    $region28: #{tpu_custom_call.1} parent=1 // pred_region
      _
    $region29: #{tpu_custom_call.1} parent=1 // pred_fallthru
      _
    // Predicated region
    $region30: #{tpu_custom_call.1} parent=1 // pred_check
      _
    $region31: #{tpu_custom_call.1} parent=1 // pred_check_branch
      %52 = sbr.rel (0) target = $region33
    $region32: #{tpu_custom_call.1} parent=1 // pred_region
      _
    $region33: #{tpu_custom_call.1} parent=1 // pred_fallthru
      _
    // Predicated region
    $region34: #{tpu_custom_call.1} parent=1 // pred_check
      _
    $region35: #{tpu_custom_call.1} parent=1 // pred_check_branch
      %54 = sbr.rel (0) target = $region37
    $region36: #{tpu_custom_call.1} parent=1 // pred_region
      %55 = dma.done [#allocation4], 4096
    $region37: #{tpu_custom_call.1} parent=1 // pred_fallthru
      _
    // Predicated region
    $region38: #{tpu_custom_call.1} parent=1 // pred_check
      _
    $region39: #{tpu_custom_call.1} parent=1 // pred_check_branch
      %57 = sbr.rel (0) target = $region41
    $region40: #{tpu_custom_call.1} parent=1 // pred_region
      %58 = dma.done [#allocation6], 8192
    $region41: #{tpu_custom_call.1} parent=1 // pred_fallthru
      _
    %v60 = vld [vmem:[%s2] sm:$0xf]
    %v62 = vlaneseq
    %v63 = vshrl.u32 %v62, 7
    %v64 = vsub.s32 0, %v63
    %v65 = vrot.slane %v60, %v64
    %v66 = vlaneseq
    %v67 = vshrl.u32 %v66, 7
    %v68 = vsub.s32 1, %v67
    %v69 = vrot.slane %v60, %v68
    %v70 = vlaneseq
    %v71 = vshrl.u32 %v70, 7
    %v72 = vsub.s32 2, %v71
    %v73 = vrot.slane %v60, %v72
    %v74 = vlaneseq
    %v75 = vshrl.u32 %v74, 7
    %v76 = vsub.s32 3, %v75
    %v77 = vrot.slane %v60, %v76
    %v82 = vld [vmem:[%s5] sm:$0xf]
    %v84 = vlaneseq
    %v85 = vshrl.u32 %v84, 7
    %v86 = vsub.s32 0, %v85
    %v87 = vrot.slane %v82, %v86
    %v88 = vlaneseq
    %v89 = vshrl.u32 %v88, 7
    %v90 = vsub.s32 1, %v89
    %v91 = vrot.slane %v82, %v90
    %v92 = vlaneseq
    %v93 = vshrl.u32 %v92, 7
    %v94 = vsub.s32 2, %v93
    %v95 = vrot.slane %v82, %v94
    %v96 = vlaneseq
    %v97 = vshrl.u32 %v96, 7
    %v98 = vsub.s32 3, %v97
    %v99 = vrot.slane %v82, %v98
    %v104 = vld [vmem:[%s0] sm:$0xff]
    %v105 = vld [vmem:[%s1] sm:$0xf]
    %107 = vset.pattern.permute.xlu0 0
    %108 = vperm.xlu0 %107, %v104
    %v109 = vpop.permute.xlu0 %108
    %v112 = vlaneseq
    %v113 = vshrl.u32 %v112, 7
    %v114 = vsub.s32 0, %v113
    %v115 = vrot.slane %v105, %v114
    %v116 = vlaneseq
    %v117 = vshrl.u32 %v116, 7
    %v118 = vsub.s32 1, %v117
    %v119 = vrot.slane %v105, %v118
    %v120 = vlaneseq
    %v121 = vshrl.u32 %v120, 7
    %v122 = vsub.s32 2, %v121
    %v123 = vrot.slane %v105, %v122
    %v124 = vlaneseq
    %v125 = vshrl.u32 %v124, 7
    %v126 = vsub.s32 3, %v125
    %v127 = vrot.slane %v105, %v126
    %v132 = vmul.f32 %v109, %v115
    %v133 = vmul.f32 %v109, %v119
    %v134 = vmul.f32 %v109, %v123
    %v135 = vmul.f32 %v109, %v127
    %v136 = vadd.f32 %v132, %v65
    %v137 = vadd.f32 %v133, %v69
    %v138 = vadd.f32 %v134, %v73
    %v139 = vadd.f32 %v135, %v77
    %v140 = vld [vmem:[#allocation3] sm:$0xff]
    %v141 = vld [vmem:[#allocation3 + $0x8] sm:$0xff]
    %v142 = vld [vmem:[#allocation3 + $0x10] sm:$0xff]
    %v143 = vld [vmem:[#allocation3 + $0x18] sm:$0xff]
    %v144 = vld [vmem:[#allocation3 + $0x20] sm:$0xff]
    %v145 = vld [vmem:[#allocation3 + $0x28] sm:$0xff]
    %v146 = vld [vmem:[#allocation3 + $0x30] sm:$0xff]
    %v147 = vld [vmem:[#allocation3 + $0x38] sm:$0xff]
    %v148 = vld [vmem:[#allocation3 + $0x40] sm:$0xff]
    %v149 = vld [vmem:[#allocation3 + $0x48] sm:$0xff]
    %v150 = vld [vmem:[#allocation3 + $0x50] sm:$0xff]
    %v151 = vld [vmem:[#allocation3 + $0x58] sm:$0xff]
    %v152 = vld [vmem:[#allocation3 + $0x60] sm:$0xff]
    %v153 = vld [vmem:[#allocation3 + $0x68] sm:$0xff]
    %v154 = vld [vmem:[#allocation3 + $0x70] sm:$0xff]
    %v155 = vld [vmem:[#allocation3 + $0x78] sm:$0xff]
    %v156 = vld [vmem:[#allocation3 + $0x80] sm:$0xff]
    %v157 = vld [vmem:[#allocation3 + $0x88] sm:$0xff]
    %v158 = vld [vmem:[#allocation3 + $0x90] sm:$0xff]
    %v159 = vld [vmem:[#allocation3 + $0x98] sm:$0xff]
    %v160 = vld [vmem:[#allocation3 + $0xa0] sm:$0xff]
    %v161 = vld [vmem:[#allocation3 + $0xa8] sm:$0xff]
    %v162 = vld [vmem:[#allocation3 + $0xb0] sm:$0xff]
    %v163 = vld [vmem:[#allocation3 + $0xb8] sm:$0xff]
    %v164 = vld [vmem:[#allocation3 + $0xc0] sm:$0xff]
    %v165 = vld [vmem:[#allocation3 + $0xc8] sm:$0xff]
    %v166 = vld [vmem:[#allocation3 + $0xd0] sm:$0xff]
    %v167 = vld [vmem:[#allocation3 + $0xd8] sm:$0xff]
    %v168 = vld [vmem:[#allocation3 + $0xe0] sm:$0xff]
    %v169 = vld [vmem:[#allocation3 + $0xe8] sm:$0xff]
    %v170 = vld [vmem:[#allocation3 + $0xf0] sm:$0xff]
    %v171 = vld [vmem:[#allocation3 + $0xf8] sm:$0xff]
    %v204 = vunpack.c.l.b16 %v140
    %v205 = vunpack.c.h.b16 %v140
    %v206 = vunpack.c.l.b16 %v141
    %v207 = vunpack.c.h.b16 %v141
    %v208 = vunpack.c.l.b16 %v142
    %v209 = vunpack.c.h.b16 %v142
    %v210 = vunpack.c.l.b16 %v143
    %v211 = vunpack.c.h.b16 %v143
    %v212 = vunpack.c.l.b16 %v144
    %v213 = vunpack.c.h.b16 %v144
    %v214 = vunpack.c.l.b16 %v145
    %v215 = vunpack.c.h.b16 %v145
    %v216 = vunpack.c.l.b16 %v146
    %v217 = vunpack.c.h.b16 %v146
    %v218 = vunpack.c.l.b16 %v147
    %v219 = vunpack.c.h.b16 %v147
    %v220 = vunpack.c.l.b16 %v148
    %v221 = vunpack.c.h.b16 %v148
    %v222 = vunpack.c.l.b16 %v149
    %v223 = vunpack.c.h.b16 %v149
    %v224 = vunpack.c.l.b16 %v150
    %v225 = vunpack.c.h.b16 %v150
    %v226 = vunpack.c.l.b16 %v151
    %v227 = vunpack.c.h.b16 %v151
    %v228 = vunpack.c.l.b16 %v152
    %v229 = vunpack.c.h.b16 %v152
    %v230 = vunpack.c.l.b16 %v153
    %v231 = vunpack.c.h.b16 %v153
    %v232 = vunpack.c.l.b16 %v154
    %v233 = vunpack.c.h.b16 %v154
    %v234 = vunpack.c.l.b16 %v155
    %v235 = vunpack.c.h.b16 %v155
    %v236 = vunpack.c.l.b16 %v156
    %v237 = vunpack.c.h.b16 %v156
    %v238 = vunpack.c.l.b16 %v157
    %v239 = vunpack.c.h.b16 %v157
    %v240 = vunpack.c.l.b16 %v158
    %v241 = vunpack.c.h.b16 %v158
    %v242 = vunpack.c.l.b16 %v159
    %v243 = vunpack.c.h.b16 %v159
    %v244 = vunpack.c.l.b16 %v160
    %v245 = vunpack.c.h.b16 %v160
    %v246 = vunpack.c.l.b16 %v161
    %v247 = vunpack.c.h.b16 %v161
    %v248 = vunpack.c.l.b16 %v162
    %v249 = vunpack.c.h.b16 %v162
    %v250 = vunpack.c.l.b16 %v163
    %v251 = vunpack.c.h.b16 %v163
    %v252 = vunpack.c.l.b16 %v164
    %v253 = vunpack.c.h.b16 %v164
    %v254 = vunpack.c.l.b16 %v165
    %v255 = vunpack.c.h.b16 %v165
    %v256 = vunpack.c.l.b16 %v166
    %v257 = vunpack.c.h.b16 %v166
    %v258 = vunpack.c.l.b16 %v167
    %v259 = vunpack.c.h.b16 %v167
    %v260 = vunpack.c.l.b16 %v168
    %v261 = vunpack.c.h.b16 %v168
    %v262 = vunpack.c.l.b16 %v169
    %v263 = vunpack.c.h.b16 %v169
    %v264 = vunpack.c.l.b16 %v170
    %v265 = vunpack.c.h.b16 %v170
    %v266 = vunpack.c.l.b16 %v171
    %v267 = vunpack.c.h.b16 %v171
    %v268 = vpack.c.b16 %v208, %v204
    %v269 = vpack.c.b16 %v209, %v205
    %v270 = vpack.c.b16 %v210, %v206
    %v271 = vpack.c.b16 %v211, %v207
    %v272 = vpack.c.b16 %v216, %v212
    %v273 = vpack.c.b16 %v217, %v213
    %v274 = vpack.c.b16 %v218, %v214
    %v275 = vpack.c.b16 %v219, %v215
    %v276 = vpack.c.b16 %v224, %v220
    %v277 = vpack.c.b16 %v225, %v221
    %v278 = vpack.c.b16 %v226, %v222
    %v279 = vpack.c.b16 %v227, %v223
    %v280 = vpack.c.b16 %v232, %v228
    %v281 = vpack.c.b16 %v233, %v229
    %v282 = vpack.c.b16 %v234, %v230
    %v283 = vpack.c.b16 %v235, %v231
    %v284 = vpack.c.b16 %v240, %v236
    %v285 = vpack.c.b16 %v241, %v237
    %v286 = vpack.c.b16 %v242, %v238
    %v287 = vpack.c.b16 %v243, %v239
    %v288 = vpack.c.b16 %v248, %v244
    %v289 = vpack.c.b16 %v249, %v245
    %v290 = vpack.c.b16 %v250, %v246
    %v291 = vpack.c.b16 %v251, %v247
    %v292 = vpack.c.b16 %v256, %v252
    %v293 = vpack.c.b16 %v257, %v253
    %v294 = vpack.c.b16 %v258, %v254
    %v295 = vpack.c.b16 %v259, %v255
    %v296 = vpack.c.b16 %v264, %v260
    %v297 = vpack.c.b16 %v265, %v261
    %v298 = vpack.c.b16 %v266, %v262
    %v299 = vpack.c.b16 %v267, %v263
    %332 = vmatprep.subr.bf16.mxu0 %v269
    %333 = vmatpush1.bf16.msra.mxu0 %v268
    %334 = vmatprep.subr.bf16.mxu0 %v273
    %335 = vmatpush1.bf16.msra.mxu0 %v272
    %336 = vmatprep.subr.bf16.mxu0 %v277
    %337 = vmatpush1.bf16.msra.mxu0 %v276
    %338 = vmatprep.subr.bf16.mxu0 %v281
    %339 = vmatpush1.bf16.msra.mxu0 %v280
    %340 = vmatprep.subr.bf16.mxu0 %v285
    %341 = vmatpush1.bf16.msra.mxu0 %v284
    %342 = vmatprep.subr.bf16.mxu0 %v289
    %343 = vmatpush1.bf16.msra.mxu0 %v288
    %344 = vmatprep.subr.bf16.mxu0 %v293
    %345 = vmatpush1.bf16.msra.mxu0 %v292
    %346 = vmatprep.subr.bf16.mxu0 %v297
    %347 = vmatpush1.bf16.msra.mxu0 %v296
    %348 = vmatprep.subr.bf16.mxu0 0
    %349 = vmatpush1.bf16.msra.mxu0 0
    %350 = vmatprep.subr.bf16.mxu0 0
    %351 = vmatpush1.bf16.msra.mxu0 0
    %352 = vmatprep.subr.bf16.mxu0 0
    %353 = vmatpush1.bf16.msra.mxu0 0
    %354 = vmatprep.subr.bf16.mxu0 0
    %355 = vmatpush1.bf16.msra.mxu0 0
    %356 = vmatprep.subr.bf16.mxu0 0
    %357 = vmatpush1.bf16.msra.mxu0 0
    %358 = vmatprep.subr.bf16.mxu0 0
    %359 = vmatpush1.bf16.msra.mxu0 0
    %360 = vmatprep.subr.bf16.mxu0 0
    %361 = vmatpush1.bf16.msra.mxu0 0
    %362 = vmatprep.subr.bf16.mxu0 0
    %363 = vmatpush1.bf16.msra.mxu0 0
    %364 = vmatprep.mubr.bf16.mxu0 0
    %365 = vmatmul.mubr.bf16.gmra.mrb[0].mxu0 0
    %v366 = vpop.f32.mrb[0].mxu0
    %v367 = vadd.f32 0.0, %v366
    %v368 = vpop.f32.mrb[0].mxu0
    %v369 = vadd.f32 0.0, %v368
    %v370 = vpop.f32.mrb[0].mxu0
    %v371 = vpop.f32.mrb[0].mxu0
    %372 = vdwg.mxu0
    %373 = vmatprep.subr.bf16.mxu0 %v271
    %374 = vmatpush1.bf16.msra.mxu0 %v270
    %375 = vmatprep.subr.bf16.mxu0 %v275
    %376 = vmatpush1.bf16.msra.mxu0 %v274
    %377 = vmatprep.subr.bf16.mxu0 %v279
    %378 = vmatpush1.bf16.msra.mxu0 %v278
    %379 = vmatprep.subr.bf16.mxu0 %v283
    %380 = vmatpush1.bf16.msra.mxu0 %v282
    %381 = vmatprep.subr.bf16.mxu0 %v287
    %382 = vmatpush1.bf16.msra.mxu0 %v286
    %383 = vmatprep.subr.bf16.mxu0 %v291
    %384 = vmatpush1.bf16.msra.mxu0 %v290
    %385 = vmatprep.subr.bf16.mxu0 %v295
    %386 = vmatpush1.bf16.msra.mxu0 %v294
    %387 = vmatprep.subr.bf16.mxu0 %v299
    %388 = vmatpush1.bf16.msra.mxu0 %v298
    %389 = vmatprep.subr.bf16.mxu0 0
    %390 = vmatpush1.bf16.msra.mxu0 0
    %391 = vmatprep.subr.bf16.mxu0 0
    %392 = vmatpush1.bf16.msra.mxu0 0
    %393 = vmatprep.subr.bf16.mxu0 0
    %394 = vmatpush1.bf16.msra.mxu0 0
    %395 = vmatprep.subr.bf16.mxu0 0
    %396 = vmatpush1.bf16.msra.mxu0 0
    %397 = vmatprep.subr.bf16.mxu0 0
    %398 = vmatpush1.bf16.msra.mxu0 0
    %399 = vmatprep.subr.bf16.mxu0 0
    %400 = vmatpush1.bf16.msra.mxu0 0
    %401 = vmatprep.subr.bf16.mxu0 0
    %402 = vmatpush1.bf16.msra.mxu0 0
    %403 = vmatprep.subr.bf16.mxu0 0
    %404 = vmatpush1.bf16.msra.mxu0 0
    %405 = vmatprep.mubr.bf16.mxu0 0
    %406 = vmatmul.mubr.bf16.gmra.mrb[0].mxu0 0
    %v407 = vpop.f32.mrb[0].mxu0
    %v408 = vadd.f32 0.0, %v407
    %v409 = vpop.f32.mrb[0].mxu0
    %v410 = vadd.f32 0.0, %v409
    %v411 = vpop.f32.mrb[0].mxu0
    %v412 = vpop.f32.mrb[0].mxu0
    %413 = vdwg.mxu0
    %v414 = vadd.f32 %v136, %v367
    %v415 = vadd.f32 %v137, %v369
    %v416 = vadd.f32 %v138, %v408
    %v417 = vadd.f32 %v139, %v410
    %v418 = vxor.u32 %v414, 2147483648
    %v419 = vmul.f32 %v418, 1.442695
    %v420 = vpow.pop %v419
    %v421 = vadd.f32 %v420, 1.0
    %v422 = vrcp.pop %v421
    %v423 = vmul.f32 1.0, %v422
    %v424 = vxor.u32 %v415, 2147483648
    %v425 = vmul.f32 %v424, 1.442695
    %v426 = vpow.pop %v425
    %v427 = vadd.f32 %v426, 1.0
    %v428 = vrcp.pop %v427
    %v429 = vmul.f32 1.0, %v428
    %v430 = vtanh.pop %v416
    %v431 = vxor.u32 %v417, 2147483648
    %v432 = vmul.f32 %v431, 1.442695
    %v433 = vpow.pop %v432
    %v434 = vadd.f32 %v433, 1.0
    %v435 = vrcp.pop %v434
    %v436 = vmul.f32 1.0, %v435
    %v437 = vmul.f32 %v429, 0.0
    %v438 = vmul.f32 %v423, %v430
    %v439 = vadd.f32 %v437, %v438
    %v440 = vtanh.pop %v439
    %v441 = vmul.f32 %v436, %v440
    %v442 = vpack.c.bf16 %v441, %v441
    %v443 = vpack.c.bf16 0.0, 0.0
    %v444 = vld [vmem:[#allocation5] sm:$0xff]
    %v445 = vld [vmem:[#allocation5 + $0x8] sm:$0xff]
    %v446 = vld [vmem:[#allocation5 + $0x10] sm:$0xff]
    %v447 = vld [vmem:[#allocation5 + $0x18] sm:$0xff]
    %v448 = vld [vmem:[#allocation5 + $0x20] sm:$0xff]
    %v449 = vld [vmem:[#allocation5 + $0x28] sm:$0xff]
    %v450 = vld [vmem:[#allocation5 + $0x30] sm:$0xff]
    %v451 = vld [vmem:[#allocation5 + $0x38] sm:$0xff]
    %v452 = vld [vmem:[#allocation5 + $0x40] sm:$0xff]
    %v453 = vld [vmem:[#allocation5 + $0x48] sm:$0xff]
    %v454 = vld [vmem:[#allocation5 + $0x50] sm:$0xff]
    %v455 = vld [vmem:[#allocation5 + $0x58] sm:$0xff]
    %v456 = vld [vmem:[#allocation5 + $0x60] sm:$0xff]
    %v457 = vld [vmem:[#allocation5 + $0x68] sm:$0xff]
    %v458 = vld [vmem:[#allocation5 + $0x70] sm:$0xff]
    %v459 = vld [vmem:[#allocation5 + $0x78] sm:$0xff]
    %v460 = vld [vmem:[#allocation5 + $0x80] sm:$0xff]
    %v461 = vld [vmem:[#allocation5 + $0x88] sm:$0xff]
    %v462 = vld [vmem:[#allocation5 + $0x90] sm:$0xff]
    %v463 = vld [vmem:[#allocation5 + $0x98] sm:$0xff]
    %v464 = vld [vmem:[#allocation5 + $0xa0] sm:$0xff]
    %v465 = vld [vmem:[#allocation5 + $0xa8] sm:$0xff]
    %v466 = vld [vmem:[#allocation5 + $0xb0] sm:$0xff]
    %v467 = vld [vmem:[#allocation5 + $0xb8] sm:$0xff]
    %v468 = vld [vmem:[#allocation5 + $0xc0] sm:$0xff]
    %v469 = vld [vmem:[#allocation5 + $0xc8] sm:$0xff]
    %v470 = vld [vmem:[#allocation5 + $0xd0] sm:$0xff]
    %v471 = vld [vmem:[#allocation5 + $0xd8] sm:$0xff]
    %v472 = vld [vmem:[#allocation5 + $0xe0] sm:$0xff]
    %v473 = vld [vmem:[#allocation5 + $0xe8] sm:$0xff]
    %v474 = vld [vmem:[#allocation5 + $0xf0] sm:$0xff]
    %v475 = vld [vmem:[#allocation5 + $0xf8] sm:$0xff]
    %v476 = vld [vmem:[#allocation5 + $0x100] sm:$0xff]
    %v477 = vld [vmem:[#allocation5 + $0x108] sm:$0xff]
    %v478 = vld [vmem:[#allocation5 + $0x110] sm:$0xff]
    %v479 = vld [vmem:[#allocation5 + $0x118] sm:$0xff]
    %v480 = vld [vmem:[#allocation5 + $0x120] sm:$0xff]
    %v481 = vld [vmem:[#allocation5 + $0x128] sm:$0xff]
    %v482 = vld [vmem:[#allocation5 + $0x130] sm:$0xff]
    %v483 = vld [vmem:[#allocation5 + $0x138] sm:$0xff]
    %v484 = vld [vmem:[#allocation5 + $0x140] sm:$0xff]
    %v485 = vld [vmem:[#allocation5 + $0x148] sm:$0xff]
    %v486 = vld [vmem:[#allocation5 + $0x150] sm:$0xff]
    %v487 = vld [vmem:[#allocation5 + $0x158] sm:$0xff]
    %v488 = vld [vmem:[#allocation5 + $0x160] sm:$0xff]
    %v489 = vld [vmem:[#allocation5 + $0x168] sm:$0xff]
    %v490 = vld [vmem:[#allocation5 + $0x170] sm:$0xff]
    %v491 = vld [vmem:[#allocation5 + $0x178] sm:$0xff]
    %v492 = vld [vmem:[#allocation5 + $0x180] sm:$0xff]
    %v493 = vld [vmem:[#allocation5 + $0x188] sm:$0xff]
    %v494 = vld [vmem:[#allocation5 + $0x190] sm:$0xff]
    %v495 = vld [vmem:[#allocation5 + $0x198] sm:$0xff]
    %v496 = vld [vmem:[#allocation5 + $0x1a0] sm:$0xff]
    %v497 = vld [vmem:[#allocation5 + $0x1a8] sm:$0xff]
    %v498 = vld [vmem:[#allocation5 + $0x1b0] sm:$0xff]
    %v499 = vld [vmem:[#allocation5 + $0x1b8] sm:$0xff]
    %v500 = vld [vmem:[#allocation5 + $0x1c0] sm:$0xff]
    %v501 = vld [vmem:[#allocation5 + $0x1c8] sm:$0xff]
    %v502 = vld [vmem:[#allocation5 + $0x1d0] sm:$0xff]
    %v503 = vld [vmem:[#allocation5 + $0x1d8] sm:$0xff]
    %v504 = vld [vmem:[#allocation5 + $0x1e0] sm:$0xff]
    %v505 = vld [vmem:[#allocation5 + $0x1e8] sm:$0xff]
    %v506 = vld [vmem:[#allocation5 + $0x1f0] sm:$0xff]
    %v507 = vld [vmem:[#allocation5 + $0x1f8] sm:$0xff]
    %v572 = vunpack.c.l.b16 %v444
    %v573 = vunpack.c.h.b16 %v444
    %v574 = vunpack.c.l.b16 %v445
    %v575 = vunpack.c.h.b16 %v445
    %v576 = vunpack.c.l.b16 %v446
    %v577 = vunpack.c.h.b16 %v446
    %v578 = vunpack.c.l.b16 %v447
    %v579 = vunpack.c.h.b16 %v447
    %v580 = vunpack.c.l.b16 %v448
    %v581 = vunpack.c.h.b16 %v448
    %v582 = vunpack.c.l.b16 %v449
    %v583 = vunpack.c.h.b16 %v449
    %v584 = vunpack.c.l.b16 %v450
    %v585 = vunpack.c.h.b16 %v450
    %v586 = vunpack.c.l.b16 %v451
    %v587 = vunpack.c.h.b16 %v451
    %v588 = vunpack.c.l.b16 %v452
    %v589 = vunpack.c.h.b16 %v452
    %v590 = vunpack.c.l.b16 %v453
    %v591 = vunpack.c.h.b16 %v453
    %v592 = vunpack.c.l.b16 %v454
    %v593 = vunpack.c.h.b16 %v454
    %v594 = vunpack.c.l.b16 %v455
    %v595 = vunpack.c.h.b16 %v455
    %v596 = vunpack.c.l.b16 %v456
    %v597 = vunpack.c.h.b16 %v456
    %v598 = vunpack.c.l.b16 %v457
    %v599 = vunpack.c.h.b16 %v457
    %v600 = vunpack.c.l.b16 %v458
    %v601 = vunpack.c.h.b16 %v458
    %v602 = vunpack.c.l.b16 %v459
    %v603 = vunpack.c.h.b16 %v459
    %v604 = vunpack.c.l.b16 %v460
    %v605 = vunpack.c.h.b16 %v460
    %v606 = vunpack.c.l.b16 %v461
    %v607 = vunpack.c.h.b16 %v461
    %v608 = vunpack.c.l.b16 %v462
    %v609 = vunpack.c.h.b16 %v462
    %v610 = vunpack.c.l.b16 %v463
    %v611 = vunpack.c.h.b16 %v463
    %v612 = vunpack.c.l.b16 %v464
    %v613 = vunpack.c.h.b16 %v464
    %v614 = vunpack.c.l.b16 %v465
    %v615 = vunpack.c.h.b16 %v465
    %v616 = vunpack.c.l.b16 %v466
    %v617 = vunpack.c.h.b16 %v466
    %v618 = vunpack.c.l.b16 %v467
    %v619 = vunpack.c.h.b16 %v467
    %v620 = vunpack.c.l.b16 %v468
    %v621 = vunpack.c.h.b16 %v468
    %v622 = vunpack.c.l.b16 %v469
    %v623 = vunpack.c.h.b16 %v469
    %v624 = vunpack.c.l.b16 %v470
    %v625 = vunpack.c.h.b16 %v470
    %v626 = vunpack.c.l.b16 %v471
    %v627 = vunpack.c.h.b16 %v471
    %v628 = vunpack.c.l.b16 %v472
    %v629 = vunpack.c.h.b16 %v472
    %v630 = vunpack.c.l.b16 %v473
    %v631 = vunpack.c.h.b16 %v473
    %v632 = vunpack.c.l.b16 %v474
    %v633 = vunpack.c.h.b16 %v474
    %v634 = vunpack.c.l.b16 %v475
    %v635 = vunpack.c.h.b16 %v475
    %v636 = vunpack.c.l.b16 %v476
    %v637 = vunpack.c.h.b16 %v476
    %v638 = vunpack.c.l.b16 %v477
    %v639 = vunpack.c.h.b16 %v477
    %v640 = vunpack.c.l.b16 %v478
    %v641 = vunpack.c.h.b16 %v478
    %v642 = vunpack.c.l.b16 %v479
    %v643 = vunpack.c.h.b16 %v479
    %v644 = vunpack.c.l.b16 %v480
    %v645 = vunpack.c.h.b16 %v480
    %v646 = vunpack.c.l.b16 %v481
    %v647 = vunpack.c.h.b16 %v481
    %v648 = vunpack.c.l.b16 %v482
    %v649 = vunpack.c.h.b16 %v482
    %v650 = vunpack.c.l.b16 %v483
    %v651 = vunpack.c.h.b16 %v483
    %v652 = vunpack.c.l.b16 %v484
    %v653 = vunpack.c.h.b16 %v484
    %v654 = vunpack.c.l.b16 %v485
    %v655 = vunpack.c.h.b16 %v485
    %v656 = vunpack.c.l.b16 %v486
    %v657 = vunpack.c.h.b16 %v486
    %v658 = vunpack.c.l.b16 %v487
    %v659 = vunpack.c.h.b16 %v487
    %v660 = vunpack.c.l.b16 %v488
    %v661 = vunpack.c.h.b16 %v488
    %v662 = vunpack.c.l.b16 %v489
    %v663 = vunpack.c.h.b16 %v489
    %v664 = vunpack.c.l.b16 %v490
    %v665 = vunpack.c.h.b16 %v490
    %v666 = vunpack.c.l.b16 %v491
    %v667 = vunpack.c.h.b16 %v491
    %v668 = vunpack.c.l.b16 %v492
    %v669 = vunpack.c.h.b16 %v492
    %v670 = vunpack.c.l.b16 %v493
    %v671 = vunpack.c.h.b16 %v493
    %v672 = vunpack.c.l.b16 %v494
    %v673 = vunpack.c.h.b16 %v494
    %v674 = vunpack.c.l.b16 %v495
    %v675 = vunpack.c.h.b16 %v495
    %v676 = vunpack.c.l.b16 %v496
    %v677 = vunpack.c.h.b16 %v496
    %v678 = vunpack.c.l.b16 %v497
    %v679 = vunpack.c.h.b16 %v497
    %v680 = vunpack.c.l.b16 %v498
    %v681 = vunpack.c.h.b16 %v498
    %v682 = vunpack.c.l.b16 %v499
    %v683 = vunpack.c.h.b16 %v499
    %v684 = vunpack.c.l.b16 %v500
    %v685 = vunpack.c.h.b16 %v500
    %v686 = vunpack.c.l.b16 %v501
    %v687 = vunpack.c.h.b16 %v501
    %v688 = vunpack.c.l.b16 %v502
    %v689 = vunpack.c.h.b16 %v502
    %v690 = vunpack.c.l.b16 %v503
    %v691 = vunpack.c.h.b16 %v503
    %v692 = vunpack.c.l.b16 %v504
    %v693 = vunpack.c.h.b16 %v504
    %v694 = vunpack.c.l.b16 %v505
    %v695 = vunpack.c.h.b16 %v505
    %v696 = vunpack.c.l.b16 %v506
    %v697 = vunpack.c.h.b16 %v506
    %v698 = vunpack.c.l.b16 %v507
    %v699 = vunpack.c.h.b16 %v507
    %v700 = vpack.c.b16 %v576, %v572
    %v701 = vpack.c.b16 %v577, %v573
    %v702 = vpack.c.b16 %v578, %v574
    %v703 = vpack.c.b16 %v579, %v575
    %v704 = vpack.c.b16 %v584, %v580
    %v705 = vpack.c.b16 %v585, %v581
    %v706 = vpack.c.b16 %v586, %v582
    %v707 = vpack.c.b16 %v587, %v583
    %v708 = vpack.c.b16 %v592, %v588
    %v709 = vpack.c.b16 %v593, %v589
    %v710 = vpack.c.b16 %v594, %v590
    %v711 = vpack.c.b16 %v595, %v591
    %v712 = vpack.c.b16 %v600, %v596
    %v713 = vpack.c.b16 %v601, %v597
    %v714 = vpack.c.b16 %v602, %v598
    %v715 = vpack.c.b16 %v603, %v599
    %v716 = vpack.c.b16 %v608, %v604
    %v717 = vpack.c.b16 %v609, %v605
    %v718 = vpack.c.b16 %v610, %v606
    %v719 = vpack.c.b16 %v611, %v607
    %v720 = vpack.c.b16 %v616, %v612
    %v721 = vpack.c.b16 %v617, %v613
    %v722 = vpack.c.b16 %v618, %v614
    %v723 = vpack.c.b16 %v619, %v615
    %v724 = vpack.c.b16 %v624, %v620
    %v725 = vpack.c.b16 %v625, %v621
    %v726 = vpack.c.b16 %v626, %v622
    %v727 = vpack.c.b16 %v627, %v623
    %v728 = vpack.c.b16 %v632, %v628
    %v729 = vpack.c.b16 %v633, %v629
    %v730 = vpack.c.b16 %v634, %v630
    %v731 = vpack.c.b16 %v635, %v631
    %v732 = vpack.c.b16 %v640, %v636
    %v733 = vpack.c.b16 %v641, %v637
    %v734 = vpack.c.b16 %v642, %v638
    %v735 = vpack.c.b16 %v643, %v639
    %v736 = vpack.c.b16 %v648, %v644
    %v737 = vpack.c.b16 %v649, %v645
    %v738 = vpack.c.b16 %v650, %v646
    %v739 = vpack.c.b16 %v651, %v647
    %v740 = vpack.c.b16 %v656, %v652
    %v741 = vpack.c.b16 %v657, %v653
    %v742 = vpack.c.b16 %v658, %v654
    %v743 = vpack.c.b16 %v659, %v655
    %v744 = vpack.c.b16 %v664, %v660
    %v745 = vpack.c.b16 %v665, %v661
    %v746 = vpack.c.b16 %v666, %v662
    %v747 = vpack.c.b16 %v667, %v663
    %v748 = vpack.c.b16 %v672, %v668
    %v749 = vpack.c.b16 %v673, %v669
    %v750 = vpack.c.b16 %v674, %v670
    %v751 = vpack.c.b16 %v675, %v671
    %v752 = vpack.c.b16 %v680, %v676
    %v753 = vpack.c.b16 %v681, %v677
    %v754 = vpack.c.b16 %v682, %v678
    %v755 = vpack.c.b16 %v683, %v679
    %v756 = vpack.c.b16 %v688, %v684
    %v757 = vpack.c.b16 %v689, %v685
    %v758 = vpack.c.b16 %v690, %v686
    %v759 = vpack.c.b16 %v691, %v687
    %v760 = vpack.c.b16 %v696, %v692
    %v761 = vpack.c.b16 %v697, %v693
    %v762 = vpack.c.b16 %v698, %v694
    %v763 = vpack.c.b16 %v699, %v695
    %828 = vmatprep.subr.bf16.mxu0 %v701
    %829 = vmatpush1.bf16.msra.mxu0 %v700
    %830 = vmatprep.subr.bf16.mxu0 %v705
    %831 = vmatpush1.bf16.msra.mxu0 %v704
    %832 = vmatprep.subr.bf16.mxu0 %v709
    %833 = vmatpush1.bf16.msra.mxu0 %v708
    %834 = vmatprep.subr.bf16.mxu0 %v713
    %835 = vmatpush1.bf16.msra.mxu0 %v712
    %836 = vmatprep.subr.bf16.mxu0 %v717
    %837 = vmatpush1.bf16.msra.mxu0 %v716
    %838 = vmatprep.subr.bf16.mxu0 %v721
    %839 = vmatpush1.bf16.msra.mxu0 %v720
    %840 = vmatprep.subr.bf16.mxu0 %v725
    %841 = vmatpush1.bf16.msra.mxu0 %v724
    %842 = vmatprep.subr.bf16.mxu0 %v729
    %843 = vmatpush1.bf16.msra.mxu0 %v728
    %844 = vmatprep.subr.bf16.mxu0 %v733
    %845 = vmatpush1.bf16.msra.mxu0 %v732
    %846 = vmatprep.subr.bf16.mxu0 %v737
    %847 = vmatpush1.bf16.msra.mxu0 %v736
    %848 = vmatprep.subr.bf16.mxu0 %v741
    %849 = vmatpush1.bf16.msra.mxu0 %v740
    %850 = vmatprep.subr.bf16.mxu0 %v745
    %851 = vmatpush1.bf16.msra.mxu0 %v744
    %852 = vmatprep.subr.bf16.mxu0 %v749
    %853 = vmatpush1.bf16.msra.mxu0 %v748
    %854 = vmatprep.subr.bf16.mxu0 %v753
    %855 = vmatpush1.bf16.msra.mxu0 %v752
    %856 = vmatprep.subr.bf16.mxu0 %v757
    %857 = vmatpush1.bf16.msra.mxu0 %v756
    %858 = vmatprep.subr.bf16.mxu0 %v761
    %859 = vmatpush1.bf16.msra.mxu0 %v760
    %860 = vmatprep.mubr.bf16.mxu0 %v443
    %861 = vmatmul.mubr.bf16.gmra.mrb[0].mxu0 %v442
    %v862 = vpop.f32.mrb[0].mxu0
    %v863 = vadd.f32 0.0, %v862
    %v864 = vpop.f32.mrb[0].mxu0
    %v865 = vadd.f32 0.0, %v864
    %v866 = vpop.f32.mrb[0].mxu0
    %v867 = vpop.f32.mrb[0].mxu0
    %868 = vdwg.mxu0
    %869 = vmatprep.subr.bf16.mxu0 %v703
    %870 = vmatpush1.bf16.msra.mxu0 %v702
    %871 = vmatprep.subr.bf16.mxu0 %v707
    %872 = vmatpush1.bf16.msra.mxu0 %v706
    %873 = vmatprep.subr.bf16.mxu0 %v711
    %874 = vmatpush1.bf16.msra.mxu0 %v710
    %875 = vmatprep.subr.bf16.mxu0 %v715
    %876 = vmatpush1.bf16.msra.mxu0 %v714
    %877 = vmatprep.subr.bf16.mxu0 %v719
    %878 = vmatpush1.bf16.msra.mxu0 %v718
    %879 = vmatprep.subr.bf16.mxu0 %v723
    %880 = vmatpush1.bf16.msra.mxu0 %v722
    %881 = vmatprep.subr.bf16.mxu0 %v727
    %882 = vmatpush1.bf16.msra.mxu0 %v726
    %883 = vmatprep.subr.bf16.mxu0 %v731
    %884 = vmatpush1.bf16.msra.mxu0 %v730
    %885 = vmatprep.subr.bf16.mxu0 %v735
    %886 = vmatpush1.bf16.msra.mxu0 %v734
    %887 = vmatprep.subr.bf16.mxu0 %v739
    %888 = vmatpush1.bf16.msra.mxu0 %v738
    %889 = vmatprep.subr.bf16.mxu0 %v743
    %890 = vmatpush1.bf16.msra.mxu0 %v742
    %891 = vmatprep.subr.bf16.mxu0 %v747
    %892 = vmatpush1.bf16.msra.mxu0 %v746
    %893 = vmatprep.subr.bf16.mxu0 %v751
    %894 = vmatpush1.bf16.msra.mxu0 %v750
    %895 = vmatprep.subr.bf16.mxu0 %v755
    %896 = vmatpush1.bf16.msra.mxu0 %v754
    %897 = vmatprep.subr.bf16.mxu0 %v759
    %898 = vmatpush1.bf16.msra.mxu0 %v758
    %899 = vmatprep.subr.bf16.mxu0 %v763
    %900 = vmatpush1.bf16.msra.mxu0 %v762
    %901 = vmatprep.mubr.bf16.mxu0 %v443
    %902 = vmatmul.mubr.bf16.gmra.mrb[0].mxu0 %v442
    %v903 = vpop.f32.mrb[0].mxu0
    %v904 = vadd.f32 0.0, %v903
    %v905 = vpop.f32.mrb[0].mxu0
    %v906 = vadd.f32 0.0, %v905
    %v907 = vpop.f32.mrb[0].mxu0
    %v908 = vpop.f32.mrb[0].mxu0
    %909 = vdwg.mxu0
    %v910 = vadd.f32 %v87, %v863
    %v911 = vadd.f32 %v91, %v865
    %v912 = vadd.f32 %v95, %v904
    %v913 = vadd.f32 %v99, %v906
    %v914 = vxor.u32 %v910, 2147483648
    %v915 = vmul.f32 %v914, 1.442695
    %v916 = vpow.pop %v915
    %v917 = vadd.f32 %v916, 1.0
    %v918 = vrcp.pop %v917
    %v919 = vmul.f32 1.0, %v918
    %v920 = vxor.u32 %v911, 2147483648
    %v921 = vmul.f32 %v920, 1.442695
    %v922 = vpow.pop %v921
    %v923 = vadd.f32 %v922, 1.0
    %v924 = vrcp.pop %v923
    %v925 = vmul.f32 1.0, %v924
    %v926 = vtanh.pop %v912
    %v927 = vxor.u32 %v913, 2147483648
    %v928 = vmul.f32 %v927, 1.442695
    %v929 = vpow.pop %v928
    %v930 = vadd.f32 %v929, 1.0
    %v931 = vrcp.pop %v930
    %v932 = vmul.f32 1.0, %v931
    %v933 = vmul.f32 %v925, 0.0
    %v934 = vmul.f32 %v919, %v926
    %v935 = vadd.f32 %v933, %v934
    %v936 = vtanh.pop %v935
    %v937 = vmul.f32 %v932, %v936
    %s938 = scalar_lea.vmem %s0, 8
    %v939 = vld [vmem:[%s938] sm:$0xff]
    %941 = vset.pattern.permute.xlu0 0
    %942 = vperm.xlu0 %941, %v939
    %v943 = vpop.permute.xlu0 %942
    %v945 = vmul.f32 %v943, %v115
    %v946 = vmul.f32 %v943, %v119
    %v947 = vmul.f32 %v943, %v123
    %v948 = vmul.f32 %v943, %v127
    %v949 = vadd.f32 %v945, %v65
    %v950 = vadd.f32 %v946, %v69
    %v951 = vadd.f32 %v947, %v73
    %v952 = vadd.f32 %v948, %v77
    %953 = vmatprep.subr.bf16.mxu0 %v269
    %954 = vmatpush1.bf16.msra.mxu0 %v268
    %955 = vmatprep.subr.bf16.mxu0 %v273
    %956 = vmatpush1.bf16.msra.mxu0 %v272
    %957 = vmatprep.subr.bf16.mxu0 %v277
    %958 = vmatpush1.bf16.msra.mxu0 %v276
    %959 = vmatprep.subr.bf16.mxu0 %v281
    %960 = vmatpush1.bf16.msra.mxu0 %v280
    %961 = vmatprep.subr.bf16.mxu0 %v285
    %962 = vmatpush1.bf16.msra.mxu0 %v284
    %963 = vmatprep.subr.bf16.mxu0 %v289
    %964 = vmatpush1.bf16.msra.mxu0 %v288
    %965 = vmatprep.subr.bf16.mxu0 %v293
    %966 = vmatpush1.bf16.msra.mxu0 %v292
    %967 = vmatprep.subr.bf16.mxu0 %v297
    %968 = vmatpush1.bf16.msra.mxu0 %v296
    %969 = vmatprep.subr.bf16.mxu0 0
    %970 = vmatpush1.bf16.msra.mxu0 0
    %971 = vmatprep.subr.bf16.mxu0 0
    %972 = vmatpush1.bf16.msra.mxu0 0
    %973 = vmatprep.subr.bf16.mxu0 0
    %974 = vmatpush1.bf16.msra.mxu0 0
    %975 = vmatprep.subr.bf16.mxu0 0
    %976 = vmatpush1.bf16.msra.mxu0 0
    %977 = vmatprep.subr.bf16.mxu0 0
    %978 = vmatpush1.bf16.msra.mxu0 0
    %979 = vmatprep.subr.bf16.mxu0 0
    %980 = vmatpush1.bf16.msra.mxu0 0
    %981 = vmatprep.subr.bf16.mxu0 0
    %982 = vmatpush1.bf16.msra.mxu0 0
    %983 = vmatprep.subr.bf16.mxu0 0
    %984 = vmatpush1.bf16.msra.mxu0 0
    %985 = vmatprep.mubr.bf16.mxu0 0
    %986 = vmatmul.mubr.bf16.gmra.mrb[0].mxu0 %v442
    %v987 = vpop.f32.mrb[0].mxu0
    %v988 = vadd.f32 0.0, %v987
    %v989 = vpop.f32.mrb[0].mxu0
    %v990 = vadd.f32 0.0, %v989
    %v991 = vpop.f32.mrb[0].mxu0
    %v992 = vpop.f32.mrb[0].mxu0
    %993 = vdwg.mxu0
    %994 = vmatprep.subr.bf16.mxu0 %v271
    %995 = vmatpush1.bf16.msra.mxu0 %v270
    %996 = vmatprep.subr.bf16.mxu0 %v275
    %997 = vmatpush1.bf16.msra.mxu0 %v274
    %998 = vmatprep.subr.bf16.mxu0 %v279
    %999 = vmatpush1.bf16.msra.mxu0 %v278
    %1000 = vmatprep.subr.bf16.mxu0 %v283
    %1001 = vmatpush1.bf16.msra.mxu0 %v282
    %1002 = vmatprep.subr.bf16.mxu0 %v287
    %1003 = vmatpush1.bf16.msra.mxu0 %v286
    %1004 = vmatprep.subr.bf16.mxu0 %v291
    %1005 = vmatpush1.bf16.msra.mxu0 %v290
    %1006 = vmatprep.subr.bf16.mxu0 %v295
    %1007 = vmatpush1.bf16.msra.mxu0 %v294
    %1008 = vmatprep.subr.bf16.mxu0 %v299
    %1009 = vmatpush1.bf16.msra.mxu0 %v298
    %1010 = vmatprep.subr.bf16.mxu0 0
    %1011 = vmatpush1.bf16.msra.mxu0 0
    %1012 = vmatprep.subr.bf16.mxu0 0
    %1013 = vmatpush1.bf16.msra.mxu0 0
    %1014 = vmatprep.subr.bf16.mxu0 0
    %1015 = vmatpush1.bf16.msra.mxu0 0
    %1016 = vmatprep.subr.bf16.mxu0 0
    %1017 = vmatpush1.bf16.msra.mxu0 0
    %1018 = vmatprep.subr.bf16.mxu0 0
    %1019 = vmatpush1.bf16.msra.mxu0 0
    %1020 = vmatprep.subr.bf16.mxu0 0
    %1021 = vmatpush1.bf16.msra.mxu0 0
    %1022 = vmatprep.subr.bf16.mxu0 0
    %1023 = vmatpush1.bf16.msra.mxu0 0
    %1024 = vmatprep.subr.bf16.mxu0 0
    %1025 = vmatpush1.bf16.msra.mxu0 0
    %1026 = vmatprep.mubr.bf16.mxu0 0
    %1027 = vmatmul.mubr.bf16.gmra.mrb[0].mxu0 %v442
    %v1028 = vpop.f32.mrb[0].mxu0
    %v1029 = vadd.f32 0.0, %v1028
    %v1030 = vpop.f32.mrb[0].mxu0
    %v1031 = vadd.f32 0.0, %v1030
    %v1032 = vpop.f32.mrb[0].mxu0
    %v1033 = vpop.f32.mrb[0].mxu0
    %1034 = vdwg.mxu0
    %v1035 = vadd.f32 %v949, %v988
    %v1036 = vadd.f32 %v950, %v990
    %v1037 = vadd.f32 %v951, %v1029
    %v1038 = vadd.f32 %v952, %v1031
    %v1039 = vxor.u32 %v1035, 2147483648
    %v1040 = vmul.f32 %v1039, 1.442695
    %v1041 = vpow.pop %v1040
    %v1042 = vadd.f32 %v1041, 1.0
    %v1043 = vrcp.pop %v1042
    %v1044 = vmul.f32 1.0, %v1043
    %v1045 = vxor.u32 %v1036, 2147483648
    %v1046 = vmul.f32 %v1045, 1.442695
    %v1047 = vpow.pop %v1046
    %v1048 = vadd.f32 %v1047, 1.0
    %v1049 = vrcp.pop %v1048
    %v1050 = vmul.f32 1.0, %v1049
    %v1051 = vtanh.pop %v1037
    %v1052 = vxor.u32 %v1038, 2147483648
    %v1053 = vmul.f32 %v1052, 1.442695
    %v1054 = vpow.pop %v1053
    %v1055 = vadd.f32 %v1054, 1.0
    %v1056 = vrcp.pop %v1055
    %v1057 = vmul.f32 1.0, %v1056
    %v1058 = vmul.f32 %v1050, %v439
    %v1059 = vmul.f32 %v1044, %v1051
    %v1060 = vadd.f32 %v1058, %v1059
    %v1061 = vtanh.pop %v1060
    %v1062 = vmul.f32 %v1057, %v1061
    %v1063 = vpack.c.bf16 %v1062, %v1062
    %v1064 = vpack.c.bf16 %v937, %v937
    %1065 = vmatprep.subr.bf16.mxu0 %v701
    %1066 = vmatpush1.bf16.msra.mxu0 %v700
    %1067 = vmatprep.subr.bf16.mxu0 %v705
    %1068 = vmatpush1.bf16.msra.mxu0 %v704
    %1069 = vmatprep.subr.bf16.mxu0 %v709
    %1070 = vmatpush1.bf16.msra.mxu0 %v708
    %1071 = vmatprep.subr.bf16.mxu0 %v713
    %1072 = vmatpush1.bf16.msra.mxu0 %v712
    %1073 = vmatprep.subr.bf16.mxu0 %v717
    %1074 = vmatpush1.bf16.msra.mxu0 %v716
    %1075 = vmatprep.subr.bf16.mxu0 %v721
    %1076 = vmatpush1.bf16.msra.mxu0 %v720
    %1077 = vmatprep.subr.bf16.mxu0 %v725
    %1078 = vmatpush1.bf16.msra.mxu0 %v724
    %1079 = vmatprep.subr.bf16.mxu0 %v729
    %1080 = vmatpush1.bf16.msra.mxu0 %v728
    %1081 = vmatprep.subr.bf16.mxu0 %v733
    %1082 = vmatpush1.bf16.msra.mxu0 %v732
    %1083 = vmatprep.subr.bf16.mxu0 %v737
    %1084 = vmatpush1.bf16.msra.mxu0 %v736
    %1085 = vmatprep.subr.bf16.mxu0 %v741
    %1086 = vmatpush1.bf16.msra.mxu0 %v740
    %1087 = vmatprep.subr.bf16.mxu0 %v745
    %1088 = vmatpush1.bf16.msra.mxu0 %v744
    %1089 = vmatprep.subr.bf16.mxu0 %v749
    %1090 = vmatpush1.bf16.msra.mxu0 %v748
    %1091 = vmatprep.subr.bf16.mxu0 %v753
    %1092 = vmatpush1.bf16.msra.mxu0 %v752
    %1093 = vmatprep.subr.bf16.mxu0 %v757
    %1094 = vmatpush1.bf16.msra.mxu0 %v756
    %1095 = vmatprep.subr.bf16.mxu0 %v761
    %1096 = vmatpush1.bf16.msra.mxu0 %v760
    %1097 = vmatprep.mubr.bf16.mxu0 %v1064
    %1098 = vmatmul.mubr.bf16.gmra.mrb[0].mxu0 %v1063
    %v1099 = vpop.f32.mrb[0].mxu0
    %v1100 = vadd.f32 0.0, %v1099
    %v1101 = vpop.f32.mrb[0].mxu0
    %v1102 = vadd.f32 0.0, %v1101
    %v1103 = vpop.f32.mrb[0].mxu0
    %v1104 = vpop.f32.mrb[0].mxu0
    %1105 = vdwg.mxu0
    %1106 = vmatprep.subr.bf16.mxu0 %v703
    %1107 = vmatpush1.bf16.msra.mxu0 %v702
    %1108 = vmatprep.subr.bf16.mxu0 %v707
    %1109 = vmatpush1.bf16.msra.mxu0 %v706
    %1110 = vmatprep.subr.bf16.mxu0 %v711
    %1111 = vmatpush1.bf16.msra.mxu0 %v710
    %1112 = vmatprep.subr.bf16.mxu0 %v715
    %1113 = vmatpush1.bf16.msra.mxu0 %v714
    %1114 = vmatprep.subr.bf16.mxu0 %v719
    %1115 = vmatpush1.bf16.msra.mxu0 %v718
    %1116 = vmatprep.subr.bf16.mxu0 %v723
    %1117 = vmatpush1.bf16.msra.mxu0 %v722
    %1118 = vmatprep.subr.bf16.mxu0 %v727
    %1119 = vmatpush1.bf16.msra.mxu0 %v726
    %1120 = vmatprep.subr.bf16.mxu0 %v731
    %1121 = vmatpush1.bf16.msra.mxu0 %v730
    %1122 = vmatprep.subr.bf16.mxu0 %v735
    %1123 = vmatpush1.bf16.msra.mxu0 %v734
    %1124 = vmatprep.subr.bf16.mxu0 %v739
    %1125 = vmatpush1.bf16.msra.mxu0 %v738
    %1126 = vmatprep.subr.bf16.mxu0 %v743
    %1127 = vmatpush1.bf16.msra.mxu0 %v742
    %1128 = vmatprep.subr.bf16.mxu0 %v747
    %1129 = vmatpush1.bf16.msra.mxu0 %v746
    %1130 = vmatprep.subr.bf16.mxu0 %v751
    %1131 = vmatpush1.bf16.msra.mxu0 %v750
    %1132 = vmatprep.subr.bf16.mxu0 %v755
    %1133 = vmatpush1.bf16.msra.mxu0 %v754
    %1134 = vmatprep.subr.bf16.mxu0 %v759
    %1135 = vmatpush1.bf16.msra.mxu0 %v758
    %1136 = vmatprep.subr.bf16.mxu0 %v763
    %1137 = vmatpush1.bf16.msra.mxu0 %v762
    %1138 = vmatprep.mubr.bf16.mxu0 %v1064
    %1139 = vmatmul.mubr.bf16.gmra.mrb[0].mxu0 %v1063
    %v1140 = vpop.f32.mrb[0].mxu0
    %v1141 = vadd.f32 0.0, %v1140
    %v1142 = vpop.f32.mrb[0].mxu0
    %v1143 = vadd.f32 0.0, %v1142
    %v1144 = vpop.f32.mrb[0].mxu0
    %v1145 = vpop.f32.mrb[0].mxu0
    %1146 = vdwg.mxu0
    %v1147 = vadd.f32 %v87, %v1100
    %v1148 = vadd.f32 %v91, %v1102
    %v1149 = vadd.f32 %v95, %v1141
    %v1150 = vadd.f32 %v99, %v1143
    %v1151 = vxor.u32 %v1147, 2147483648
    %v1152 = vmul.f32 %v1151, 1.442695
    %v1153 = vpow.pop %v1152
    %v1154 = vadd.f32 %v1153, 1.0
    %v1155 = vrcp.pop %v1154
    %v1156 = vmul.f32 1.0, %v1155
    %v1157 = vxor.u32 %v1148, 2147483648
    %v1158 = vmul.f32 %v1157, 1.442695
    %v1159 = vpow.pop %v1158
    %v1160 = vadd.f32 %v1159, 1.0
    %v1161 = vrcp.pop %v1160
    %v1162 = vmul.f32 1.0, %v1161
    %v1163 = vtanh.pop %v1149
    %v1164 = vxor.u32 %v1150, 2147483648
    %v1165 = vmul.f32 %v1164, 1.442695
    %v1166 = vpow.pop %v1165
    %v1167 = vadd.f32 %v1166, 1.0
    %v1168 = vrcp.pop %v1167
    %v1169 = vmul.f32 1.0, %v1168
    %v1170 = vmul.f32 %v1162, %v935
    %v1171 = vmul.f32 %v1156, %v1163
    %v1172 = vadd.f32 %v1170, %v1171
    %v1173 = vtanh.pop %v1172
    %v1174 = vmul.f32 %v1169, %v1173
    %s1175 = scalar_lea.vmem %s0, 16
    %v1176 = vld [vmem:[%s1175] sm:$0xff]
    %1178 = vset.pattern.permute.xlu0 0
    %1179 = vperm.xlu0 %1178, %v1176
    %v1180 = vpop.permute.xlu0 %1179
    %v1182 = vmul.f32 %v1180, %v115
    %v1183 = vmul.f32 %v1180, %v119
    %v1184 = vmul.f32 %v1180, %v123
    %v1185 = vmul.f32 %v1180, %v127
    %v1186 = vadd.f32 %v1182, %v65
    %v1187 = vadd.f32 %v1183, %v69
    %v1188 = vadd.f32 %v1184, %v73
    %v1189 = vadd.f32 %v1185, %v77
    %1190 = vmatprep.subr.bf16.mxu0 %v269
    %1191 = vmatpush1.bf16.msra.mxu0 %v268
    %1192 = vmatprep.subr.bf16.mxu0 %v273
    %1193 = vmatpush1.bf16.msra.mxu0 %v272
    %1194 = vmatprep.subr.bf16.mxu0 %v277
    %1195 = vmatpush1.bf16.msra.mxu0 %v276
    %1196 = vmatprep.subr.bf16.mxu0 %v281
    %1197 = vmatpush1.bf16.msra.mxu0 %v280
    %1198 = vmatprep.subr.bf16.mxu0 %v285
    %1199 = vmatpush1.bf16.msra.mxu0 %v284
    %1200 = vmatprep.subr.bf16.mxu0 %v289
    %1201 = vmatpush1.bf16.msra.mxu0 %v288
    %1202 = vmatprep.subr.bf16.mxu0 %v293
    %1203 = vmatpush1.bf16.msra.mxu0 %v292
    %1204 = vmatprep.subr.bf16.mxu0 %v297
    %1205 = vmatpush1.bf16.msra.mxu0 %v296
    %1206 = vmatprep.subr.bf16.mxu0 0
    %1207 = vmatpush1.bf16.msra.mxu0 0
    %1208 = vmatprep.subr.bf16.mxu0 0
    %1209 = vmatpush1.bf16.msra.mxu0 0
    %1210 = vmatprep.subr.bf16.mxu0 0
    %1211 = vmatpush1.bf16.msra.mxu0 0
    %1212 = vmatprep.subr.bf16.mxu0 0
    %1213 = vmatpush1.bf16.msra.mxu0 0
    %1214 = vmatprep.subr.bf16.mxu0 0
    %1215 = vmatpush1.bf16.msra.mxu0 0
    %1216 = vmatprep.subr.bf16.mxu0 0
    %1217 = vmatpush1.bf16.msra.mxu0 0
    %1218 = vmatprep.subr.bf16.mxu0 0
    %1219 = vmatpush1.bf16.msra.mxu0 0
    %1220 = vmatprep.subr.bf16.mxu0 0
    %1221 = vmatpush1.bf16.msra.mxu0 0
    %1222 = vmatprep.mubr.bf16.mxu0 0
    %1223 = vmatmul.mubr.bf16.gmra.mrb[0].mxu0 %v1063
    %v1224 = vpop.f32.mrb[0].mxu0
    %v1225 = vadd.f32 0.0, %v1224
    %v1226 = vpop.f32.mrb[0].mxu0
    %v1227 = vadd.f32 0.0, %v1226
    %v1228 = vpop.f32.mrb[0].mxu0
    %v1229 = vpop.f32.mrb[0].mxu0
    %1230 = vdwg.mxu0
    %1231 = vmatprep.subr.bf16.mxu0 %v271
    %1232 = vmatpush1.bf16.msra.mxu0 %v270
    %1233 = vmatprep.subr.bf16.mxu0 %v275
    %1234 = vmatpush1.bf16.msra.mxu0 %v274
    %1235 = vmatprep.subr.bf16.mxu0 %v279
    %1236 = vmatpush1.bf16.msra.mxu0 %v278
    %1237 = vmatprep.subr.bf16.mxu0 %v283
    %1238 = vmatpush1.bf16.msra.mxu0 %v282
    %1239 = vmatprep.subr.bf16.mxu0 %v287
    %1240 = vmatpush1.bf16.msra.mxu0 %v286
    %1241 = vmatprep.subr.bf16.mxu0 %v291
    %1242 = vmatpush1.bf16.msra.mxu0 %v290
    %1243 = vmatprep.subr.bf16.mxu0 %v295
    %1244 = vmatpush1.bf16.msra.mxu0 %v294
    %1245 = vmatprep.subr.bf16.mxu0 %v299
    %1246 = vmatpush1.bf16.msra.mxu0 %v298
    %1247 = vmatprep.subr.bf16.mxu0 0
    %1248 = vmatpush1.bf16.msra.mxu0 0
    %1249 = vmatprep.subr.bf16.mxu0 0
    %1250 = vmatpush1.bf16.msra.mxu0 0
    %1251 = vmatprep.subr.bf16.mxu0 0
    %1252 = vmatpush1.bf16.msra.mxu0 0
    %1253 = vmatprep.subr.bf16.mxu0 0
    %1254 = vmatpush1.bf16.msra.mxu0 0
    %1255 = vmatprep.subr.bf16.mxu0 0
    %1256 = vmatpush1.bf16.msra.mxu0 0
    %1257 = vmatprep.subr.bf16.mxu0 0
    %1258 = vmatpush1.bf16.msra.mxu0 0
    %1259 = vmatprep.subr.bf16.mxu0 0
    %1260 = vmatpush1.bf16.msra.mxu0 0
    %1261 = vmatprep.subr.bf16.mxu0 0
    %1262 = vmatpush1.bf16.msra.mxu0 0
    %1263 = vmatprep.mubr.bf16.mxu0 0
    %1264 = vmatmul.mubr.bf16.gmra.mrb[0].mxu0 %v1063
    %v1265 = vpop.f32.mrb[0].mxu0
    %v1266 = vadd.f32 0.0, %v1265
    %v1267 = vpop.f32.mrb[0].mxu0
    %v1268 = vadd.f32 0.0, %v1267
    %v1269 = vpop.f32.mrb[0].mxu0
    %v1270 = vpop.f32.mrb[0].mxu0
    %1271 = vdwg.mxu0
    %v1272 = vadd.f32 %v1186, %v1225
    %v1273 = vadd.f32 %v1187, %v1227
    %v1274 = vadd.f32 %v1188, %v1266
    %v1275 = vadd.f32 %v1189, %v1268
    %v1276 = vxor.u32 %v1272, 2147483648
    %v1277 = vmul.f32 %v1276, 1.442695
    %v1278 = vpow.pop %v1277
    %v1279 = vadd.f32 %v1278, 1.0
    %v1280 = vrcp.pop %v1279
    %v1281 = vmul.f32 1.0, %v1280
    %v1282 = vxor.u32 %v1273, 2147483648
    %v1283 = vmul.f32 %v1282, 1.442695
    %v1284 = vpow.pop %v1283
    %v1285 = vadd.f32 %v1284, 1.0
    %v1286 = vrcp.pop %v1285
    %v1287 = vmul.f32 1.0, %v1286
    %v1288 = vtanh.pop %v1274
    %v1289 = vxor.u32 %v1275, 2147483648
    %v1290 = vmul.f32 %v1289, 1.442695
    %v1291 = vpow.pop %v1290
    %v1292 = vadd.f32 %v1291, 1.0
    %v1293 = vrcp.pop %v1292
    %v1294 = vmul.f32 1.0, %v1293
    %v1295 = vmul.f32 %v1287, %v1060
    %v1296 = vmul.f32 %v1281, %v1288
    %v1297 = vadd.f32 %v1295, %v1296
    %v1298 = vtanh.pop %v1297
    %v1299 = vmul.f32 %v1294, %v1298
    %v1300 = vpack.c.bf16 %v1299, %v1299
    %v1301 = vpack.c.bf16 %v1174, %v1174
    %1302 = vmatprep.subr.bf16.mxu0 %v701
    %1303 = vmatpush1.bf16.msra.mxu0 %v700
    %1304 = vmatprep.subr.bf16.mxu0 %v705
    %1305 = vmatpush1.bf16.msra.mxu0 %v704
    %1306 = vmatprep.subr.bf16.mxu0 %v709
    %1307 = vmatpush1.bf16.msra.mxu0 %v708
    %1308 = vmatprep.subr.bf16.mxu0 %v713
    %1309 = vmatpush1.bf16.msra.mxu0 %v712
    %1310 = vmatprep.subr.bf16.mxu0 %v717
    %1311 = vmatpush1.bf16.msra.mxu0 %v716
    %1312 = vmatprep.subr.bf16.mxu0 %v721
    %1313 = vmatpush1.bf16.msra.mxu0 %v720
    %1314 = vmatprep.subr.bf16.mxu0 %v725
    %1315 = vmatpush1.bf16.msra.mxu0 %v724
    %1316 = vmatprep.subr.bf16.mxu0 %v729
    %1317 = vmatpush1.bf16.msra.mxu0 %v728
    %1318 = vmatprep.subr.bf16.mxu0 %v733
    %1319 = vmatpush1.bf16.msra.mxu0 %v732
    %1320 = vmatprep.subr.bf16.mxu0 %v737
    %1321 = vmatpush1.bf16.msra.mxu0 %v736
    %1322 = vmatprep.subr.bf16.mxu0 %v741
    %1323 = vmatpush1.bf16.msra.mxu0 %v740
    %1324 = vmatprep.subr.bf16.mxu0 %v745
    %1325 = vmatpush1.bf16.msra.mxu0 %v744
    %1326 = vmatprep.subr.bf16.mxu0 %v749
    %1327 = vmatpush1.bf16.msra.mxu0 %v748
    %1328 = vmatprep.subr.bf16.mxu0 %v753
    %1329 = vmatpush1.bf16.msra.mxu0 %v752
    %1330 = vmatprep.subr.bf16.mxu0 %v757
    %1331 = vmatpush1.bf16.msra.mxu0 %v756
    %1332 = vmatprep.subr.bf16.mxu0 %v761
    %1333 = vmatpush1.bf16.msra.mxu0 %v760
    %1334 = vmatprep.mubr.bf16.mxu0 %v1301
    %1335 = vmatmul.mubr.bf16.gmra.mrb[0].mxu0 %v1300
    %v1336 = vpop.f32.mrb[0].mxu0
    %v1337 = vadd.f32 0.0, %v1336
    %v1338 = vpop.f32.mrb[0].mxu0
    %v1339 = vadd.f32 0.0, %v1338
    %v1340 = vpop.f32.mrb[0].mxu0
    %v1341 = vpop.f32.mrb[0].mxu0
    %1342 = vdwg.mxu0
    %1343 = vmatprep.subr.bf16.mxu0 %v703
    %1344 = vmatpush1.bf16.msra.mxu0 %v702
    %1345 = vmatprep.subr.bf16.mxu0 %v707
    %1346 = vmatpush1.bf16.msra.mxu0 %v706
    %1347 = vmatprep.subr.bf16.mxu0 %v711
    %1348 = vmatpush1.bf16.msra.mxu0 %v710
    %1349 = vmatprep.subr.bf16.mxu0 %v715
    %1350 = vmatpush1.bf16.msra.mxu0 %v714
    %1351 = vmatprep.subr.bf16.mxu0 %v719
    %1352 = vmatpush1.bf16.msra.mxu0 %v718
    %1353 = vmatprep.subr.bf16.mxu0 %v723
    %1354 = vmatpush1.bf16.msra.mxu0 %v722
    %1355 = vmatprep.subr.bf16.mxu0 %v727
    %1356 = vmatpush1.bf16.msra.mxu0 %v726
    %1357 = vmatprep.subr.bf16.mxu0 %v731
    %1358 = vmatpush1.bf16.msra.mxu0 %v730
    %1359 = vmatprep.subr.bf16.mxu0 %v735
    %1360 = vmatpush1.bf16.msra.mxu0 %v734
    %1361 = vmatprep.subr.bf16.mxu0 %v739
    %1362 = vmatpush1.bf16.msra.mxu0 %v738
    %1363 = vmatprep.subr.bf16.mxu0 %v743
    %1364 = vmatpush1.bf16.msra.mxu0 %v742
    %1365 = vmatprep.subr.bf16.mxu0 %v747
    %1366 = vmatpush1.bf16.msra.mxu0 %v746
    %1367 = vmatprep.subr.bf16.mxu0 %v751
    %1368 = vmatpush1.bf16.msra.mxu0 %v750
    %1369 = vmatprep.subr.bf16.mxu0 %v755
    %1370 = vmatpush1.bf16.msra.mxu0 %v754
    %1371 = vmatprep.subr.bf16.mxu0 %v759
    %1372 = vmatpush1.bf16.msra.mxu0 %v758
    %1373 = vmatprep.subr.bf16.mxu0 %v763
    %1374 = vmatpush1.bf16.msra.mxu0 %v762
    %1375 = vmatprep.mubr.bf16.mxu0 %v1301
    %1376 = vmatmul.mubr.bf16.gmra.mrb[0].mxu0 %v1300
    %v1377 = vpop.f32.mrb[0].mxu0
    %v1378 = vadd.f32 0.0, %v1377
    %v1379 = vpop.f32.mrb[0].mxu0
    %v1380 = vadd.f32 0.0, %v1379
    %v1381 = vpop.f32.mrb[0].mxu0
    %v1382 = vpop.f32.mrb[0].mxu0
    %1383 = vdwg.mxu0
    %v1384 = vadd.f32 %v87, %v1337
    %v1385 = vadd.f32 %v91, %v1339
    %v1386 = vadd.f32 %v95, %v1378
    %v1387 = vadd.f32 %v99, %v1380
    %v1388 = vxor.u32 %v1384, 2147483648
    %v1389 = vmul.f32 %v1388, 1.442695
    %v1390 = vpow.pop %v1389
    %v1391 = vadd.f32 %v1390, 1.0
    %v1392 = vrcp.pop %v1391
    %v1393 = vmul.f32 1.0, %v1392
    %v1394 = vxor.u32 %v1385, 2147483648
    %v1395 = vmul.f32 %v1394, 1.442695
    %v1396 = vpow.pop %v1395
    %v1397 = vadd.f32 %v1396, 1.0
    %v1398 = vrcp.pop %v1397
    %v1399 = vmul.f32 1.0, %v1398
    %v1400 = vtanh.pop %v1386
    %v1401 = vxor.u32 %v1387, 2147483648
    %v1402 = vmul.f32 %v1401, 1.442695
    %v1403 = vpow.pop %v1402
    %v1404 = vadd.f32 %v1403, 1.0
    %v1405 = vrcp.pop %v1404
    %v1406 = vmul.f32 1.0, %v1405
    %v1407 = vmul.f32 %v1399, %v1172
    %v1408 = vmul.f32 %v1393, %v1400
    %v1409 = vadd.f32 %v1407, %v1408
    %v1410 = vtanh.pop %v1409
    %v1411 = vmul.f32 %v1406, %v1410
    %s1412 = scalar_lea.vmem %s0, 24
    %v1413 = vld [vmem:[%s1412] sm:$0xff]
    %1415 = vset.pattern.permute.xlu0 0
    %1416 = vperm.xlu0 %1415, %v1413
    %v1417 = vpop.permute.xlu0 %1416
    %v1419 = vmul.f32 %v1417, %v115
    %v1420 = vmul.f32 %v1417, %v119
    %v1421 = vmul.f32 %v1417, %v123
    %v1422 = vmul.f32 %v1417, %v127
    %v1423 = vadd.f32 %v1419, %v65
    %v1424 = vadd.f32 %v1420, %v69
    %v1425 = vadd.f32 %v1421, %v73
    %v1426 = vadd.f32 %v1422, %v77
    %1427 = vmatprep.subr.bf16.mxu0 %v269
    %1428 = vmatpush1.bf16.msra.mxu0 %v268
    %1429 = vmatprep.subr.bf16.mxu0 %v273
    %1430 = vmatpush1.bf16.msra.mxu0 %v272
    %1431 = vmatprep.subr.bf16.mxu0 %v277
    %1432 = vmatpush1.bf16.msra.mxu0 %v276
    %1433 = vmatprep.subr.bf16.mxu0 %v281
    %1434 = vmatpush1.bf16.msra.mxu0 %v280
    %1435 = vmatprep.subr.bf16.mxu0 %v285
    %1436 = vmatpush1.bf16.msra.mxu0 %v284
    %1437 = vmatprep.subr.bf16.mxu0 %v289
    %1438 = vmatpush1.bf16.msra.mxu0 %v288
    %1439 = vmatprep.subr.bf16.mxu0 %v293
    %1440 = vmatpush1.bf16.msra.mxu0 %v292
    %1441 = vmatprep.subr.bf16.mxu0 %v297
    %1442 = vmatpush1.bf16.msra.mxu0 %v296
    %1443 = vmatprep.subr.bf16.mxu0 0
    %1444 = vmatpush1.bf16.msra.mxu0 0
    %1445 = vmatprep.subr.bf16.mxu0 0
    %1446 = vmatpush1.bf16.msra.mxu0 0
    %1447 = vmatprep.subr.bf16.mxu0 0
    %1448 = vmatpush1.bf16.msra.mxu0 0
    %1449 = vmatprep.subr.bf16.mxu0 0
    %1450 = vmatpush1.bf16.msra.mxu0 0
    %1451 = vmatprep.subr.bf16.mxu0 0
    %1452 = vmatpush1.bf16.msra.mxu0 0
    %1453 = vmatprep.subr.bf16.mxu0 0
    %1454 = vmatpush1.bf16.msra.mxu0 0
    %1455 = vmatprep.subr.bf16.mxu0 0
    %1456 = vmatpush1.bf16.msra.mxu0 0
    %1457 = vmatprep.subr.bf16.mxu0 0
    %1458 = vmatpush1.bf16.msra.mxu0 0
    %1459 = vmatprep.mubr.bf16.mxu0 0
    %1460 = vmatmul.mubr.bf16.gmra.mrb[0].mxu0 %v1300
    %v1461 = vpop.f32.mrb[0].mxu0
    %v1462 = vadd.f32 0.0, %v1461
    %v1463 = vpop.f32.mrb[0].mxu0
    %v1464 = vadd.f32 0.0, %v1463
    %v1465 = vpop.f32.mrb[0].mxu0
    %v1466 = vpop.f32.mrb[0].mxu0
    %1467 = vdwg.mxu0
    %1468 = vmatprep.subr.bf16.mxu0 %v271
    %1469 = vmatpush1.bf16.msra.mxu0 %v270
    %1470 = vmatprep.subr.bf16.mxu0 %v275
    %1471 = vmatpush1.bf16.msra.mxu0 %v274
    %1472 = vmatprep.subr.bf16.mxu0 %v279
    %1473 = vmatpush1.bf16.msra.mxu0 %v278
    %1474 = vmatprep.subr.bf16.mxu0 %v283
    %1475 = vmatpush1.bf16.msra.mxu0 %v282
    %1476 = vmatprep.subr.bf16.mxu0 %v287
    %1477 = vmatpush1.bf16.msra.mxu0 %v286
    %1478 = vmatprep.subr.bf16.mxu0 %v291
    %1479 = vmatpush1.bf16.msra.mxu0 %v290
    %1480 = vmatprep.subr.bf16.mxu0 %v295
    %1481 = vmatpush1.bf16.msra.mxu0 %v294
    %1482 = vmatprep.subr.bf16.mxu0 %v299
    %1483 = vmatpush1.bf16.msra.mxu0 %v298
    %1484 = vmatprep.subr.bf16.mxu0 0
    %1485 = vmatpush1.bf16.msra.mxu0 0
    %1486 = vmatprep.subr.bf16.mxu0 0
    %1487 = vmatpush1.bf16.msra.mxu0 0
    %1488 = vmatprep.subr.bf16.mxu0 0
    %1489 = vmatpush1.bf16.msra.mxu0 0
    %1490 = vmatprep.subr.bf16.mxu0 0
    %1491 = vmatpush1.bf16.msra.mxu0 0
    %1492 = vmatprep.subr.bf16.mxu0 0
    %1493 = vmatpush1.bf16.msra.mxu0 0
    %1494 = vmatprep.subr.bf16.mxu0 0
    %1495 = vmatpush1.bf16.msra.mxu0 0
    %1496 = vmatprep.subr.bf16.mxu0 0
    %1497 = vmatpush1.bf16.msra.mxu0 0
    %1498 = vmatprep.subr.bf16.mxu0 0
    %1499 = vmatpush1.bf16.msra.mxu0 0
    %1500 = vmatprep.mubr.bf16.mxu0 0
    %1501 = vmatmul.mubr.bf16.gmra.mrb[0].mxu0 %v1300
    %v1502 = vpop.f32.mrb[0].mxu0
    %v1503 = vadd.f32 0.0, %v1502
    %v1504 = vpop.f32.mrb[0].mxu0
    %v1505 = vadd.f32 0.0, %v1504
    %v1506 = vpop.f32.mrb[0].mxu0
    %v1507 = vpop.f32.mrb[0].mxu0
    %1508 = vdwg.mxu0
    %v1509 = vadd.f32 %v1423, %v1462
    %v1510 = vadd.f32 %v1424, %v1464
    %v1511 = vadd.f32 %v1425, %v1503
    %v1512 = vadd.f32 %v1426, %v1505
    %v1513 = vxor.u32 %v1509, 2147483648
    %v1514 = vmul.f32 %v1513, 1.442695
    %v1515 = vpow.pop %v1514
    %v1516 = vadd.f32 %v1515, 1.0
    %v1517 = vrcp.pop %v1516
    %v1518 = vmul.f32 1.0, %v1517
    %v1519 = vxor.u32 %v1510, 2147483648
    %v1520 = vmul.f32 %v1519, 1.442695
    %v1521 = vpow.pop %v1520
    %v1522 = vadd.f32 %v1521, 1.0
    %v1523 = vrcp.pop %v1522
    %v1524 = vmul.f32 1.0, %v1523
    %v1525 = vtanh.pop %v1511
    %v1526 = vxor.u32 %v1512, 2147483648
    %v1527 = vmul.f32 %v1526, 1.442695
    %v1528 = vpow.pop %v1527
    %v1529 = vadd.f32 %v1528, 1.0
    %v1530 = vrcp.pop %v1529
    %v1531 = vmul.f32 1.0, %v1530
    %v1532 = vmul.f32 %v1524, %v1297
    %v1533 = vmul.f32 %v1518, %v1525
    %v1534 = vadd.f32 %v1532, %v1533
    %v1535 = vtanh.pop %v1534
    %v1536 = vmul.f32 %v1531, %v1535
    %v1537 = vpack.c.bf16 %v1536, %v1536
    %v1538 = vpack.c.bf16 %v1411, %v1411
    %1539 = vmatprep.subr.bf16.mxu0 %v701
    %1540 = vmatpush1.bf16.msra.mxu0 %v700
    %1541 = vmatprep.subr.bf16.mxu0 %v705
    %1542 = vmatpush1.bf16.msra.mxu0 %v704
    %1543 = vmatprep.subr.bf16.mxu0 %v709
    %1544 = vmatpush1.bf16.msra.mxu0 %v708
    %1545 = vmatprep.subr.bf16.mxu0 %v713
    %1546 = vmatpush1.bf16.msra.mxu0 %v712
    %1547 = vmatprep.subr.bf16.mxu0 %v717
    %1548 = vmatpush1.bf16.msra.mxu0 %v716
    %1549 = vmatprep.subr.bf16.mxu0 %v721
    %1550 = vmatpush1.bf16.msra.mxu0 %v720
    %1551 = vmatprep.subr.bf16.mxu0 %v725
    %1552 = vmatpush1.bf16.msra.mxu0 %v724
    %1553 = vmatprep.subr.bf16.mxu0 %v729
    %1554 = vmatpush1.bf16.msra.mxu0 %v728
    %1555 = vmatprep.subr.bf16.mxu0 %v733
    %1556 = vmatpush1.bf16.msra.mxu0 %v732
    %1557 = vmatprep.subr.bf16.mxu0 %v737
    %1558 = vmatpush1.bf16.msra.mxu0 %v736
    %1559 = vmatprep.subr.bf16.mxu0 %v741
    %1560 = vmatpush1.bf16.msra.mxu0 %v740
    %1561 = vmatprep.subr.bf16.mxu0 %v745
    %1562 = vmatpush1.bf16.msra.mxu0 %v744
    %1563 = vmatprep.subr.bf16.mxu0 %v749
    %1564 = vmatpush1.bf16.msra.mxu0 %v748
    %1565 = vmatprep.subr.bf16.mxu0 %v753
    %1566 = vmatpush1.bf16.msra.mxu0 %v752
    %1567 = vmatprep.subr.bf16.mxu0 %v757
    %1568 = vmatpush1.bf16.msra.mxu0 %v756
    %1569 = vmatprep.subr.bf16.mxu0 %v761
    %1570 = vmatpush1.bf16.msra.mxu0 %v760
    %1571 = vmatprep.mubr.bf16.mxu0 %v1538
    %1572 = vmatmul.mubr.bf16.gmra.mrb[0].mxu0 %v1537
    %v1573 = vpop.f32.mrb[0].mxu0
    %v1574 = vadd.f32 0.0, %v1573
    %v1575 = vpop.f32.mrb[0].mxu0
    %v1576 = vadd.f32 0.0, %v1575
    %v1577 = vpop.f32.mrb[0].mxu0
    %v1578 = vpop.f32.mrb[0].mxu0
    %1579 = vdwg.mxu0
    %1580 = vmatprep.subr.bf16.mxu0 %v703
    %1581 = vmatpush1.bf16.msra.mxu0 %v702
    %1582 = vmatprep.subr.bf16.mxu0 %v707
    %1583 = vmatpush1.bf16.msra.mxu0 %v706
    %1584 = vmatprep.subr.bf16.mxu0 %v711
    %1585 = vmatpush1.bf16.msra.mxu0 %v710
    %1586 = vmatprep.subr.bf16.mxu0 %v715
    %1587 = vmatpush1.bf16.msra.mxu0 %v714
    %1588 = vmatprep.subr.bf16.mxu0 %v719
    %1589 = vmatpush1.bf16.msra.mxu0 %v718
    %1590 = vmatprep.subr.bf16.mxu0 %v723
    %1591 = vmatpush1.bf16.msra.mxu0 %v722
    %1592 = vmatprep.subr.bf16.mxu0 %v727
    %1593 = vmatpush1.bf16.msra.mxu0 %v726
    %1594 = vmatprep.subr.bf16.mxu0 %v731
    %1595 = vmatpush1.bf16.msra.mxu0 %v730
    %1596 = vmatprep.subr.bf16.mxu0 %v735
    %1597 = vmatpush1.bf16.msra.mxu0 %v734
    %1598 = vmatprep.subr.bf16.mxu0 %v739
    %1599 = vmatpush1.bf16.msra.mxu0 %v738
    %1600 = vmatprep.subr.bf16.mxu0 %v743
    %1601 = vmatpush1.bf16.msra.mxu0 %v742
    %1602 = vmatprep.subr.bf16.mxu0 %v747
    %1603 = vmatpush1.bf16.msra.mxu0 %v746
    %1604 = vmatprep.subr.bf16.mxu0 %v751
    %1605 = vmatpush1.bf16.msra.mxu0 %v750
    %1606 = vmatprep.subr.bf16.mxu0 %v755
    %1607 = vmatpush1.bf16.msra.mxu0 %v754
    %1608 = vmatprep.subr.bf16.mxu0 %v759
    %1609 = vmatpush1.bf16.msra.mxu0 %v758
    %1610 = vmatprep.subr.bf16.mxu0 %v763
    %1611 = vmatpush1.bf16.msra.mxu0 %v762
    %1612 = vmatprep.mubr.bf16.mxu0 %v1538
    %1613 = vmatmul.mubr.bf16.gmra.mrb[0].mxu0 %v1537
    %v1614 = vpop.f32.mrb[0].mxu0
    %v1615 = vadd.f32 0.0, %v1614
    %v1616 = vpop.f32.mrb[0].mxu0
    %v1617 = vadd.f32 0.0, %v1616
    %v1618 = vpop.f32.mrb[0].mxu0
    %v1619 = vpop.f32.mrb[0].mxu0
    %1620 = vdwg.mxu0
    %v1621 = vadd.f32 %v87, %v1574
    %v1622 = vadd.f32 %v91, %v1576
    %v1623 = vadd.f32 %v95, %v1615
    %v1624 = vadd.f32 %v99, %v1617
    %v1625 = vxor.u32 %v1621, 2147483648
    %v1626 = vmul.f32 %v1625, 1.442695
    %v1627 = vpow.pop %v1626
    %v1628 = vadd.f32 %v1627, 1.0
    %v1629 = vrcp.pop %v1628
    %v1630 = vmul.f32 1.0, %v1629
    %v1631 = vxor.u32 %v1622, 2147483648
    %v1632 = vmul.f32 %v1631, 1.442695
    %v1633 = vpow.pop %v1632
    %v1634 = vadd.f32 %v1633, 1.0
    %v1635 = vrcp.pop %v1634
    %v1636 = vmul.f32 1.0, %v1635
    %v1637 = vtanh.pop %v1623
    %v1638 = vxor.u32 %v1624, 2147483648
    %v1639 = vmul.f32 %v1638, 1.442695
    %v1640 = vpow.pop %v1639
    %v1641 = vadd.f32 %v1640, 1.0
    %v1642 = vrcp.pop %v1641
    %v1643 = vmul.f32 1.0, %v1642
    %v1644 = vmul.f32 %v1636, %v1409
    %v1645 = vmul.f32 %v1630, %v1637
    %v1646 = vadd.f32 %v1644, %v1645
    %v1647 = vtanh.pop %v1646
    %v1648 = vmul.f32 %v1643, %v1647
    %s1649 = scalar_lea.vmem %s0, 32
    %v1650 = vld [vmem:[%s1649] sm:$0xff]
    %1652 = vset.pattern.permute.xlu0 0
    %1653 = vperm.xlu0 %1652, %v1650
    %v1654 = vpop.permute.xlu0 %1653
    %v1656 = vmul.f32 %v1654, %v115
    %v1657 = vmul.f32 %v1654, %v119
    %v1658 = vmul.f32 %v1654, %v123
    %v1659 = vmul.f32 %v1654, %v127
    %v1660 = vadd.f32 %v1656, %v65
    %v1661 = vadd.f32 %v1657, %v69
    %v1662 = vadd.f32 %v1658, %v73
    %v1663 = vadd.f32 %v1659, %v77
    %1664 = vmatprep.subr.bf16.mxu0 %v269
    %1665 = vmatpush1.bf16.msra.mxu0 %v268
    %1666 = vmatprep.subr.bf16.mxu0 %v273
    %1667 = vmatpush1.bf16.msra.mxu0 %v272
    %1668 = vmatprep.subr.bf16.mxu0 %v277
    %1669 = vmatpush1.bf16.msra.mxu0 %v276
    %1670 = vmatprep.subr.bf16.mxu0 %v281
    %1671 = vmatpush1.bf16.msra.mxu0 %v280
    %1672 = vmatprep.subr.bf16.mxu0 %v285
    %1673 = vmatpush1.bf16.msra.mxu0 %v284
    %1674 = vmatprep.subr.bf16.mxu0 %v289
    %1675 = vmatpush1.bf16.msra.mxu0 %v288
    %1676 = vmatprep.subr.bf16.mxu0 %v293
    %1677 = vmatpush1.bf16.msra.mxu0 %v292
    %1678 = vmatprep.subr.bf16.mxu0 %v297
    %1679 = vmatpush1.bf16.msra.mxu0 %v296
    %1680 = vmatprep.subr.bf16.mxu0 0
    %1681 = vmatpush1.bf16.msra.mxu0 0
    %1682 = vmatprep.subr.bf16.mxu0 0
    %1683 = vmatpush1.bf16.msra.mxu0 0
    %1684 = vmatprep.subr.bf16.mxu0 0
    %1685 = vmatpush1.bf16.msra.mxu0 0
    %1686 = vmatprep.subr.bf16.mxu0 0
    %1687 = vmatpush1.bf16.msra.mxu0 0
    %1688 = vmatprep.subr.bf16.mxu0 0
    %1689 = vmatpush1.bf16.msra.mxu0 0
    %1690 = vmatprep.subr.bf16.mxu0 0
    %1691 = vmatpush1.bf16.msra.mxu0 0
    %1692 = vmatprep.subr.bf16.mxu0 0
    %1693 = vmatpush1.bf16.msra.mxu0 0
    %1694 = vmatprep.subr.bf16.mxu0 0
    %1695 = vmatpush1.bf16.msra.mxu0 0
    %1696 = vmatprep.mubr.bf16.mxu0 0
    %1697 = vmatmul.mubr.bf16.gmra.mrb[0].mxu0 %v1537
    %v1698 = vpop.f32.mrb[0].mxu0
    %v1699 = vadd.f32 0.0, %v1698
    %v1700 = vpop.f32.mrb[0].mxu0
    %v1701 = vadd.f32 0.0, %v1700
    %v1702 = vpop.f32.mrb[0].mxu0
    %v1703 = vpop.f32.mrb[0].mxu0
    %1704 = vdwg.mxu0
    %1705 = vmatprep.subr.bf16.mxu0 %v271
    %1706 = vmatpush1.bf16.msra.mxu0 %v270
    %1707 = vmatprep.subr.bf16.mxu0 %v275
    %1708 = vmatpush1.bf16.msra.mxu0 %v274
    %1709 = vmatprep.subr.bf16.mxu0 %v279
    %1710 = vmatpush1.bf16.msra.mxu0 %v278
    %1711 = vmatprep.subr.bf16.mxu0 %v283
    %1712 = vmatpush1.bf16.msra.mxu0 %v282
    %1713 = vmatprep.subr.bf16.mxu0 %v287
    %1714 = vmatpush1.bf16.msra.mxu0 %v286
    %1715 = vmatprep.subr.bf16.mxu0 %v291
    %1716 = vmatpush1.bf16.msra.mxu0 %v290
    %1717 = vmatprep.subr.bf16.mxu0 %v295
    %1718 = vmatpush1.bf16.msra.mxu0 %v294
    %1719 = vmatprep.subr.bf16.mxu0 %v299
    %1720 = vmatpush1.bf16.msra.mxu0 %v298
    %1721 = vmatprep.subr.bf16.mxu0 0
    %1722 = vmatpush1.bf16.msra.mxu0 0
    %1723 = vmatprep.subr.bf16.mxu0 0
    %1724 = vmatpush1.bf16.msra.mxu0 0
    %1725 = vmatprep.subr.bf16.mxu0 0
    %1726 = vmatpush1.bf16.msra.mxu0 0
    %1727 = vmatprep.subr.bf16.mxu0 0
    %1728 = vmatpush1.bf16.msra.mxu0 0
    %1729 = vmatprep.subr.bf16.mxu0 0
    %1730 = vmatpush1.bf16.msra.mxu0 0
    %1731 = vmatprep.subr.bf16.mxu0 0
    %1732 = vmatpush1.bf16.msra.mxu0 0
    %1733 = vmatprep.subr.bf16.mxu0 0
    %1734 = vmatpush1.bf16.msra.mxu0 0
    %1735 = vmatprep.subr.bf16.mxu0 0
    %1736 = vmatpush1.bf16.msra.mxu0 0
    %1737 = vmatprep.mubr.bf16.mxu0 0
    %1738 = vmatmul.mubr.bf16.gmra.mrb[0].mxu0 %v1537
    %v1739 = vpop.f32.mrb[0].mxu0
    %v1740 = vadd.f32 0.0, %v1739
    %v1741 = vpop.f32.mrb[0].mxu0
    %v1742 = vadd.f32 0.0, %v1741
    %v1743 = vpop.f32.mrb[0].mxu0
    %v1744 = vpop.f32.mrb[0].mxu0
    %1745 = vdwg.mxu0
    %v1746 = vadd.f32 %v1660, %v1699
    %v1747 = vadd.f32 %v1661, %v1701
    %v1748 = vadd.f32 %v1662, %v1740
    %v1749 = vadd.f32 %v1663, %v1742
    %v1750 = vxor.u32 %v1746, 2147483648
    %v1751 = vmul.f32 %v1750, 1.442695
    %v1752 = vpow.pop %v1751
    %v1753 = vadd.f32 %v1752, 1.0
    %v1754 = vrcp.pop %v1753
    %v1755 = vmul.f32 1.0, %v1754
    %v1756 = vxor.u32 %v1747, 2147483648
    %v1757 = vmul.f32 %v1756, 1.442695
    %v1758 = vpow.pop %v1757
    %v1759 = vadd.f32 %v1758, 1.0
    %v1760 = vrcp.pop %v1759
    %v1761 = vmul.f32 1.0, %v1760
    %v1762 = vtanh.pop %v1748
    %v1763 = vxor.u32 %v1749, 2147483648
    %v1764 = vmul.f32 %v1763, 1.442695
    %v1765 = vpow.pop %v1764
    %v1766 = vadd.f32 %v1765, 1.0
    %v1767 = vrcp.pop %v1766
    %v1768 = vmul.f32 1.0, %v1767
    %v1769 = vmul.f32 %v1761, %v1534
    %v1770 = vmul.f32 %v1755, %v1762
    %v1771 = vadd.f32 %v1769, %v1770
    %v1772 = vtanh.pop %v1771
    %v1773 = vmul.f32 %v1768, %v1772
    %v1774 = vpack.c.bf16 %v1773, %v1773
    %v1775 = vpack.c.bf16 %v1648, %v1648
    %1776 = vmatprep.subr.bf16.mxu0 %v701
    %1777 = vmatpush1.bf16.msra.mxu0 %v700
    %1778 = vmatprep.subr.bf16.mxu0 %v705
    %1779 = vmatpush1.bf16.msra.mxu0 %v704
    %1780 = vmatprep.subr.bf16.mxu0 %v709
    %1781 = vmatpush1.bf16.msra.mxu0 %v708
    %1782 = vmatprep.subr.bf16.mxu0 %v713
    %1783 = vmatpush1.bf16.msra.mxu0 %v712
    %1784 = vmatprep.subr.bf16.mxu0 %v717
    %1785 = vmatpush1.bf16.msra.mxu0 %v716
    %1786 = vmatprep.subr.bf16.mxu0 %v721
    %1787 = vmatpush1.bf16.msra.mxu0 %v720
    %1788 = vmatprep.subr.bf16.mxu0 %v725
    %1789 = vmatpush1.bf16.msra.mxu0 %v724
    %1790 = vmatprep.subr.bf16.mxu0 %v729
    %1791 = vmatpush1.bf16.msra.mxu0 %v728
    %1792 = vmatprep.subr.bf16.mxu0 %v733
    %1793 = vmatpush1.bf16.msra.mxu0 %v732
    %1794 = vmatprep.subr.bf16.mxu0 %v737
    %1795 = vmatpush1.bf16.msra.mxu0 %v736
    %1796 = vmatprep.subr.bf16.mxu0 %v741
    %1797 = vmatpush1.bf16.msra.mxu0 %v740
    %1798 = vmatprep.subr.bf16.mxu0 %v745
    %1799 = vmatpush1.bf16.msra.mxu0 %v744
    %1800 = vmatprep.subr.bf16.mxu0 %v749
    %1801 = vmatpush1.bf16.msra.mxu0 %v748
    %1802 = vmatprep.subr.bf16.mxu0 %v753
    %1803 = vmatpush1.bf16.msra.mxu0 %v752
    %1804 = vmatprep.subr.bf16.mxu0 %v757
    %1805 = vmatpush1.bf16.msra.mxu0 %v756
    %1806 = vmatprep.subr.bf16.mxu0 %v761
    %1807 = vmatpush1.bf16.msra.mxu0 %v760
    %1808 = vmatprep.mubr.bf16.mxu0 %v1775
    %1809 = vmatmul.mubr.bf16.gmra.mrb[0].mxu0 %v1774
    %v1810 = vpop.f32.mrb[0].mxu0
    %v1811 = vadd.f32 0.0, %v1810
    %v1812 = vpop.f32.mrb[0].mxu0
    %v1813 = vadd.f32 0.0, %v1812
    %v1814 = vpop.f32.mrb[0].mxu0
    %v1815 = vpop.f32.mrb[0].mxu0
    %1816 = vdwg.mxu0
    %1817 = vmatprep.subr.bf16.mxu0 %v703
    %1818 = vmatpush1.bf16.msra.mxu0 %v702
    %1819 = vmatprep.subr.bf16.mxu0 %v707
    %1820 = vmatpush1.bf16.msra.mxu0 %v706
    %1821 = vmatprep.subr.bf16.mxu0 %v711
    %1822 = vmatpush1.bf16.msra.mxu0 %v710
    %1823 = vmatprep.subr.bf16.mxu0 %v715
    %1824 = vmatpush1.bf16.msra.mxu0 %v714
    %1825 = vmatprep.subr.bf16.mxu0 %v719
    %1826 = vmatpush1.bf16.msra.mxu0 %v718
    %1827 = vmatprep.subr.bf16.mxu0 %v723
    %1828 = vmatpush1.bf16.msra.mxu0 %v722
    %1829 = vmatprep.subr.bf16.mxu0 %v727
    %1830 = vmatpush1.bf16.msra.mxu0 %v726
    %1831 = vmatprep.subr.bf16.mxu0 %v731
    %1832 = vmatpush1.bf16.msra.mxu0 %v730
    %1833 = vmatprep.subr.bf16.mxu0 %v735
    %1834 = vmatpush1.bf16.msra.mxu0 %v734
    %1835 = vmatprep.subr.bf16.mxu0 %v739
    %1836 = vmatpush1.bf16.msra.mxu0 %v738
    %1837 = vmatprep.subr.bf16.mxu0 %v743
    %1838 = vmatpush1.bf16.msra.mxu0 %v742
    %1839 = vmatprep.subr.bf16.mxu0 %v747
    %1840 = vmatpush1.bf16.msra.mxu0 %v746
    %1841 = vmatprep.subr.bf16.mxu0 %v751
    %1842 = vmatpush1.bf16.msra.mxu0 %v750
    %1843 = vmatprep.subr.bf16.mxu0 %v755
    %1844 = vmatpush1.bf16.msra.mxu0 %v754
    %1845 = vmatprep.subr.bf16.mxu0 %v759
    %1846 = vmatpush1.bf16.msra.mxu0 %v758
    %1847 = vmatprep.subr.bf16.mxu0 %v763
    %1848 = vmatpush1.bf16.msra.mxu0 %v762
    %1849 = vmatprep.mubr.bf16.mxu0 %v1775
    %1850 = vmatmul.mubr.bf16.gmra.mrb[0].mxu0 %v1774
    %v1851 = vpop.f32.mrb[0].mxu0
    %v1852 = vadd.f32 0.0, %v1851
    %v1853 = vpop.f32.mrb[0].mxu0
    %v1854 = vadd.f32 0.0, %v1853
    %v1855 = vpop.f32.mrb[0].mxu0
    %v1856 = vpop.f32.mrb[0].mxu0
    %1857 = vdwg.mxu0
    %v1858 = vadd.f32 %v87, %v1811
    %v1859 = vadd.f32 %v91, %v1813
    %v1860 = vadd.f32 %v95, %v1852
    %v1861 = vadd.f32 %v99, %v1854
    %v1862 = vxor.u32 %v1858, 2147483648
    %v1863 = vmul.f32 %v1862, 1.442695
    %v1864 = vpow.pop %v1863
    %v1865 = vadd.f32 %v1864, 1.0
    %v1866 = vrcp.pop %v1865
    %v1867 = vmul.f32 1.0, %v1866
    %v1868 = vxor.u32 %v1859, 2147483648
    %v1869 = vmul.f32 %v1868, 1.442695
    %v1870 = vpow.pop %v1869
    %v1871 = vadd.f32 %v1870, 1.0
    %v1872 = vrcp.pop %v1871
    %v1873 = vmul.f32 1.0, %v1872
    %v1874 = vtanh.pop %v1860
    %v1875 = vxor.u32 %v1861, 2147483648
    %v1876 = vmul.f32 %v1875, 1.442695
    %v1877 = vpow.pop %v1876
    %v1878 = vadd.f32 %v1877, 1.0
    %v1879 = vrcp.pop %v1878
    %v1880 = vmul.f32 1.0, %v1879
    %v1881 = vmul.f32 %v1873, %v1646
    %v1882 = vmul.f32 %v1867, %v1874
    %v1883 = vadd.f32 %v1881, %v1882
    %v1884 = vtanh.pop %v1883
    %v1885 = vmul.f32 %v1880, %v1884
    %s1886 = scalar_lea.vmem %s0, 40
    %v1887 = vld [vmem:[%s1886] sm:$0xff]
    %1889 = vset.pattern.permute.xlu0 0
    %1890 = vperm.xlu0 %1889, %v1887
    %v1891 = vpop.permute.xlu0 %1890
    %v1893 = vmul.f32 %v1891, %v115
    %v1894 = vmul.f32 %v1891, %v119
    %v1895 = vmul.f32 %v1891, %v123
    %v1896 = vmul.f32 %v1891, %v127
    %v1897 = vadd.f32 %v1893, %v65
    %v1898 = vadd.f32 %v1894, %v69
    %v1899 = vadd.f32 %v1895, %v73
    %v1900 = vadd.f32 %v1896, %v77
    %1901 = vmatprep.subr.bf16.mxu0 %v269
    %1902 = vmatpush1.bf16.msra.mxu0 %v268
    %1903 = vmatprep.subr.bf16.mxu0 %v273
    %1904 = vmatpush1.bf16.msra.mxu0 %v272
    %1905 = vmatprep.subr.bf16.mxu0 %v277
    %1906 = vmatpush1.bf16.msra.mxu0 %v276
    %1907 = vmatprep.subr.bf16.mxu0 %v281
    %1908 = vmatpush1.bf16.msra.mxu0 %v280
    %1909 = vmatprep.subr.bf16.mxu0 %v285
    %1910 = vmatpush1.bf16.msra.mxu0 %v284
    %1911 = vmatprep.subr.bf16.mxu0 %v289
    %1912 = vmatpush1.bf16.msra.mxu0 %v288
    %1913 = vmatprep.subr.bf16.mxu0 %v293
    %1914 = vmatpush1.bf16.msra.mxu0 %v292
    %1915 = vmatprep.subr.bf16.mxu0 %v297
    %1916 = vmatpush1.bf16.msra.mxu0 %v296
    %1917 = vmatprep.subr.bf16.mxu0 0
    %1918 = vmatpush1.bf16.msra.mxu0 0
    %1919 = vmatprep.subr.bf16.mxu0 0
    %1920 = vmatpush1.bf16.msra.mxu0 0
    %1921 = vmatprep.subr.bf16.mxu0 0
    %1922 = vmatpush1.bf16.msra.mxu0 0
    %1923 = vmatprep.subr.bf16.mxu0 0
    %1924 = vmatpush1.bf16.msra.mxu0 0
    %1925 = vmatprep.subr.bf16.mxu0 0
    %1926 = vmatpush1.bf16.msra.mxu0 0
    %1927 = vmatprep.subr.bf16.mxu0 0
    %1928 = vmatpush1.bf16.msra.mxu0 0
    %1929 = vmatprep.subr.bf16.mxu0 0
    %1930 = vmatpush1.bf16.msra.mxu0 0
    %1931 = vmatprep.subr.bf16.mxu0 0
    %1932 = vmatpush1.bf16.msra.mxu0 0
    %1933 = vmatprep.mubr.bf16.mxu0 0
    %1934 = vmatmul.mubr.bf16.gmra.mrb[0].mxu0 %v1774
    %v1935 = vpop.f32.mrb[0].mxu0
    %v1936 = vadd.f32 0.0, %v1935
    %v1937 = vpop.f32.mrb[0].mxu0
    %v1938 = vadd.f32 0.0, %v1937
    %v1939 = vpop.f32.mrb[0].mxu0
    %v1940 = vpop.f32.mrb[0].mxu0
    %1941 = vdwg.mxu0
    %1942 = vmatprep.subr.bf16.mxu0 %v271
    %1943 = vmatpush1.bf16.msra.mxu0 %v270
    %1944 = vmatprep.subr.bf16.mxu0 %v275
    %1945 = vmatpush1.bf16.msra.mxu0 %v274
    %1946 = vmatprep.subr.bf16.mxu0 %v279
    %1947 = vmatpush1.bf16.msra.mxu0 %v278
    %1948 = vmatprep.subr.bf16.mxu0 %v283
    %1949 = vmatpush1.bf16.msra.mxu0 %v282
    %1950 = vmatprep.subr.bf16.mxu0 %v287
    %1951 = vmatpush1.bf16.msra.mxu0 %v286
    %1952 = vmatprep.subr.bf16.mxu0 %v291
    %1953 = vmatpush1.bf16.msra.mxu0 %v290
    %1954 = vmatprep.subr.bf16.mxu0 %v295
    %1955 = vmatpush1.bf16.msra.mxu0 %v294
    %1956 = vmatprep.subr.bf16.mxu0 %v299
    %1957 = vmatpush1.bf16.msra.mxu0 %v298
    %1958 = vmatprep.subr.bf16.mxu0 0
    %1959 = vmatpush1.bf16.msra.mxu0 0
    %1960 = vmatprep.subr.bf16.mxu0 0
    %1961 = vmatpush1.bf16.msra.mxu0 0
    %1962 = vmatprep.subr.bf16.mxu0 0
    %1963 = vmatpush1.bf16.msra.mxu0 0
    %1964 = vmatprep.subr.bf16.mxu0 0
    %1965 = vmatpush1.bf16.msra.mxu0 0
    %1966 = vmatprep.subr.bf16.mxu0 0
    %1967 = vmatpush1.bf16.msra.mxu0 0
    %1968 = vmatprep.subr.bf16.mxu0 0
    %1969 = vmatpush1.bf16.msra.mxu0 0
    %1970 = vmatprep.subr.bf16.mxu0 0
    %1971 = vmatpush1.bf16.msra.mxu0 0
    %1972 = vmatprep.subr.bf16.mxu0 0
    %1973 = vmatpush1.bf16.msra.mxu0 0
    %1974 = vmatprep.mubr.bf16.mxu0 0
    %1975 = vmatmul.mubr.bf16.gmra.mrb[0].mxu0 %v1774
    %v1976 = vpop.f32.mrb[0].mxu0
    %v1977 = vadd.f32 0.0, %v1976
    %v1978 = vpop.f32.mrb[0].mxu0
    %v1979 = vadd.f32 0.0, %v1978
    %v1980 = vpop.f32.mrb[0].mxu0
    %v1981 = vpop.f32.mrb[0].mxu0
    %1982 = vdwg.mxu0
    %v1983 = vadd.f32 %v1897, %v1936
    %v1984 = vadd.f32 %v1898, %v1938
    %v1985 = vadd.f32 %v1899, %v1977
    %v1986 = vadd.f32 %v1900, %v1979
    %v1987 = vxor.u32 %v1983, 2147483648
    %v1988 = vmul.f32 %v1987, 1.442695
    %v1989 = vpow.pop %v1988
    %v1990 = vadd.f32 %v1989, 1.0
    %v1991 = vrcp.pop %v1990
    %v1992 = vmul.f32 1.0, %v1991
    %v1993 = vxor.u32 %v1984, 2147483648
    %v1994 = vmul.f32 %v1993, 1.442695
    %v1995 = vpow.pop %v1994
    %v1996 = vadd.f32 %v1995, 1.0
    %v1997 = vrcp.pop %v1996
    %v1998 = vmul.f32 1.0, %v1997
    %v1999 = vtanh.pop %v1985
    %v2000 = vxor.u32 %v1986, 2147483648
    %v2001 = vmul.f32 %v2000, 1.442695
    %v2002 = vpow.pop %v2001
    %v2003 = vadd.f32 %v2002, 1.0
    %v2004 = vrcp.pop %v2003
    %v2005 = vmul.f32 1.0, %v2004
    %v2006 = vmul.f32 %v1998, %v1771
    %v2007 = vmul.f32 %v1992, %v1999
    %v2008 = vadd.f32 %v2006, %v2007
    %v2009 = vtanh.pop %v2008
    %v2010 = vmul.f32 %v2005, %v2009
    %v2011 = vpack.c.bf16 %v2010, %v2010
    %v2012 = vpack.c.bf16 %v1885, %v1885
    %2013 = vmatprep.subr.bf16.mxu0 %v701
    %2014 = vmatpush1.bf16.msra.mxu0 %v700
    %2015 = vmatprep.subr.bf16.mxu0 %v705
    %2016 = vmatpush1.bf16.msra.mxu0 %v704
    %2017 = vmatprep.subr.bf16.mxu0 %v709
    %2018 = vmatpush1.bf16.msra.mxu0 %v708
    %2019 = vmatprep.subr.bf16.mxu0 %v713
    %2020 = vmatpush1.bf16.msra.mxu0 %v712
    %2021 = vmatprep.subr.bf16.mxu0 %v717
    %2022 = vmatpush1.bf16.msra.mxu0 %v716
    %2023 = vmatprep.subr.bf16.mxu0 %v721
    %2024 = vmatpush1.bf16.msra.mxu0 %v720
    %2025 = vmatprep.subr.bf16.mxu0 %v725
    %2026 = vmatpush1.bf16.msra.mxu0 %v724
    %2027 = vmatprep.subr.bf16.mxu0 %v729
    %2028 = vmatpush1.bf16.msra.mxu0 %v728
    %2029 = vmatprep.subr.bf16.mxu0 %v733
    %2030 = vmatpush1.bf16.msra.mxu0 %v732
    %2031 = vmatprep.subr.bf16.mxu0 %v737
    %2032 = vmatpush1.bf16.msra.mxu0 %v736
    %2033 = vmatprep.subr.bf16.mxu0 %v741
    %2034 = vmatpush1.bf16.msra.mxu0 %v740
    %2035 = vmatprep.subr.bf16.mxu0 %v745
    %2036 = vmatpush1.bf16.msra.mxu0 %v744
    %2037 = vmatprep.subr.bf16.mxu0 %v749
    %2038 = vmatpush1.bf16.msra.mxu0 %v748
    %2039 = vmatprep.subr.bf16.mxu0 %v753
    %2040 = vmatpush1.bf16.msra.mxu0 %v752
    %2041 = vmatprep.subr.bf16.mxu0 %v757
    %2042 = vmatpush1.bf16.msra.mxu0 %v756
    %2043 = vmatprep.subr.bf16.mxu0 %v761
    %2044 = vmatpush1.bf16.msra.mxu0 %v760
    %2045 = vmatprep.mubr.bf16.mxu0 %v2012
    %2046 = vmatmul.mubr.bf16.gmra.mrb[0].mxu0 %v2011
    %v2047 = vpop.f32.mrb[0].mxu0
    %v2048 = vadd.f32 0.0, %v2047
    %v2049 = vpop.f32.mrb[0].mxu0
    %v2050 = vadd.f32 0.0, %v2049
    %v2051 = vpop.f32.mrb[0].mxu0
    %v2052 = vpop.f32.mrb[0].mxu0
    %2053 = vdwg.mxu0
    %2054 = vmatprep.subr.bf16.mxu0 %v703
    %2055 = vmatpush1.bf16.msra.mxu0 %v702
    %2056 = vmatprep.subr.bf16.mxu0 %v707
    %2057 = vmatpush1.bf16.msra.mxu0 %v706
    %2058 = vmatprep.subr.bf16.mxu0 %v711
    %2059 = vmatpush1.bf16.msra.mxu0 %v710
    %2060 = vmatprep.subr.bf16.mxu0 %v715
    %2061 = vmatpush1.bf16.msra.mxu0 %v714
    %2062 = vmatprep.subr.bf16.mxu0 %v719
    %2063 = vmatpush1.bf16.msra.mxu0 %v718
    %2064 = vmatprep.subr.bf16.mxu0 %v723
    %2065 = vmatpush1.bf16.msra.mxu0 %v722
    %2066 = vmatprep.subr.bf16.mxu0 %v727
    %2067 = vmatpush1.bf16.msra.mxu0 %v726
    %2068 = vmatprep.subr.bf16.mxu0 %v731
    %2069 = vmatpush1.bf16.msra.mxu0 %v730
    %2070 = vmatprep.subr.bf16.mxu0 %v735
    %2071 = vmatpush1.bf16.msra.mxu0 %v734
    %2072 = vmatprep.subr.bf16.mxu0 %v739
    %2073 = vmatpush1.bf16.msra.mxu0 %v738
    %2074 = vmatprep.subr.bf16.mxu0 %v743
    %2075 = vmatpush1.bf16.msra.mxu0 %v742
    %2076 = vmatprep.subr.bf16.mxu0 %v747
    %2077 = vmatpush1.bf16.msra.mxu0 %v746
    %2078 = vmatprep.subr.bf16.mxu0 %v751
    %2079 = vmatpush1.bf16.msra.mxu0 %v750
    %2080 = vmatprep.subr.bf16.mxu0 %v755
    %2081 = vmatpush1.bf16.msra.mxu0 %v754
    %2082 = vmatprep.subr.bf16.mxu0 %v759
    %2083 = vmatpush1.bf16.msra.mxu0 %v758
    %2084 = vmatprep.subr.bf16.mxu0 %v763
    %2085 = vmatpush1.bf16.msra.mxu0 %v762
    %2086 = vmatprep.mubr.bf16.mxu0 %v2012
    %2087 = vmatmul.mubr.bf16.gmra.mrb[0].mxu0 %v2011
    %v2088 = vpop.f32.mrb[0].mxu0
    %v2089 = vadd.f32 0.0, %v2088
    %v2090 = vpop.f32.mrb[0].mxu0
    %v2091 = vadd.f32 0.0, %v2090
    %v2092 = vpop.f32.mrb[0].mxu0
    %v2093 = vpop.f32.mrb[0].mxu0
    %2094 = vdwg.mxu0
    %v2095 = vadd.f32 %v87, %v2048
    %v2096 = vadd.f32 %v91, %v2050
    %v2097 = vadd.f32 %v95, %v2089
    %v2098 = vadd.f32 %v99, %v2091
    %v2099 = vxor.u32 %v2095, 2147483648
    %v2100 = vmul.f32 %v2099, 1.442695
    %v2101 = vpow.pop %v2100
    %v2102 = vadd.f32 %v2101, 1.0
    %v2103 = vrcp.pop %v2102
    %v2104 = vmul.f32 1.0, %v2103
    %v2105 = vxor.u32 %v2096, 2147483648
    %v2106 = vmul.f32 %v2105, 1.442695
    %v2107 = vpow.pop %v2106
    %v2108 = vadd.f32 %v2107, 1.0
    %v2109 = vrcp.pop %v2108
    %v2110 = vmul.f32 1.0, %v2109
    %v2111 = vtanh.pop %v2097
    %v2112 = vxor.u32 %v2098, 2147483648
    %v2113 = vmul.f32 %v2112, 1.442695
    %v2114 = vpow.pop %v2113
    %v2115 = vadd.f32 %v2114, 1.0
    %v2116 = vrcp.pop %v2115
    %v2117 = vmul.f32 1.0, %v2116
    %v2118 = vmul.f32 %v2110, %v1883
    %v2119 = vmul.f32 %v2104, %v2111
    %v2120 = vadd.f32 %v2118, %v2119
    %v2121 = vtanh.pop %v2120
    %v2122 = vmul.f32 %v2117, %v2121
    %s2123 = scalar_lea.vmem %s0, 48
    %v2124 = vld [vmem:[%s2123] sm:$0xff]
    %2126 = vset.pattern.permute.xlu0 0
    %2127 = vperm.xlu0 %2126, %v2124
    %v2128 = vpop.permute.xlu0 %2127
    %v2130 = vmul.f32 %v2128, %v115
    %v2131 = vmul.f32 %v2128, %v119
    %v2132 = vmul.f32 %v2128, %v123
    %v2133 = vmul.f32 %v2128, %v127
    %v2134 = vadd.f32 %v2130, %v65
    %v2135 = vadd.f32 %v2131, %v69
    %v2136 = vadd.f32 %v2132, %v73
    %v2137 = vadd.f32 %v2133, %v77
    %2138 = vmatprep.subr.bf16.mxu0 %v269
    %2139 = vmatpush1.bf16.msra.mxu0 %v268
    %2140 = vmatprep.subr.bf16.mxu0 %v273
    %2141 = vmatpush1.bf16.msra.mxu0 %v272
    %2142 = vmatprep.subr.bf16.mxu0 %v277
    %2143 = vmatpush1.bf16.msra.mxu0 %v276
    %2144 = vmatprep.subr.bf16.mxu0 %v281
    %2145 = vmatpush1.bf16.msra.mxu0 %v280
    %2146 = vmatprep.subr.bf16.mxu0 %v285
    %2147 = vmatpush1.bf16.msra.mxu0 %v284
    %2148 = vmatprep.subr.bf16.mxu0 %v289
    %2149 = vmatpush1.bf16.msra.mxu0 %v288
    %2150 = vmatprep.subr.bf16.mxu0 %v293
    %2151 = vmatpush1.bf16.msra.mxu0 %v292
    %2152 = vmatprep.subr.bf16.mxu0 %v297
    %2153 = vmatpush1.bf16.msra.mxu0 %v296
    %2154 = vmatprep.subr.bf16.mxu0 0
    %2155 = vmatpush1.bf16.msra.mxu0 0
    %2156 = vmatprep.subr.bf16.mxu0 0
    %2157 = vmatpush1.bf16.msra.mxu0 0
    %2158 = vmatprep.subr.bf16.mxu0 0
    %2159 = vmatpush1.bf16.msra.mxu0 0
    %2160 = vmatprep.subr.bf16.mxu0 0
    %2161 = vmatpush1.bf16.msra.mxu0 0
    %2162 = vmatprep.subr.bf16.mxu0 0
    %2163 = vmatpush1.bf16.msra.mxu0 0
    %2164 = vmatprep.subr.bf16.mxu0 0
    %2165 = vmatpush1.bf16.msra.mxu0 0
    %2166 = vmatprep.subr.bf16.mxu0 0
    %2167 = vmatpush1.bf16.msra.mxu0 0
    %2168 = vmatprep.subr.bf16.mxu0 0
    %2169 = vmatpush1.bf16.msra.mxu0 0
    %2170 = vmatprep.mubr.bf16.mxu0 0
    %2171 = vmatmul.mubr.bf16.gmra.mrb[0].mxu0 %v2011
    %v2172 = vpop.f32.mrb[0].mxu0
    %v2173 = vadd.f32 0.0, %v2172
    %v2174 = vpop.f32.mrb[0].mxu0
    %v2175 = vadd.f32 0.0, %v2174
    %v2176 = vpop.f32.mrb[0].mxu0
    %v2177 = vpop.f32.mrb[0].mxu0
    %2178 = vdwg.mxu0
    %2179 = vmatprep.subr.bf16.mxu0 %v271
    %2180 = vmatpush1.bf16.msra.mxu0 %v270
    %2181 = vmatprep.subr.bf16.mxu0 %v275
    %2182 = vmatpush1.bf16.msra.mxu0 %v274
    %2183 = vmatprep.subr.bf16.mxu0 %v279
    %2184 = vmatpush1.bf16.msra.mxu0 %v278
    %2185 = vmatprep.subr.bf16.mxu0 %v283
    %2186 = vmatpush1.bf16.msra.mxu0 %v282
    %2187 = vmatprep.subr.bf16.mxu0 %v287
    %2188 = vmatpush1.bf16.msra.mxu0 %v286
    %2189 = vmatprep.subr.bf16.mxu0 %v291
    %2190 = vmatpush1.bf16.msra.mxu0 %v290
    %2191 = vmatprep.subr.bf16.mxu0 %v295
    %2192 = vmatpush1.bf16.msra.mxu0 %v294
    %2193 = vmatprep.subr.bf16.mxu0 %v299
    %2194 = vmatpush1.bf16.msra.mxu0 %v298
    %2195 = vmatprep.subr.bf16.mxu0 0
    %2196 = vmatpush1.bf16.msra.mxu0 0
    %2197 = vmatprep.subr.bf16.mxu0 0
    %2198 = vmatpush1.bf16.msra.mxu0 0
    %2199 = vmatprep.subr.bf16.mxu0 0
    %2200 = vmatpush1.bf16.msra.mxu0 0
    %2201 = vmatprep.subr.bf16.mxu0 0
    %2202 = vmatpush1.bf16.msra.mxu0 0
    %2203 = vmatprep.subr.bf16.mxu0 0
    %2204 = vmatpush1.bf16.msra.mxu0 0
    %2205 = vmatprep.subr.bf16.mxu0 0
    %2206 = vmatpush1.bf16.msra.mxu0 0
    %2207 = vmatprep.subr.bf16.mxu0 0
    %2208 = vmatpush1.bf16.msra.mxu0 0
    %2209 = vmatprep.subr.bf16.mxu0 0
    %2210 = vmatpush1.bf16.msra.mxu0 0
    %2211 = vmatprep.mubr.bf16.mxu0 0
    %2212 = vmatmul.mubr.bf16.gmra.mrb[0].mxu0 %v2011
    %v2213 = vpop.f32.mrb[0].mxu0
    %v2214 = vadd.f32 0.0, %v2213
    %v2215 = vpop.f32.mrb[0].mxu0
    %v2216 = vadd.f32 0.0, %v2215
    %v2217 = vpop.f32.mrb[0].mxu0
    %v2218 = vpop.f32.mrb[0].mxu0
    %2219 = vdwg.mxu0
    %v2220 = vadd.f32 %v2134, %v2173
    %v2221 = vadd.f32 %v2135, %v2175
    %v2222 = vadd.f32 %v2136, %v2214
    %v2223 = vadd.f32 %v2137, %v2216
    %v2224 = vxor.u32 %v2220, 2147483648
    %v2225 = vmul.f32 %v2224, 1.442695
    %v2226 = vpow.pop %v2225
    %v2227 = vadd.f32 %v2226, 1.0
    %v2228 = vrcp.pop %v2227
    %v2229 = vmul.f32 1.0, %v2228
    %v2230 = vxor.u32 %v2221, 2147483648
    %v2231 = vmul.f32 %v2230, 1.442695
    %v2232 = vpow.pop %v2231
    %v2233 = vadd.f32 %v2232, 1.0
    %v2234 = vrcp.pop %v2233
    %v2235 = vmul.f32 1.0, %v2234
    %v2236 = vtanh.pop %v2222
    %v2237 = vxor.u32 %v2223, 2147483648
    %v2238 = vmul.f32 %v2237, 1.442695
    %v2239 = vpow.pop %v2238
    %v2240 = vadd.f32 %v2239, 1.0
    %v2241 = vrcp.pop %v2240
    %v2242 = vmul.f32 1.0, %v2241
    %v2243 = vmul.f32 %v2235, %v2008
    %v2244 = vmul.f32 %v2229, %v2236
    %v2245 = vadd.f32 %v2243, %v2244
    %v2246 = vtanh.pop %v2245
    %v2247 = vmul.f32 %v2242, %v2246
    %v2248 = vpack.c.bf16 %v2247, %v2247
    %v2249 = vpack.c.bf16 %v2122, %v2122
    %2250 = vmatprep.subr.bf16.mxu0 %v701
    %2251 = vmatpush1.bf16.msra.mxu0 %v700
    %2252 = vmatprep.subr.bf16.mxu0 %v705
    %2253 = vmatpush1.bf16.msra.mxu0 %v704
    %2254 = vmatprep.subr.bf16.mxu0 %v709
    %2255 = vmatpush1.bf16.msra.mxu0 %v708
    %2256 = vmatprep.subr.bf16.mxu0 %v713
    %2257 = vmatpush1.bf16.msra.mxu0 %v712
    %2258 = vmatprep.subr.bf16.mxu0 %v717
    %2259 = vmatpush1.bf16.msra.mxu0 %v716
    %2260 = vmatprep.subr.bf16.mxu0 %v721
    %2261 = vmatpush1.bf16.msra.mxu0 %v720
    %2262 = vmatprep.subr.bf16.mxu0 %v725
    %2263 = vmatpush1.bf16.msra.mxu0 %v724
    %2264 = vmatprep.subr.bf16.mxu0 %v729
    %2265 = vmatpush1.bf16.msra.mxu0 %v728
    %2266 = vmatprep.subr.bf16.mxu0 %v733
    %2267 = vmatpush1.bf16.msra.mxu0 %v732
    %2268 = vmatprep.subr.bf16.mxu0 %v737
    %2269 = vmatpush1.bf16.msra.mxu0 %v736
    %2270 = vmatprep.subr.bf16.mxu0 %v741
    %2271 = vmatpush1.bf16.msra.mxu0 %v740
    %2272 = vmatprep.subr.bf16.mxu0 %v745
    %2273 = vmatpush1.bf16.msra.mxu0 %v744
    %2274 = vmatprep.subr.bf16.mxu0 %v749
    %2275 = vmatpush1.bf16.msra.mxu0 %v748
    %2276 = vmatprep.subr.bf16.mxu0 %v753
    %2277 = vmatpush1.bf16.msra.mxu0 %v752
    %2278 = vmatprep.subr.bf16.mxu0 %v757
    %2279 = vmatpush1.bf16.msra.mxu0 %v756
    %2280 = vmatprep.subr.bf16.mxu0 %v761
    %2281 = vmatpush1.bf16.msra.mxu0 %v760
    %2282 = vmatprep.mubr.bf16.mxu0 %v2249
    %2283 = vmatmul.mubr.bf16.gmra.mrb[0].mxu0 %v2248
    %v2284 = vpop.f32.mrb[0].mxu0
    %v2285 = vadd.f32 0.0, %v2284
    %v2286 = vpop.f32.mrb[0].mxu0
    %v2287 = vadd.f32 0.0, %v2286
    %v2288 = vpop.f32.mrb[0].mxu0
    %v2289 = vpop.f32.mrb[0].mxu0
    %2290 = vdwg.mxu0
    %2291 = vmatprep.subr.bf16.mxu0 %v703
    %2292 = vmatpush1.bf16.msra.mxu0 %v702
    %2293 = vmatprep.subr.bf16.mxu0 %v707
    %2294 = vmatpush1.bf16.msra.mxu0 %v706
    %2295 = vmatprep.subr.bf16.mxu0 %v711
    %2296 = vmatpush1.bf16.msra.mxu0 %v710
    %2297 = vmatprep.subr.bf16.mxu0 %v715
    %2298 = vmatpush1.bf16.msra.mxu0 %v714
    %2299 = vmatprep.subr.bf16.mxu0 %v719
    %2300 = vmatpush1.bf16.msra.mxu0 %v718
    %2301 = vmatprep.subr.bf16.mxu0 %v723
    %2302 = vmatpush1.bf16.msra.mxu0 %v722
    %2303 = vmatprep.subr.bf16.mxu0 %v727
    %2304 = vmatpush1.bf16.msra.mxu0 %v726
    %2305 = vmatprep.subr.bf16.mxu0 %v731
    %2306 = vmatpush1.bf16.msra.mxu0 %v730
    %2307 = vmatprep.subr.bf16.mxu0 %v735
    %2308 = vmatpush1.bf16.msra.mxu0 %v734
    %2309 = vmatprep.subr.bf16.mxu0 %v739
    %2310 = vmatpush1.bf16.msra.mxu0 %v738
    %2311 = vmatprep.subr.bf16.mxu0 %v743
    %2312 = vmatpush1.bf16.msra.mxu0 %v742
    %2313 = vmatprep.subr.bf16.mxu0 %v747
    %2314 = vmatpush1.bf16.msra.mxu0 %v746
    %2315 = vmatprep.subr.bf16.mxu0 %v751
    %2316 = vmatpush1.bf16.msra.mxu0 %v750
    %2317 = vmatprep.subr.bf16.mxu0 %v755
    %2318 = vmatpush1.bf16.msra.mxu0 %v754
    %2319 = vmatprep.subr.bf16.mxu0 %v759
    %2320 = vmatpush1.bf16.msra.mxu0 %v758
    %2321 = vmatprep.subr.bf16.mxu0 %v763
    %2322 = vmatpush1.bf16.msra.mxu0 %v762
    %2323 = vmatprep.mubr.bf16.mxu0 %v2249
    %2324 = vmatmul.mubr.bf16.gmra.mrb[0].mxu0 %v2248
    %v2325 = vpop.f32.mrb[0].mxu0
    %v2326 = vadd.f32 0.0, %v2325
    %v2327 = vpop.f32.mrb[0].mxu0
    %v2328 = vadd.f32 0.0, %v2327
    %v2329 = vpop.f32.mrb[0].mxu0
    %v2330 = vpop.f32.mrb[0].mxu0
    %2331 = vdwg.mxu0
    %v2332 = vadd.f32 %v87, %v2285
    %v2333 = vadd.f32 %v91, %v2287
    %v2334 = vadd.f32 %v95, %v2326
    %v2335 = vadd.f32 %v99, %v2328
    %v2336 = vxor.u32 %v2332, 2147483648
    %v2337 = vmul.f32 %v2336, 1.442695
    %v2338 = vpow.pop %v2337
    %v2339 = vadd.f32 %v2338, 1.0
    %v2340 = vrcp.pop %v2339
    %v2341 = vmul.f32 1.0, %v2340
    %v2342 = vxor.u32 %v2333, 2147483648
    %v2343 = vmul.f32 %v2342, 1.442695
    %v2344 = vpow.pop %v2343
    %v2345 = vadd.f32 %v2344, 1.0
    %v2346 = vrcp.pop %v2345
    %v2347 = vmul.f32 1.0, %v2346
    %v2348 = vtanh.pop %v2334
    %v2349 = vxor.u32 %v2335, 2147483648
    %v2350 = vmul.f32 %v2349, 1.442695
    %v2351 = vpow.pop %v2350
    %v2352 = vadd.f32 %v2351, 1.0
    %v2353 = vrcp.pop %v2352
    %v2354 = vmul.f32 1.0, %v2353
    %v2355 = vmul.f32 %v2347, %v2120
    %v2356 = vmul.f32 %v2341, %v2348
    %v2357 = vadd.f32 %v2355, %v2356
    %v2358 = vtanh.pop %v2357
    %v2359 = vmul.f32 %v2354, %v2358
    %s2360 = scalar_lea.vmem %s0, 56
    %v2361 = vld [vmem:[%s2360] sm:$0xff]
    %2363 = vset.pattern.permute.xlu0 0
    %2364 = vperm.xlu0 %2363, %v2361
    %v2365 = vpop.permute.xlu0 %2364
    %v2367 = vmul.f32 %v2365, %v115
    %v2368 = vmul.f32 %v2365, %v119
    %v2369 = vmul.f32 %v2365, %v123
    %v2370 = vmul.f32 %v2365, %v127
    %v2371 = vadd.f32 %v2367, %v65
    %v2372 = vadd.f32 %v2368, %v69
    %v2373 = vadd.f32 %v2369, %v73
    %v2374 = vadd.f32 %v2370, %v77
    %2375 = vmatprep.subr.bf16.mxu0 %v269
    %2376 = vmatpush1.bf16.msra.mxu0 %v268
    %2377 = vmatprep.subr.bf16.mxu0 %v273
    %2378 = vmatpush1.bf16.msra.mxu0 %v272
    %2379 = vmatprep.subr.bf16.mxu0 %v277
    %2380 = vmatpush1.bf16.msra.mxu0 %v276
    %2381 = vmatprep.subr.bf16.mxu0 %v281
    %2382 = vmatpush1.bf16.msra.mxu0 %v280
    %2383 = vmatprep.subr.bf16.mxu0 %v285
    %2384 = vmatpush1.bf16.msra.mxu0 %v284
    %2385 = vmatprep.subr.bf16.mxu0 %v289
    %2386 = vmatpush1.bf16.msra.mxu0 %v288
    %2387 = vmatprep.subr.bf16.mxu0 %v293
    %2388 = vmatpush1.bf16.msra.mxu0 %v292
    %2389 = vmatprep.subr.bf16.mxu0 %v297
    %2390 = vmatpush1.bf16.msra.mxu0 %v296
    %2391 = vmatprep.subr.bf16.mxu0 0
    %2392 = vmatpush1.bf16.msra.mxu0 0
    %2393 = vmatprep.subr.bf16.mxu0 0
    %2394 = vmatpush1.bf16.msra.mxu0 0
    %2395 = vmatprep.subr.bf16.mxu0 0
    %2396 = vmatpush1.bf16.msra.mxu0 0
    %2397 = vmatprep.subr.bf16.mxu0 0
    %2398 = vmatpush1.bf16.msra.mxu0 0
    %2399 = vmatprep.subr.bf16.mxu0 0
    %2400 = vmatpush1.bf16.msra.mxu0 0
    %2401 = vmatprep.subr.bf16.mxu0 0
    %2402 = vmatpush1.bf16.msra.mxu0 0
    %2403 = vmatprep.subr.bf16.mxu0 0
    %2404 = vmatpush1.bf16.msra.mxu0 0
    %2405 = vmatprep.subr.bf16.mxu0 0
    %2406 = vmatpush1.bf16.msra.mxu0 0
    %2407 = vmatprep.mubr.bf16.mxu0 0
    %2408 = vmatmul.mubr.bf16.gmra.mrb[0].mxu0 %v2248
    %v2409 = vpop.f32.mrb[0].mxu0
    %v2410 = vadd.f32 0.0, %v2409
    %v2411 = vpop.f32.mrb[0].mxu0
    %v2412 = vadd.f32 0.0, %v2411
    %v2413 = vpop.f32.mrb[0].mxu0
    %v2414 = vpop.f32.mrb[0].mxu0
    %2415 = vdwg.mxu0
    %2416 = vmatprep.subr.bf16.mxu0 %v271
    %2417 = vmatpush1.bf16.msra.mxu0 %v270
    %2418 = vmatprep.subr.bf16.mxu0 %v275
    %2419 = vmatpush1.bf16.msra.mxu0 %v274
    %2420 = vmatprep.subr.bf16.mxu0 %v279
    %2421 = vmatpush1.bf16.msra.mxu0 %v278
    %2422 = vmatprep.subr.bf16.mxu0 %v283
    %2423 = vmatpush1.bf16.msra.mxu0 %v282
    %2424 = vmatprep.subr.bf16.mxu0 %v287
    %2425 = vmatpush1.bf16.msra.mxu0 %v286
    %2426 = vmatprep.subr.bf16.mxu0 %v291
    %2427 = vmatpush1.bf16.msra.mxu0 %v290
    %2428 = vmatprep.subr.bf16.mxu0 %v295
    %2429 = vmatpush1.bf16.msra.mxu0 %v294
    %2430 = vmatprep.subr.bf16.mxu0 %v299
    %2431 = vmatpush1.bf16.msra.mxu0 %v298
    %2432 = vmatprep.subr.bf16.mxu0 0
    %2433 = vmatpush1.bf16.msra.mxu0 0
    %2434 = vmatprep.subr.bf16.mxu0 0
    %2435 = vmatpush1.bf16.msra.mxu0 0
    %2436 = vmatprep.subr.bf16.mxu0 0
    %2437 = vmatpush1.bf16.msra.mxu0 0
    %2438 = vmatprep.subr.bf16.mxu0 0
    %2439 = vmatpush1.bf16.msra.mxu0 0
    %2440 = vmatprep.subr.bf16.mxu0 0
    %2441 = vmatpush1.bf16.msra.mxu0 0
    %2442 = vmatprep.subr.bf16.mxu0 0
    %2443 = vmatpush1.bf16.msra.mxu0 0
    %2444 = vmatprep.subr.bf16.mxu0 0
    %2445 = vmatpush1.bf16.msra.mxu0 0
    %2446 = vmatprep.subr.bf16.mxu0 0
    %2447 = vmatpush1.bf16.msra.mxu0 0
    %2448 = vmatprep.mubr.bf16.mxu0 0
    %2449 = vmatmul.mubr.bf16.gmra.mrb[0].mxu0 %v2248
    %v2450 = vpop.f32.mrb[0].mxu0
    %v2451 = vadd.f32 0.0, %v2450
    %v2452 = vpop.f32.mrb[0].mxu0
    %v2453 = vadd.f32 0.0, %v2452
    %v2454 = vpop.f32.mrb[0].mxu0
    %v2455 = vpop.f32.mrb[0].mxu0
    %2456 = vdwg.mxu0
    %v2457 = vadd.f32 %v2371, %v2410
    %v2458 = vadd.f32 %v2372, %v2412
    %v2459 = vadd.f32 %v2373, %v2451
    %v2460 = vadd.f32 %v2374, %v2453
    %v2461 = vxor.u32 %v2457, 2147483648
    %v2462 = vmul.f32 %v2461, 1.442695
    %v2463 = vpow.pop %v2462
    %v2464 = vadd.f32 %v2463, 1.0
    %v2465 = vrcp.pop %v2464
    %v2466 = vmul.f32 1.0, %v2465
    %v2467 = vxor.u32 %v2458, 2147483648
    %v2468 = vmul.f32 %v2467, 1.442695
    %v2469 = vpow.pop %v2468
    %v2470 = vadd.f32 %v2469, 1.0
    %v2471 = vrcp.pop %v2470
    %v2472 = vmul.f32 1.0, %v2471
    %v2473 = vtanh.pop %v2459
    %v2474 = vxor.u32 %v2460, 2147483648
    %v2475 = vmul.f32 %v2474, 1.442695
    %v2476 = vpow.pop %v2475
    %v2477 = vadd.f32 %v2476, 1.0
    %v2478 = vrcp.pop %v2477
    %v2479 = vmul.f32 1.0, %v2478
    %v2480 = vmul.f32 %v2472, %v2245
    %v2481 = vmul.f32 %v2466, %v2473
    %v2482 = vadd.f32 %v2480, %v2481
    %v2483 = vtanh.pop %v2482
    %v2484 = vmul.f32 %v2479, %v2483
    %v2485 = vpack.c.bf16 %v2484, %v2484
    %v2486 = vpack.c.bf16 %v2359, %v2359
    %2487 = vmatprep.subr.bf16.mxu0 %v701
    %2488 = vmatpush1.bf16.msra.mxu0 %v700
    %2489 = vmatprep.subr.bf16.mxu0 %v705
    %2490 = vmatpush1.bf16.msra.mxu0 %v704
    %2491 = vmatprep.subr.bf16.mxu0 %v709
    %2492 = vmatpush1.bf16.msra.mxu0 %v708
    %2493 = vmatprep.subr.bf16.mxu0 %v713
    %2494 = vmatpush1.bf16.msra.mxu0 %v712
    %2495 = vmatprep.subr.bf16.mxu0 %v717
    %2496 = vmatpush1.bf16.msra.mxu0 %v716
    %2497 = vmatprep.subr.bf16.mxu0 %v721
    %2498 = vmatpush1.bf16.msra.mxu0 %v720
    %2499 = vmatprep.subr.bf16.mxu0 %v725
    %2500 = vmatpush1.bf16.msra.mxu0 %v724
    %2501 = vmatprep.subr.bf16.mxu0 %v729
    %2502 = vmatpush1.bf16.msra.mxu0 %v728
    %2503 = vmatprep.subr.bf16.mxu0 %v733
    %2504 = vmatpush1.bf16.msra.mxu0 %v732
    %2505 = vmatprep.subr.bf16.mxu0 %v737
    %2506 = vmatpush1.bf16.msra.mxu0 %v736
    %2507 = vmatprep.subr.bf16.mxu0 %v741
    %2508 = vmatpush1.bf16.msra.mxu0 %v740
    %2509 = vmatprep.subr.bf16.mxu0 %v745
    %2510 = vmatpush1.bf16.msra.mxu0 %v744
    %2511 = vmatprep.subr.bf16.mxu0 %v749
    %2512 = vmatpush1.bf16.msra.mxu0 %v748
    %2513 = vmatprep.subr.bf16.mxu0 %v753
    %2514 = vmatpush1.bf16.msra.mxu0 %v752
    %2515 = vmatprep.subr.bf16.mxu0 %v757
    %2516 = vmatpush1.bf16.msra.mxu0 %v756
    %2517 = vmatprep.subr.bf16.mxu0 %v761
    %2518 = vmatpush1.bf16.msra.mxu0 %v760
    %2519 = vmatprep.mubr.bf16.mxu0 %v2486
    %2520 = vmatmul.mubr.bf16.gmra.mrb[0].mxu0 %v2485
    %v2521 = vpop.f32.mrb[0].mxu0
    %v2522 = vadd.f32 0.0, %v2521
    %v2523 = vpop.f32.mrb[0].mxu0
    %v2524 = vadd.f32 0.0, %v2523
    %v2525 = vpop.f32.mrb[0].mxu0
    %v2526 = vpop.f32.mrb[0].mxu0
    %2527 = vdwg.mxu0
    %2528 = vmatprep.subr.bf16.mxu0 %v703
    %2529 = vmatpush1.bf16.msra.mxu0 %v702
    %2530 = vmatprep.subr.bf16.mxu0 %v707
    %2531 = vmatpush1.bf16.msra.mxu0 %v706
    %2532 = vmatprep.subr.bf16.mxu0 %v711
    %2533 = vmatpush1.bf16.msra.mxu0 %v710
    %2534 = vmatprep.subr.bf16.mxu0 %v715
    %2535 = vmatpush1.bf16.msra.mxu0 %v714
    %2536 = vmatprep.subr.bf16.mxu0 %v719
    %2537 = vmatpush1.bf16.msra.mxu0 %v718
    %2538 = vmatprep.subr.bf16.mxu0 %v723
    %2539 = vmatpush1.bf16.msra.mxu0 %v722
    %2540 = vmatprep.subr.bf16.mxu0 %v727
    %2541 = vmatpush1.bf16.msra.mxu0 %v726
    %2542 = vmatprep.subr.bf16.mxu0 %v731
    %2543 = vmatpush1.bf16.msra.mxu0 %v730
    %2544 = vmatprep.subr.bf16.mxu0 %v735
    %2545 = vmatpush1.bf16.msra.mxu0 %v734
    %2546 = vmatprep.subr.bf16.mxu0 %v739
    %2547 = vmatpush1.bf16.msra.mxu0 %v738
    %2548 = vmatprep.subr.bf16.mxu0 %v743
    %2549 = vmatpush1.bf16.msra.mxu0 %v742
    %2550 = vmatprep.subr.bf16.mxu0 %v747
    %2551 = vmatpush1.bf16.msra.mxu0 %v746
    %2552 = vmatprep.subr.bf16.mxu0 %v751
    %2553 = vmatpush1.bf16.msra.mxu0 %v750
    %2554 = vmatprep.subr.bf16.mxu0 %v755
    %2555 = vmatpush1.bf16.msra.mxu0 %v754
    %2556 = vmatprep.subr.bf16.mxu0 %v759
    %2557 = vmatpush1.bf16.msra.mxu0 %v758
    %2558 = vmatprep.subr.bf16.mxu0 %v763
    %2559 = vmatpush1.bf16.msra.mxu0 %v762
    %2560 = vmatprep.mubr.bf16.mxu0 %v2486
    %2561 = vmatmul.mubr.bf16.gmra.mrb[0].mxu0 %v2485
    %v2562 = vpop.f32.mrb[0].mxu0
    %v2563 = vadd.f32 0.0, %v2562
    %v2564 = vpop.f32.mrb[0].mxu0
    %v2565 = vadd.f32 0.0, %v2564
    %v2566 = vpop.f32.mrb[0].mxu0
    %v2567 = vpop.f32.mrb[0].mxu0
    %2568 = vdwg.mxu0
    %v2569 = vadd.f32 %v87, %v2522
    %v2570 = vadd.f32 %v91, %v2524
    %v2571 = vadd.f32 %v95, %v2563
    %v2572 = vadd.f32 %v99, %v2565
    %v2573 = vxor.u32 %v2569, 2147483648
    %v2574 = vmul.f32 %v2573, 1.442695
    %v2575 = vpow.pop %v2574
    %v2576 = vadd.f32 %v2575, 1.0
    %v2577 = vrcp.pop %v2576
    %v2578 = vmul.f32 1.0, %v2577
    %v2579 = vxor.u32 %v2570, 2147483648
    %v2580 = vmul.f32 %v2579, 1.442695
    %v2581 = vpow.pop %v2580
    %v2582 = vadd.f32 %v2581, 1.0
    %v2583 = vrcp.pop %v2582
    %v2584 = vmul.f32 1.0, %v2583
    %v2585 = vtanh.pop %v2571
    %v2586 = vxor.u32 %v2572, 2147483648
    %v2587 = vmul.f32 %v2586, 1.442695
    %v2588 = vpow.pop %v2587
    %v2589 = vadd.f32 %v2588, 1.0
    %v2590 = vrcp.pop %v2589
    %v2591 = vmul.f32 1.0, %v2590
    %v2592 = vmul.f32 %v2584, %v2357
    %v2593 = vmul.f32 %v2578, %v2585
    %v2594 = vadd.f32 %v2592, %v2593
    %v2595 = vtanh.pop %v2594
    %v2596 = vmul.f32 %v2591, %v2595
    %v2597 = vld [vmem:[%s6] sm:$0x1]
    %v2599 = vlaneseq
    %v2600 = vshrl.u32 %v2599, 7
    %v2601 = vsub.s32 0, %v2600
    %v2602 = vrot.slane %v2597, %v2601
    %v2604 = vmul.f32 %v2596, %v2602
    %2605 = vadd.xlane.f32.xlu0 %v2604
    %v2606 = vpop.xlane.xlu0 %2605
    %v2607 = vld [vmem:[#allocation2] sm:$0x1]
    %v2609 = vlaneseq
    %v2610 = vshrl.u32 %v2609, 7
    %v2611 = vsub.s32 0, %v2610
    %v2612 = vrot.slane %v2607, %v2611
    %v2614 = vadd.f32 %v2606, %v2612
    %vm2615 = vcmask 7168
    %2616 = vst.msk [vmem:[%s8] sm:$0xff] %vm2615, %v2614
    // Predicated region
    $region42: #{tpu_custom_call.1} parent=1 // pred_check
      _
    $region43: #{tpu_custom_call.1} parent=1 // pred_check_branch
      %2618 = sbr.rel (0) target = $region45
    $region44: #{tpu_custom_call.1} parent=1 // pred_region
      _
    $region45: #{tpu_custom_call.1} parent=1 // pred_fallthru
      _
    // Predicated region
    $region46: #{tpu_custom_call.1} parent=1 // pred_check
      _
    $region47: #{tpu_custom_call.1} parent=1 // pred_check_branch
      %2620 = sbr.rel (0) target = $region49
    $region48: #{tpu_custom_call.1} parent=1 // pred_region
      _
    $region49: #{tpu_custom_call.1} parent=1 // pred_fallthru
      _
    %2621 = vsyncpa [#allocation4], 1
    %2622 = vsyncpa [#allocation6], 1

</llo_original>
